<compile_context>
chip_gen: v7x
topology: tpu7x:2x2x1
jax: 0.10.0
libtpu: 0.0.40
codegen_flags: <defaults>
</compile_context>

<pallas_src>
import functools
import math

import jax
import jax.numpy as jnp
from jax.experimental import pallas as pl
from jax.experimental.pallas import tpu as pltpu


# ---------------------------------------------------------------------------
# Pallas kernel: full LSTM stack + Linear head, fused, wavefront-interleaved
# ---------------------------------------------------------------------------

def _fused_lstm_fc_kernel(*refs, num_layers, seq_len, batch, hidden):
    """refs = (x, wih_0, whh_0, b_0, ..., wih_{L-1}, whh_{L-1}, b_{L-1},
               fc_w, fc_b, out, proj_scratch)

    x:       (S*B_pad, I)   time-major rows, row t*B_pad + b = x[b, t, :]
    wih_l:   (in_l, 4H)     gate-fused (i, f, g, o) along the last dim
    whh_l:   (H, 4H)
    b_l:     (1, 4H)        bias_ih + bias_hh pre-summed (always f32)
    fc_w:    (H, C), fc_b: (1, C)
    out:     (B_pad, C)     f32
    proj_scratch: VMEM (S*B_pad, 4H) f32 -- hoisted layer-0 input projection
    """
    S, Bp, H = seq_len, batch, hidden
    f32 = jnp.float32

    x_ref = refs[0]
    layer_refs = refs[1:1 + 3 * num_layers]
    fc_w_ref = refs[1 + 3 * num_layers]
    fc_b_ref = refs[2 + 3 * num_layers]
    out_ref = refs[3 + 3 * num_layers]
    proj_ref = refs[4 + 3 * num_layers]

    # Loop-invariant weights, loaded once.
    wih = [layer_refs[3 * l][...] for l in range(num_layers)]
    whh = [layer_refs[3 * l + 1][...] for l in range(num_layers)]
    bias = [layer_refs[3 * l + 2][...].astype(f32) for l in range(num_layers)]
    w_dtype = whh[0].dtype

    # Hoisted layer-0 input projection for the whole sequence: one MXU matmul,
    # staged to VMEM so per-step reads are aligned (B_pad, 4H) loads instead of
    # keeping an (S*B_pad, 4H) value live in vregs across the recurrence.
    proj_ref[...] = (
        jnp.dot(x_ref[...], wih[0], preferred_element_type=f32) + bias[0])

    # Per-layer recurrent state (f32).
    h = [jnp.zeros((Bp, H), f32) for _ in range(num_layers)]
    c = [jnp.zeros((Bp, H), f32) for _ in range(num_layers)]

    def lstm_cell(gates, c_prev):
        i_g = jax.nn.sigmoid(gates[:, 0 * H:1 * H])
        f_g = jax.nn.sigmoid(gates[:, 1 * H:2 * H])
        g_g = jnp.tanh(gates[:, 2 * H:3 * H])
        o_g = jax.nn.sigmoid(gates[:, 3 * H:4 * H])
        c_new = f_g * c_prev + i_g * g_g
        h_new = o_g * jnp.tanh(c_new)
        return h_new, c_new

    # Wavefront over (layer, t) anti-diagonals: at wavefront step s, layer l runs
    # its timestep t = s - l.  Layer l consumes layer l-1's output at t = s - l,
    # which was produced at wavefront step s - 1 (snapshot `prev`), so the
    # num_layers per-step matmuls inside one wavefront step are independent and
    # pipeline in the MXU.  Short fixed trip count -> statically unrolled.
    for s in range(S + num_layers - 1):
        prev = list(h)  # each layer's output at its previous wavefront step
        for l in range(num_layers):
            t = s - l
            if t < 0 or t >= S:
                continue
            if l == 0:
                gates = (proj_ref[pl.ds(t * Bp, Bp), :]
                         + jnp.dot(h[0].astype(w_dtype), whh[0],
                                   preferred_element_type=f32))
            else:
                gates = (jnp.dot(prev[l - 1].astype(w_dtype), wih[l],
                                 preferred_element_type=f32)
                         + jnp.dot(h[l].astype(w_dtype), whh[l],
                                   preferred_element_type=f32)
                         + bias[l])
            h_new, c_new = lstm_cell(gates, c[l])
            h[l] = h_new
            c[l] = c_new

    # fc head on hidden[-1] (top layer's final hidden state); only (B_pad, C)
    # leaves the kernel.
    out_ref[...] = (jnp.dot(h[num_layers - 1].astype(fc_w_ref.dtype), fc_w_ref[...],
                            preferred_element_type=f32)
                    + fc_b_ref[...].astype(f32))


# ---------------------------------------------------------------------------
# Wrapper
# ---------------------------------------------------------------------------

def lstm_predictor_forward(x, layer_params, fc_w_t, fc_b, *,
                           compute_dtype=jnp.float32):
    """x: (B, S, num_classes) batch-first, like the PyTorch module.

    compute_dtype: dtype of matmul operands (weights / x / h). f32 state and f32
    accumulation are used regardless.
    """
    B, S, I = x.shape
    H = layer_params[0][1].shape[0]        # whh: (H, 4H)
    C = fc_w_t.shape[1]
    L = len(layer_params)

    # Pad batch (sublane dim) to a multiple of 8 so every per-step access inside the
    # recurrence is a full (8,128) tile.  Padded rows are zero and discarded at the end.
    Bp = ((B + 7) // 8) * 8
    if Bp != B:
        x = jnp.concatenate([x, jnp.zeros((Bp - B, S, I), x.dtype)], axis=0)

    # Time-major flattened rows: row t*Bp + b holds x[b, t, :].
    x_flat = jnp.transpose(x, (1, 0, 2)).reshape(S * Bp, I).astype(compute_dtype)

    flat_params = []
    for (wih, whh, b) in layer_params:
        flat_params += [wih.astype(compute_dtype),
                        whh.astype(compute_dtype),
                        b.astype(jnp.float32)]           # biases stay f32

    kernel = functools.partial(
        _fused_lstm_fc_kernel,
        num_layers=L, seq_len=S, batch=Bp, hidden=H)

    out = pl.pallas_call(
        kernel,
        out_shape=jax.ShapeDtypeStruct((Bp, C), jnp.float32),
        scratch_shapes=[pltpu.VMEM((S * Bp, 4 * H), jnp.float32)],  # layer-0 proj
    )(x_flat, *flat_params,
      fc_w_t.astype(compute_dtype), fc_b.reshape(1, C).astype(jnp.float32))

    return out[:B]


# ---------------------------------------------------------------------------
# Deterministic parameter init (matches nn.LSTM / nn.Linear shapes, gate order i,f,g,o)
# ---------------------------------------------------------------------------

def init_params(key, num_classes, hidden_size, num_layers):
    k = 1.0 / math.sqrt(hidden_size)
    layers = []
    for layer in range(num_layers):
        in_f = num_classes if layer == 0 else hidden_size
        key, k1, k2, k3, k4 = jax.random.split(key, 5)
        w_ih = jax.random.uniform(k1, (4 * hidden_size, in_f), jnp.float32, -k, k)
        w_hh = jax.random.uniform(k2, (4 * hidden_size, hidden_size), jnp.float32, -k, k)
        b_ih = jax.random.uniform(k3, (4 * hidden_size,), jnp.float32, -k, k)
        b_hh = jax.random.uniform(k4, (4 * hidden_size,), jnp.float32, -k, k)
        wih = w_ih.T                                           # (in_f, 4H) gate-fused
        whh = w_hh.T                                           # (H, 4H)
        b = (b_ih + b_hh).reshape(1, 4 * hidden_size)          # (1, 4H)
        layers.append((wih, whh, b))
    key, k5, k6 = jax.random.split(key, 3)
    fc_w = jax.random.uniform(k5, (num_classes, hidden_size), jnp.float32, -k, k)
    fc_b = jax.random.uniform(k6, (num_classes,), jnp.float32, -k, k)
    return layers, fc_w.T, fc_b


# ---------------------------------------------------------------------------
# Pure-JAX reference (layer-major order; same gate-fused weights)
# ---------------------------------------------------------------------------

def reference_forward(x, layer_params, fc_w_t, fc_b):
    B, S, _ = x.shape
    seq = x  # (B, S, in)
    for (wih, whh, b) in layer_params:
        H = whh.shape[0]
        h = jnp.zeros((B, H), jnp.float32)
        c = jnp.zeros((B, H), jnp.float32)
        outs = []
        for t in range(S):
            p = seq[:, t, :] @ wih + b
            gates = p + h @ whh
            i_g = jax.nn.sigmoid(gates[:, :H])
            f_g = jax.nn.sigmoid(gates[:, H:2 * H])
            g_g = jnp.tanh(gates[:, 2 * H:3 * H])
            o_g = jax.nn.sigmoid(gates[:, 3 * H:])
            c = f_g * c + i_g * g_g
            h = o_g * jnp.tanh(c)
            outs.append(h)
        seq = jnp.stack(outs, axis=1)
    return seq[:, -1, :] @ fc_w_t + fc_b


# ---------------------------------------------------------------------------

if __name__ == "__main__":
    num_classes = 8
    hidden_size = 32     # 4H = 128 -> lane-dense fused gate matmul
    num_layers = 2
    batch = 2            # padded to 8 (sublane) inside the wrapper
    seq_len = 8

    key = jax.random.PRNGKey(0)
    key, xk = jax.random.split(key)
    x = jax.random.normal(xk, (batch, seq_len, num_classes), jnp.float32)

    layer_params, fc_w_t, fc_b = init_params(key, num_classes, hidden_size, num_layers)

    # f32 matmul path: strict check against the pure-JAX reference.
    out_f32 = jax.block_until_ready(
        lstm_predictor_forward(x, layer_params, fc_w_t, fc_b))
    ref = reference_forward(x, layer_params, fc_w_t, fc_b)
    assert out_f32.shape == (batch, num_classes)
    assert jnp.allclose(out_f32, ref, atol=1e-4, rtol=1e-4), (out_f32, ref)

    # bf16 matmul-operand path (f32 accumulate / f32 state): compare against a reference
    # built from the same bf16-rounded weights/inputs so only per-step operand rounding
    # differs; loose tolerance per the review.
    out_bf16 = jax.block_until_ready(
        lstm_predictor_forward(x, layer_params, fc_w_t, fc_b,
                               compute_dtype=jnp.bfloat16))
    rnd = lambda a: a.astype(jnp.bfloat16).astype(jnp.float32)
    layer_params_r = [(rnd(wih), rnd(whh), b) for (wih, whh, b) in layer_params]
    ref_bf16 = reference_forward(rnd(x), layer_params_r, rnd(fc_w_t), fc_b)
    assert out_bf16.shape == (batch, num_classes)
    assert jnp.allclose(out_bf16, ref_bf16, atol=5e-2, rtol=5e-2), (out_bf16, ref_bf16)

    print("KERNEL_OK")
</pallas_src>

<mosaic_0001>
module attributes {stable_mosaic.version = 11 : i64} {
  func.func @_fused_lstm_fc_kernel(%arg0: memref<64x8xf32, #tpu.memory_space<vmem>>, %arg1: memref<8x128xf32, #tpu.memory_space<vmem>>, %arg2: memref<32x128xf32, #tpu.memory_space<vmem>>, %arg3: memref<1x128xf32, #tpu.memory_space<vmem>>, %arg4: memref<32x128xf32, #tpu.memory_space<vmem>>, %arg5: memref<32x128xf32, #tpu.memory_space<vmem>>, %arg6: memref<1x128xf32, #tpu.memory_space<vmem>>, %arg7: memref<32x8xf32, #tpu.memory_space<vmem>>, %arg8: memref<1x8xf32, #tpu.memory_space<vmem>>, %arg9: memref<8x8xf32, #tpu.memory_space<vmem>>, %arg10: memref<64x128xf32, #tpu.memory_space<vmem>>) attributes {dimension_semantics = [], scalar_prefetch = 0 : i64, scratch_operands = 1 : i64, tpu.core_type = #tpu.core_type<tc>} {
    %c0 = arith.constant 0 : index
    %c0_0 = arith.constant 0 : index
    %0 = vector.load %arg1[%c0, %c0_0] : memref<8x128xf32, #tpu.memory_space<vmem>>, vector<8x128xf32>
    %c0_1 = arith.constant 0 : index
    %c0_2 = arith.constant 0 : index
    %1 = vector.load %arg4[%c0_1, %c0_2] : memref<32x128xf32, #tpu.memory_space<vmem>>, vector<32x128xf32>
    %c0_3 = arith.constant 0 : index
    %c0_4 = arith.constant 0 : index
    %2 = vector.load %arg2[%c0_3, %c0_4] : memref<32x128xf32, #tpu.memory_space<vmem>>, vector<32x128xf32>
    %c0_5 = arith.constant 0 : index
    %c0_6 = arith.constant 0 : index
    %3 = vector.load %arg5[%c0_5, %c0_6] : memref<32x128xf32, #tpu.memory_space<vmem>>, vector<32x128xf32>
    %c0_7 = arith.constant 0 : index
    %c0_8 = arith.constant 0 : index
    %4 = vector.load %arg3[%c0_7, %c0_8] : memref<1x128xf32, #tpu.memory_space<vmem>>, vector<1x128xf32>
    %c0_9 = arith.constant 0 : index
    %c0_10 = arith.constant 0 : index
    %5 = vector.load %arg6[%c0_9, %c0_10] : memref<1x128xf32, #tpu.memory_space<vmem>>, vector<1x128xf32>
    %c0_11 = arith.constant 0 : index
    %c0_12 = arith.constant 0 : index
    %6 = vector.load %arg0[%c0_11, %c0_12] : memref<64x8xf32, #tpu.memory_space<vmem>>, vector<64x8xf32>
    %cst = arith.constant dense<0.000000e+00> : vector<64x128xf32>
    %7 = tpu.matmul %6, %0, %cst {dimension_numbers = #tpu.dot_dimension_numbers<[1], [0], [0], [1], [0, 0, 1, 1], [], []>} : vector<64x8xf32>, vector<8x128xf32>, vector<64x128xf32> -> vector<64x128xf32>
    %8 = vector.broadcast %4 : vector<1x128xf32> to vector<64x128xf32>
    %9 = arith.addf %7, %8 : vector<64x128xf32>
    %c0_13 = arith.constant 0 : index
    %c0_14 = arith.constant 0 : index
    %10 = vector.load %arg10[%c0_13, %c0_14] : memref<64x128xf32, #tpu.memory_space<vmem>>, vector<64x128xf32>
    tpu.vector_store %arg10[%c0_13, %c0_14], %9 {strides = array<i32>} : memref<64x128xf32, #tpu.memory_space<vmem>>, vector<64x128xf32>,
    %cst_15 = arith.constant 0.000000e+00 : f32
    %11 = vector.broadcast %cst_15 : f32 to vector<8x32xf32>
    %cst_16 = arith.constant 0.000000e+00 : f32
    %12 = vector.broadcast %cst_16 : f32 to vector<8x32xf32>
    %cst_17 = arith.constant 0.000000e+00 : f32
    %13 = vector.broadcast %cst_17 : f32 to vector<8x32xf32>
    %cst_18 = arith.constant 0.000000e+00 : f32
    %14 = vector.broadcast %cst_18 : f32 to vector<8x32xf32>
    %c0_19 = arith.constant 0 : index
    %c0_20 = arith.constant 0 : index
    %15 = vector.load %arg10[%c0_19, %c0_20] : memref<64x128xf32, #tpu.memory_space<vmem>>, vector<8x128xf32>
    %cst_21 = arith.constant dense<0.000000e+00> : vector<8x128xf32>
    %16 = tpu.matmul %11, %2, %cst_21 {dimension_numbers = #tpu.dot_dimension_numbers<[1], [0], [0], [1], [0, 0, 1, 1], [], []>} : vector<8x32xf32>, vector<32x128xf32>, vector<8x128xf32> -> vector<8x128xf32>
    %17 = arith.addf %15, %16 : vector<8x128xf32>
    %18 = vector.extract_strided_slice %17 {offsets = [0, 0], sizes = [8, 32], strides = [1, 1]} : vector<8x128xf32> to vector<8x32xf32>
    %19 = arith.negf %18 : vector<8x32xf32>
    %20 = math.exp %19 : vector<8x32xf32>
    %cst_22 = arith.constant 1.000000e+00 : f32
    %21 = vector.broadcast %cst_22 : f32 to vector<8x32xf32>
    %22 = arith.addf %21, %20 : vector<8x32xf32>
    %23 = arith.divf %21, %22 : vector<8x32xf32>
    %24 = vector.extract_strided_slice %17 {offsets = [0, 32], sizes = [8, 32], strides = [1, 1]} : vector<8x128xf32> to vector<8x32xf32>
    %25 = arith.negf %24 : vector<8x32xf32>
    %26 = math.exp %25 : vector<8x32xf32>
    %cst_23 = arith.constant 1.000000e+00 : f32
    %27 = vector.broadcast %cst_23 : f32 to vector<8x32xf32>
    %28 = arith.addf %27, %26 : vector<8x32xf32>
    %29 = arith.divf %27, %28 : vector<8x32xf32>
    %30 = vector.extract_strided_slice %17 {offsets = [0, 64], sizes = [8, 32], strides = [1, 1]} : vector<8x128xf32> to vector<8x32xf32>
    %31 = math.tanh %30 : vector<8x32xf32>
    %32 = vector.extract_strided_slice %17 {offsets = [0, 96], sizes = [8, 32], strides = [1, 1]} : vector<8x128xf32> to vector<8x32xf32>
    %33 = arith.negf %32 : vector<8x32xf32>
    %34 = math.exp %33 : vector<8x32xf32>
    %cst_24 = arith.constant 1.000000e+00 : f32
    %35 = vector.broadcast %cst_24 : f32 to vector<8x32xf32>
    %36 = arith.addf %35, %34 : vector<8x32xf32>
    %37 = arith.divf %35, %36 : vector<8x32xf32>
    %38 = arith.mulf %29, %13 : vector<8x32xf32>
    %39 = arith.mulf %23, %31 : vector<8x32xf32>
    %40 = arith.addf %38, %39 : vector<8x32xf32>
    %41 = math.tanh %40 : vector<8x32xf32>
    %42 = arith.mulf %37, %41 : vector<8x32xf32>
    %c8 = arith.constant 8 : index
    %c0_25 = arith.constant 0 : index
    %43 = vector.load %arg10[%c8, %c0_25] : memref<64x128xf32, #tpu.memory_space<vmem>>, vector<8x128xf32>
    %cst_26 = arith.constant dense<0.000000e+00> : vector<8x128xf32>
    %44 = tpu.matmul %42, %2, %cst_26 {dimension_numbers = #tpu.dot_dimension_numbers<[1], [0], [0], [1], [0, 0, 1, 1], [], []>} : vector<8x32xf32>, vector<32x128xf32>, vector<8x128xf32> -> vector<8x128xf32>
    %45 = arith.addf %43, %44 : vector<8x128xf32>
    %46 = vector.extract_strided_slice %45 {offsets = [0, 0], sizes = [8, 32], strides = [1, 1]} : vector<8x128xf32> to vector<8x32xf32>
    %47 = arith.negf %46 : vector<8x32xf32>
    %48 = math.exp %47 : vector<8x32xf32>
    %cst_27 = arith.constant 1.000000e+00 : f32
    %49 = vector.broadcast %cst_27 : f32 to vector<8x32xf32>
    %50 = arith.addf %49, %48 : vector<8x32xf32>
    %51 = arith.divf %49, %50 : vector<8x32xf32>
    %52 = vector.extract_strided_slice %45 {offsets = [0, 32], sizes = [8, 32], strides = [1, 1]} : vector<8x128xf32> to vector<8x32xf32>
    %53 = arith.negf %52 : vector<8x32xf32>
    %54 = math.exp %53 : vector<8x32xf32>
    %cst_28 = arith.constant 1.000000e+00 : f32
    %55 = vector.broadcast %cst_28 : f32 to vector<8x32xf32>
    %56 = arith.addf %55, %54 : vector<8x32xf32>
    %57 = arith.divf %55, %56 : vector<8x32xf32>
    %58 = vector.extract_strided_slice %45 {offsets = [0, 64], sizes = [8, 32], strides = [1, 1]} : vector<8x128xf32> to vector<8x32xf32>
    %59 = math.tanh %58 : vector<8x32xf32>
    %60 = vector.extract_strided_slice %45 {offsets = [0, 96], sizes = [8, 32], strides = [1, 1]} : vector<8x128xf32> to vector<8x32xf32>
    %61 = arith.negf %60 : vector<8x32xf32>
    %62 = math.exp %61 : vector<8x32xf32>
    %cst_29 = arith.constant 1.000000e+00 : f32
    %63 = vector.broadcast %cst_29 : f32 to vector<8x32xf32>
    %64 = arith.addf %63, %62 : vector<8x32xf32>
    %65 = arith.divf %63, %64 : vector<8x32xf32>
    %66 = arith.mulf %57, %40 : vector<8x32xf32>
    %67 = arith.mulf %51, %59 : vector<8x32xf32>
    %68 = arith.addf %66, %67 : vector<8x32xf32>
    %69 = math.tanh %68 : vector<8x32xf32>
    %70 = arith.mulf %65, %69 : vector<8x32xf32>
    %cst_30 = arith.constant dense<0.000000e+00> : vector<8x128xf32>
    %71 = tpu.matmul %42, %1, %cst_30 {dimension_numbers = #tpu.dot_dimension_numbers<[1], [0], [0], [1], [0, 0, 1, 1], [], []>} : vector<8x32xf32>, vector<32x128xf32>, vector<8x128xf32> -> vector<8x128xf32>
    %cst_31 = arith.constant dense<0.000000e+00> : vector<8x128xf32>
    %72 = tpu.matmul %12, %3, %cst_31 {dimension_numbers = #tpu.dot_dimension_numbers<[1], [0], [0], [1], [0, 0, 1, 1], [], []>} : vector<8x32xf32>, vector<32x128xf32>, vector<8x128xf32> -> vector<8x128xf32>
    %73 = arith.addf %71, %72 : vector<8x128xf32>
    %74 = vector.broadcast %5 : vector<1x128xf32> to vector<8x128xf32>
    %75 = arith.addf %73, %74 : vector<8x128xf32>
    %76 = vector.extract_strided_slice %75 {offsets = [0, 0], sizes = [8, 32], strides = [1, 1]} : vector<8x128xf32> to vector<8x32xf32>
    %77 = arith.negf %76 : vector<8x32xf32>
    %78 = math.exp %77 : vector<8x32xf32>
    %cst_32 = arith.constant 1.000000e+00 : f32
    %79 = vector.broadcast %cst_32 : f32 to vector<8x32xf32>
    %80 = arith.addf %79, %78 : vector<8x32xf32>
    %81 = arith.divf %79, %80 : vector<8x32xf32>
    %82 = vector.extract_strided_slice %75 {offsets = [0, 32], sizes = [8, 32], strides = [1, 1]} : vector<8x128xf32> to vector<8x32xf32>
    %83 = arith.negf %82 : vector<8x32xf32>
    %84 = math.exp %83 : vector<8x32xf32>
    %cst_33 = arith.constant 1.000000e+00 : f32
    %85 = vector.broadcast %cst_33 : f32 to vector<8x32xf32>
    %86 = arith.addf %85, %84 : vector<8x32xf32>
    %87 = arith.divf %85, %86 : vector<8x32xf32>
    %88 = vector.extract_strided_slice %75 {offsets = [0, 64], sizes = [8, 32], strides = [1, 1]} : vector<8x128xf32> to vector<8x32xf32>
    %89 = math.tanh %88 : vector<8x32xf32>
    %90 = vector.extract_strided_slice %75 {offsets = [0, 96], sizes = [8, 32], strides = [1, 1]} : vector<8x128xf32> to vector<8x32xf32>
    %91 = arith.negf %90 : vector<8x32xf32>
    %92 = math.exp %91 : vector<8x32xf32>
    %cst_34 = arith.constant 1.000000e+00 : f32
    %93 = vector.broadcast %cst_34 : f32 to vector<8x32xf32>
    %94 = arith.addf %93, %92 : vector<8x32xf32>
    %95 = arith.divf %93, %94 : vector<8x32xf32>
    %96 = arith.mulf %87, %14 : vector<8x32xf32>
    %97 = arith.mulf %81, %89 : vector<8x32xf32>
    %98 = arith.addf %96, %97 : vector<8x32xf32>
    %99 = math.tanh %98 : vector<8x32xf32>
    %100 = arith.mulf %95, %99 : vector<8x32xf32>
    %c16 = arith.constant 16 : index
    %c0_35 = arith.constant 0 : index
    %101 = vector.load %arg10[%c16, %c0_35] : memref<64x128xf32, #tpu.memory_space<vmem>>, vector<8x128xf32>
    %cst_36 = arith.constant dense<0.000000e+00> : vector<8x128xf32>
    %102 = tpu.matmul %70, %2, %cst_36 {dimension_numbers = #tpu.dot_dimension_numbers<[1], [0], [0], [1], [0, 0, 1, 1], [], []>} : vector<8x32xf32>, vector<32x128xf32>, vector<8x128xf32> -> vector<8x128xf32>
    %103 = arith.addf %101, %102 : vector<8x128xf32>
    %104 = vector.extract_strided_slice %103 {offsets = [0, 0], sizes = [8, 32], strides = [1, 1]} : vector<8x128xf32> to vector<8x32xf32>
    %105 = arith.negf %104 : vector<8x32xf32>
    %106 = math.exp %105 : vector<8x32xf32>
    %cst_37 = arith.constant 1.000000e+00 : f32
    %107 = vector.broadcast %cst_37 : f32 to vector<8x32xf32>
    %108 = arith.addf %107, %106 : vector<8x32xf32>
    %109 = arith.divf %107, %108 : vector<8x32xf32>
    %110 = vector.extract_strided_slice %103 {offsets = [0, 32], sizes = [8, 32], strides = [1, 1]} : vector<8x128xf32> to vector<8x32xf32>
    %111 = arith.negf %110 : vector<8x32xf32>
    %112 = math.exp %111 : vector<8x32xf32>
    %cst_38 = arith.constant 1.000000e+00 : f32
    %113 = vector.broadcast %cst_38 : f32 to vector<8x32xf32>
    %114 = arith.addf %113, %112 : vector<8x32xf32>
    %115 = arith.divf %113, %114 : vector<8x32xf32>
    %116 = vector.extract_strided_slice %103 {offsets = [0, 64], sizes = [8, 32], strides = [1, 1]} : vector<8x128xf32> to vector<8x32xf32>
    %117 = math.tanh %116 : vector<8x32xf32>
    %118 = vector.extract_strided_slice %103 {offsets = [0, 96], sizes = [8, 32], strides = [1, 1]} : vector<8x128xf32> to vector<8x32xf32>
    %119 = arith.negf %118 : vector<8x32xf32>
    %120 = math.exp %119 : vector<8x32xf32>
    %cst_39 = arith.constant 1.000000e+00 : f32
    %121 = vector.broadcast %cst_39 : f32 to vector<8x32xf32>
    %122 = arith.addf %121, %120 : vector<8x32xf32>
    %123 = arith.divf %121, %122 : vector<8x32xf32>
    %124 = arith.mulf %115, %68 : vector<8x32xf32>
    %125 = arith.mulf %109, %117 : vector<8x32xf32>
    %126 = arith.addf %124, %125 : vector<8x32xf32>
    %127 = math.tanh %126 : vector<8x32xf32>
    %128 = arith.mulf %123, %127 : vector<8x32xf32>
    %cst_40 = arith.constant dense<0.000000e+00> : vector<8x128xf32>
    %129 = tpu.matmul %70, %1, %cst_40 {dimension_numbers = #tpu.dot_dimension_numbers<[1], [0], [0], [1], [0, 0, 1, 1], [], []>} : vector<8x32xf32>, vector<32x128xf32>, vector<8x128xf32> -> vector<8x128xf32>
    %cst_41 = arith.constant dense<0.000000e+00> : vector<8x128xf32>
    %130 = tpu.matmul %100, %3, %cst_41 {dimension_numbers = #tpu.dot_dimension_numbers<[1], [0], [0], [1], [0, 0, 1, 1], [], []>} : vector<8x32xf32>, vector<32x128xf32>, vector<8x128xf32> -> vector<8x128xf32>
    %131 = arith.addf %129, %130 : vector<8x128xf32>
    %132 = vector.broadcast %5 : vector<1x128xf32> to vector<8x128xf32>
    %133 = arith.addf %131, %132 : vector<8x128xf32>
    %134 = vector.extract_strided_slice %133 {offsets = [0, 0], sizes = [8, 32], strides = [1, 1]} : vector<8x128xf32> to vector<8x32xf32>
    %135 = arith.negf %134 : vector<8x32xf32>
    %136 = math.exp %135 : vector<8x32xf32>
    %cst_42 = arith.constant 1.000000e+00 : f32
    %137 = vector.broadcast %cst_42 : f32 to vector<8x32xf32>
    %138 = arith.addf %137, %136 : vector<8x32xf32>
    %139 = arith.divf %137, %138 : vector<8x32xf32>
    %140 = vector.extract_strided_slice %133 {offsets = [0, 32], sizes = [8, 32], strides = [1, 1]} : vector<8x128xf32> to vector<8x32xf32>
    %141 = arith.negf %140 : vector<8x32xf32>
    %142 = math.exp %141 : vector<8x32xf32>
    %cst_43 = arith.constant 1.000000e+00 : f32
    %143 = vector.broadcast %cst_43 : f32 to vector<8x32xf32>
    %144 = arith.addf %143, %142 : vector<8x32xf32>
    %145 = arith.divf %143, %144 : vector<8x32xf32>
    %146 = vector.extract_strided_slice %133 {offsets = [0, 64], sizes = [8, 32], strides = [1, 1]} : vector<8x128xf32> to vector<8x32xf32>
    %147 = math.tanh %146 : vector<8x32xf32>
    %148 = vector.extract_strided_slice %133 {offsets = [0, 96], sizes = [8, 32], strides = [1, 1]} : vector<8x128xf32> to vector<8x32xf32>
    %149 = arith.negf %148 : vector<8x32xf32>
    %150 = math.exp %149 : vector<8x32xf32>
    %cst_44 = arith.constant 1.000000e+00 : f32
    %151 = vector.broadcast %cst_44 : f32 to vector<8x32xf32>
    %152 = arith.addf %151, %150 : vector<8x32xf32>
    %153 = arith.divf %151, %152 : vector<8x32xf32>
    %154 = arith.mulf %145, %98 : vector<8x32xf32>
    %155 = arith.mulf %139, %147 : vector<8x32xf32>
    %156 = arith.addf %154, %155 : vector<8x32xf32>
    %157 = math.tanh %156 : vector<8x32xf32>
    %158 = arith.mulf %153, %157 : vector<8x32xf32>
    %c24 = arith.constant 24 : index
    %c0_45 = arith.constant 0 : index
    %159 = vector.load %arg10[%c24, %c0_45] : memref<64x128xf32, #tpu.memory_space<vmem>>, vector<8x128xf32>
    %cst_46 = arith.constant dense<0.000000e+00> : vector<8x128xf32>
    %160 = tpu.matmul %128, %2, %cst_46 {dimension_numbers = #tpu.dot_dimension_numbers<[1], [0], [0], [1], [0, 0, 1, 1], [], []>} : vector<8x32xf32>, vector<32x128xf32>, vector<8x128xf32> -> vector<8x128xf32>
    %161 = arith.addf %159, %160 : vector<8x128xf32>
    %162 = vector.extract_strided_slice %161 {offsets = [0, 0], sizes = [8, 32], strides = [1, 1]} : vector<8x128xf32> to vector<8x32xf32>
    %163 = arith.negf %162 : vector<8x32xf32>
    %164 = math.exp %163 : vector<8x32xf32>
    %cst_47 = arith.constant 1.000000e+00 : f32
    %165 = vector.broadcast %cst_47 : f32 to vector<8x32xf32>
    %166 = arith.addf %165, %164 : vector<8x32xf32>
    %167 = arith.divf %165, %166 : vector<8x32xf32>
    %168 = vector.extract_strided_slice %161 {offsets = [0, 32], sizes = [8, 32], strides = [1, 1]} : vector<8x128xf32> to vector<8x32xf32>
    %169 = arith.negf %168 : vector<8x32xf32>
    %170 = math.exp %169 : vector<8x32xf32>
    %cst_48 = arith.constant 1.000000e+00 : f32
    %171 = vector.broadcast %cst_48 : f32 to vector<8x32xf32>
    %172 = arith.addf %171, %170 : vector<8x32xf32>
    %173 = arith.divf %171, %172 : vector<8x32xf32>
    %174 = vector.extract_strided_slice %161 {offsets = [0, 64], sizes = [8, 32], strides = [1, 1]} : vector<8x128xf32> to vector<8x32xf32>
    %175 = math.tanh %174 : vector<8x32xf32>
    %176 = vector.extract_strided_slice %161 {offsets = [0, 96], sizes = [8, 32], strides = [1, 1]} : vector<8x128xf32> to vector<8x32xf32>
    %177 = arith.negf %176 : vector<8x32xf32>
    %178 = math.exp %177 : vector<8x32xf32>
    %cst_49 = arith.constant 1.000000e+00 : f32
    %179 = vector.broadcast %cst_49 : f32 to vector<8x32xf32>
    %180 = arith.addf %179, %178 : vector<8x32xf32>
    %181 = arith.divf %179, %180 : vector<8x32xf32>
    %182 = arith.mulf %173, %126 : vector<8x32xf32>
    %183 = arith.mulf %167, %175 : vector<8x32xf32>
    %184 = arith.addf %182, %183 : vector<8x32xf32>
    %185 = math.tanh %184 : vector<8x32xf32>
    %186 = arith.mulf %181, %185 : vector<8x32xf32>
    %cst_50 = arith.constant dense<0.000000e+00> : vector<8x128xf32>
    %187 = tpu.matmul %128, %1, %cst_50 {dimension_numbers = #tpu.dot_dimension_numbers<[1], [0], [0], [1], [0, 0, 1, 1], [], []>} : vector<8x32xf32>, vector<32x128xf32>, vector<8x128xf32> -> vector<8x128xf32>
    %cst_51 = arith.constant dense<0.000000e+00> : vector<8x128xf32>
    %188 = tpu.matmul %158, %3, %cst_51 {dimension_numbers = #tpu.dot_dimension_numbers<[1], [0], [0], [1], [0, 0, 1, 1], [], []>} : vector<8x32xf32>, vector<32x128xf32>, vector<8x128xf32> -> vector<8x128xf32>
    %189 = arith.addf %187, %188 : vector<8x128xf32>
    %190 = vector.broadcast %5 : vector<1x128xf32> to vector<8x128xf32>
    %191 = arith.addf %189, %190 : vector<8x128xf32>
    %192 = vector.extract_strided_slice %191 {offsets = [0, 0], sizes = [8, 32], strides = [1, 1]} : vector<8x128xf32> to vector<8x32xf32>
    %193 = arith.negf %192 : vector<8x32xf32>
    %194 = math.exp %193 : vector<8x32xf32>
    %cst_52 = arith.constant 1.000000e+00 : f32
    %195 = vector.broadcast %cst_52 : f32 to vector<8x32xf32>
    %196 = arith.addf %195, %194 : vector<8x32xf32>
    %197 = arith.divf %195, %196 : vector<8x32xf32>
    %198 = vector.extract_strided_slice %191 {offsets = [0, 32], sizes = [8, 32], strides = [1, 1]} : vector<8x128xf32> to vector<8x32xf32>
    %199 = arith.negf %198 : vector<8x32xf32>
    %200 = math.exp %199 : vector<8x32xf32>
    %cst_53 = arith.constant 1.000000e+00 : f32
    %201 = vector.broadcast %cst_53 : f32 to vector<8x32xf32>
    %202 = arith.addf %201, %200 : vector<8x32xf32>
    %203 = arith.divf %201, %202 : vector<8x32xf32>
    %204 = vector.extract_strided_slice %191 {offsets = [0, 64], sizes = [8, 32], strides = [1, 1]} : vector<8x128xf32> to vector<8x32xf32>
    %205 = math.tanh %204 : vector<8x32xf32>
    %206 = vector.extract_strided_slice %191 {offsets = [0, 96], sizes = [8, 32], strides = [1, 1]} : vector<8x128xf32> to vector<8x32xf32>
    %207 = arith.negf %206 : vector<8x32xf32>
    %208 = math.exp %207 : vector<8x32xf32>
    %cst_54 = arith.constant 1.000000e+00 : f32
    %209 = vector.broadcast %cst_54 : f32 to vector<8x32xf32>
    %210 = arith.addf %209, %208 : vector<8x32xf32>
    %211 = arith.divf %209, %210 : vector<8x32xf32>
    %212 = arith.mulf %203, %156 : vector<8x32xf32>
    %213 = arith.mulf %197, %205 : vector<8x32xf32>
    %214 = arith.addf %212, %213 : vector<8x32xf32>
    %215 = math.tanh %214 : vector<8x32xf32>
    %216 = arith.mulf %211, %215 : vector<8x32xf32>
    %c32 = arith.constant 32 : index
    %c0_55 = arith.constant 0 : index
    %217 = vector.load %arg10[%c32, %c0_55] : memref<64x128xf32, #tpu.memory_space<vmem>>, vector<8x128xf32>
    %cst_56 = arith.constant dense<0.000000e+00> : vector<8x128xf32>
    %218 = tpu.matmul %186, %2, %cst_56 {dimension_numbers = #tpu.dot_dimension_numbers<[1], [0], [0], [1], [0, 0, 1, 1], [], []>} : vector<8x32xf32>, vector<32x128xf32>, vector<8x128xf32> -> vector<8x128xf32>
    %219 = arith.addf %217, %218 : vector<8x128xf32>
    %220 = vector.extract_strided_slice %219 {offsets = [0, 0], sizes = [8, 32], strides = [1, 1]} : vector<8x128xf32> to vector<8x32xf32>
    %221 = arith.negf %220 : vector<8x32xf32>
    %222 = math.exp %221 : vector<8x32xf32>
    %cst_57 = arith.constant 1.000000e+00 : f32
    %223 = vector.broadcast %cst_57 : f32 to vector<8x32xf32>
    %224 = arith.addf %223, %222 : vector<8x32xf32>
    %225 = arith.divf %223, %224 : vector<8x32xf32>
    %226 = vector.extract_strided_slice %219 {offsets = [0, 32], sizes = [8, 32], strides = [1, 1]} : vector<8x128xf32> to vector<8x32xf32>
    %227 = arith.negf %226 : vector<8x32xf32>
    %228 = math.exp %227 : vector<8x32xf32>
    %cst_58 = arith.constant 1.000000e+00 : f32
    %229 = vector.broadcast %cst_58 : f32 to vector<8x32xf32>
    %230 = arith.addf %229, %228 : vector<8x32xf32>
    %231 = arith.divf %229, %230 : vector<8x32xf32>
    %232 = vector.extract_strided_slice %219 {offsets = [0, 64], sizes = [8, 32], strides = [1, 1]} : vector<8x128xf32> to vector<8x32xf32>
    %233 = math.tanh %232 : vector<8x32xf32>
    %234 = vector.extract_strided_slice %219 {offsets = [0, 96], sizes = [8, 32], strides = [1, 1]} : vector<8x128xf32> to vector<8x32xf32>
    %235 = arith.negf %234 : vector<8x32xf32>
    %236 = math.exp %235 : vector<8x32xf32>
    %cst_59 = arith.constant 1.000000e+00 : f32
    %237 = vector.broadcast %cst_59 : f32 to vector<8x32xf32>
    %238 = arith.addf %237, %236 : vector<8x32xf32>
    %239 = arith.divf %237, %238 : vector<8x32xf32>
    %240 = arith.mulf %231, %184 : vector<8x32xf32>
    %241 = arith.mulf %225, %233 : vector<8x32xf32>
    %242 = arith.addf %240, %241 : vector<8x32xf32>
    %243 = math.tanh %242 : vector<8x32xf32>
    %244 = arith.mulf %239, %243 : vector<8x32xf32>
    %cst_60 = arith.constant dense<0.000000e+00> : vector<8x128xf32>
    %245 = tpu.matmul %186, %1, %cst_60 {dimension_numbers = #tpu.dot_dimension_numbers<[1], [0], [0], [1], [0, 0, 1, 1], [], []>} : vector<8x32xf32>, vector<32x128xf32>, vector<8x128xf32> -> vector<8x128xf32>
    %cst_61 = arith.constant dense<0.000000e+00> : vector<8x128xf32>
    %246 = tpu.matmul %216, %3, %cst_61 {dimension_numbers = #tpu.dot_dimension_numbers<[1], [0], [0], [1], [0, 0, 1, 1], [], []>} : vector<8x32xf32>, vector<32x128xf32>, vector<8x128xf32> -> vector<8x128xf32>
    %247 = arith.addf %245, %246 : vector<8x128xf32>
    %248 = vector.broadcast %5 : vector<1x128xf32> to vector<8x128xf32>
    %249 = arith.addf %247, %248 : vector<8x128xf32>
    %250 = vector.extract_strided_slice %249 {offsets = [0, 0], sizes = [8, 32], strides = [1, 1]} : vector<8x128xf32> to vector<8x32xf32>
    %251 = arith.negf %250 : vector<8x32xf32>
    %252 = math.exp %251 : vector<8x32xf32>
    %cst_62 = arith.constant 1.000000e+00 : f32
    %253 = vector.broadcast %cst_62 : f32 to vector<8x32xf32>
    %254 = arith.addf %253, %252 : vector<8x32xf32>
    %255 = arith.divf %253, %254 : vector<8x32xf32>
    %256 = vector.extract_strided_slice %249 {offsets = [0, 32], sizes = [8, 32], strides = [1, 1]} : vector<8x128xf32> to vector<8x32xf32>
    %257 = arith.negf %256 : vector<8x32xf32>
    %258 = math.exp %257 : vector<8x32xf32>
    %cst_63 = arith.constant 1.000000e+00 : f32
    %259 = vector.broadcast %cst_63 : f32 to vector<8x32xf32>
    %260 = arith.addf %259, %258 : vector<8x32xf32>
    %261 = arith.divf %259, %260 : vector<8x32xf32>
    %262 = vector.extract_strided_slice %249 {offsets = [0, 64], sizes = [8, 32], strides = [1, 1]} : vector<8x128xf32> to vector<8x32xf32>
    %263 = math.tanh %262 : vector<8x32xf32>
    %264 = vector.extract_strided_slice %249 {offsets = [0, 96], sizes = [8, 32], strides = [1, 1]} : vector<8x128xf32> to vector<8x32xf32>
    %265 = arith.negf %264 : vector<8x32xf32>
    %266 = math.exp %265 : vector<8x32xf32>
    %cst_64 = arith.constant 1.000000e+00 : f32
    %267 = vector.broadcast %cst_64 : f32 to vector<8x32xf32>
    %268 = arith.addf %267, %266 : vector<8x32xf32>
    %269 = arith.divf %267, %268 : vector<8x32xf32>
    %270 = arith.mulf %261, %214 : vector<8x32xf32>
    %271 = arith.mulf %255, %263 : vector<8x32xf32>
    %272 = arith.addf %270, %271 : vector<8x32xf32>
    %273 = math.tanh %272 : vector<8x32xf32>
    %274 = arith.mulf %269, %273 : vector<8x32xf32>
    %c40 = arith.constant 40 : index
    %c0_65 = arith.constant 0 : index
    %275 = vector.load %arg10[%c40, %c0_65] : memref<64x128xf32, #tpu.memory_space<vmem>>, vector<8x128xf32>
    %cst_66 = arith.constant dense<0.000000e+00> : vector<8x128xf32>
    %276 = tpu.matmul %244, %2, %cst_66 {dimension_numbers = #tpu.dot_dimension_numbers<[1], [0], [0], [1], [0, 0, 1, 1], [], []>} : vector<8x32xf32>, vector<32x128xf32>, vector<8x128xf32> -> vector<8x128xf32>
    %277 = arith.addf %275, %276 : vector<8x128xf32>
    %278 = vector.extract_strided_slice %277 {offsets = [0, 0], sizes = [8, 32], strides = [1, 1]} : vector<8x128xf32> to vector<8x32xf32>
    %279 = arith.negf %278 : vector<8x32xf32>
    %280 = math.exp %279 : vector<8x32xf32>
    %cst_67 = arith.constant 1.000000e+00 : f32
    %281 = vector.broadcast %cst_67 : f32 to vector<8x32xf32>
    %282 = arith.addf %281, %280 : vector<8x32xf32>
    %283 = arith.divf %281, %282 : vector<8x32xf32>
    %284 = vector.extract_strided_slice %277 {offsets = [0, 32], sizes = [8, 32], strides = [1, 1]} : vector<8x128xf32> to vector<8x32xf32>
    %285 = arith.negf %284 : vector<8x32xf32>
    %286 = math.exp %285 : vector<8x32xf32>
    %cst_68 = arith.constant 1.000000e+00 : f32
    %287 = vector.broadcast %cst_68 : f32 to vector<8x32xf32>
    %288 = arith.addf %287, %286 : vector<8x32xf32>
    %289 = arith.divf %287, %288 : vector<8x32xf32>
    %290 = vector.extract_strided_slice %277 {offsets = [0, 64], sizes = [8, 32], strides = [1, 1]} : vector<8x128xf32> to vector<8x32xf32>
    %291 = math.tanh %290 : vector<8x32xf32>
    %292 = vector.extract_strided_slice %277 {offsets = [0, 96], sizes = [8, 32], strides = [1, 1]} : vector<8x128xf32> to vector<8x32xf32>
    %293 = arith.negf %292 : vector<8x32xf32>
    %294 = math.exp %293 : vector<8x32xf32>
    %cst_69 = arith.constant 1.000000e+00 : f32
    %295 = vector.broadcast %cst_69 : f32 to vector<8x32xf32>
    %296 = arith.addf %295, %294 : vector<8x32xf32>
    %297 = arith.divf %295, %296 : vector<8x32xf32>
    %298 = arith.mulf %289, %242 : vector<8x32xf32>
    %299 = arith.mulf %283, %291 : vector<8x32xf32>
    %300 = arith.addf %298, %299 : vector<8x32xf32>
    %301 = math.tanh %300 : vector<8x32xf32>
    %302 = arith.mulf %297, %301 : vector<8x32xf32>
    %cst_70 = arith.constant dense<0.000000e+00> : vector<8x128xf32>
    %303 = tpu.matmul %244, %1, %cst_70 {dimension_numbers = #tpu.dot_dimension_numbers<[1], [0], [0], [1], [0, 0, 1, 1], [], []>} : vector<8x32xf32>, vector<32x128xf32>, vector<8x128xf32> -> vector<8x128xf32>
    %cst_71 = arith.constant dense<0.000000e+00> : vector<8x128xf32>
    %304 = tpu.matmul %274, %3, %cst_71 {dimension_numbers = #tpu.dot_dimension_numbers<[1], [0], [0], [1], [0, 0, 1, 1], [], []>} : vector<8x32xf32>, vector<32x128xf32>, vector<8x128xf32> -> vector<8x128xf32>
    %305 = arith.addf %303, %304 : vector<8x128xf32>
    %306 = vector.broadcast %5 : vector<1x128xf32> to vector<8x128xf32>
    %307 = arith.addf %305, %306 : vector<8x128xf32>
    %308 = vector.extract_strided_slice %307 {offsets = [0, 0], sizes = [8, 32], strides = [1, 1]} : vector<8x128xf32> to vector<8x32xf32>
    %309 = arith.negf %308 : vector<8x32xf32>
    %310 = math.exp %309 : vector<8x32xf32>
    %cst_72 = arith.constant 1.000000e+00 : f32
    %311 = vector.broadcast %cst_72 : f32 to vector<8x32xf32>
    %312 = arith.addf %311, %310 : vector<8x32xf32>
    %313 = arith.divf %311, %312 : vector<8x32xf32>
    %314 = vector.extract_strided_slice %307 {offsets = [0, 32], sizes = [8, 32], strides = [1, 1]} : vector<8x128xf32> to vector<8x32xf32>
    %315 = arith.negf %314 : vector<8x32xf32>
    %316 = math.exp %315 : vector<8x32xf32>
    %cst_73 = arith.constant 1.000000e+00 : f32
    %317 = vector.broadcast %cst_73 : f32 to vector<8x32xf32>
    %318 = arith.addf %317, %316 : vector<8x32xf32>
    %319 = arith.divf %317, %318 : vector<8x32xf32>
    %320 = vector.extract_strided_slice %307 {offsets = [0, 64], sizes = [8, 32], strides = [1, 1]} : vector<8x128xf32> to vector<8x32xf32>
    %321 = math.tanh %320 : vector<8x32xf32>
    %322 = vector.extract_strided_slice %307 {offsets = [0, 96], sizes = [8, 32], strides = [1, 1]} : vector<8x128xf32> to vector<8x32xf32>
    %323 = arith.negf %322 : vector<8x32xf32>
    %324 = math.exp %323 : vector<8x32xf32>
    %cst_74 = arith.constant 1.000000e+00 : f32
    %325 = vector.broadcast %cst_74 : f32 to vector<8x32xf32>
    %326 = arith.addf %325, %324 : vector<8x32xf32>
    %327 = arith.divf %325, %326 : vector<8x32xf32>
    %328 = arith.mulf %319, %272 : vector<8x32xf32>
    %329 = arith.mulf %313, %321 : vector<8x32xf32>
    %330 = arith.addf %328, %329 : vector<8x32xf32>
    %331 = math.tanh %330 : vector<8x32xf32>
    %332 = arith.mulf %327, %331 : vector<8x32xf32>
    %c48 = arith.constant 48 : index
    %c0_75 = arith.constant 0 : index
    %333 = vector.load %arg10[%c48, %c0_75] : memref<64x128xf32, #tpu.memory_space<vmem>>, vector<8x128xf32>
    %cst_76 = arith.constant dense<0.000000e+00> : vector<8x128xf32>
    %334 = tpu.matmul %302, %2, %cst_76 {dimension_numbers = #tpu.dot_dimension_numbers<[1], [0], [0], [1], [0, 0, 1, 1], [], []>} : vector<8x32xf32>, vector<32x128xf32>, vector<8x128xf32> -> vector<8x128xf32>
    %335 = arith.addf %333, %334 : vector<8x128xf32>
    %336 = vector.extract_strided_slice %335 {offsets = [0, 0], sizes = [8, 32], strides = [1, 1]} : vector<8x128xf32> to vector<8x32xf32>
    %337 = arith.negf %336 : vector<8x32xf32>
    %338 = math.exp %337 : vector<8x32xf32>
    %cst_77 = arith.constant 1.000000e+00 : f32
    %339 = vector.broadcast %cst_77 : f32 to vector<8x32xf32>
    %340 = arith.addf %339, %338 : vector<8x32xf32>
    %341 = arith.divf %339, %340 : vector<8x32xf32>
    %342 = vector.extract_strided_slice %335 {offsets = [0, 32], sizes = [8, 32], strides = [1, 1]} : vector<8x128xf32> to vector<8x32xf32>
    %343 = arith.negf %342 : vector<8x32xf32>
    %344 = math.exp %343 : vector<8x32xf32>
    %cst_78 = arith.constant 1.000000e+00 : f32
    %345 = vector.broadcast %cst_78 : f32 to vector<8x32xf32>
    %346 = arith.addf %345, %344 : vector<8x32xf32>
    %347 = arith.divf %345, %346 : vector<8x32xf32>
    %348 = vector.extract_strided_slice %335 {offsets = [0, 64], sizes = [8, 32], strides = [1, 1]} : vector<8x128xf32> to vector<8x32xf32>
    %349 = math.tanh %348 : vector<8x32xf32>
    %350 = vector.extract_strided_slice %335 {offsets = [0, 96], sizes = [8, 32], strides = [1, 1]} : vector<8x128xf32> to vector<8x32xf32>
    %351 = arith.negf %350 : vector<8x32xf32>
    %352 = math.exp %351 : vector<8x32xf32>
    %cst_79 = arith.constant 1.000000e+00 : f32
    %353 = vector.broadcast %cst_79 : f32 to vector<8x32xf32>
    %354 = arith.addf %353, %352 : vector<8x32xf32>
    %355 = arith.divf %353, %354 : vector<8x32xf32>
    %356 = arith.mulf %347, %300 : vector<8x32xf32>
    %357 = arith.mulf %341, %349 : vector<8x32xf32>
    %358 = arith.addf %356, %357 : vector<8x32xf32>
    %359 = math.tanh %358 : vector<8x32xf32>
    %360 = arith.mulf %355, %359 : vector<8x32xf32>
    %cst_80 = arith.constant dense<0.000000e+00> : vector<8x128xf32>
    %361 = tpu.matmul %302, %1, %cst_80 {dimension_numbers = #tpu.dot_dimension_numbers<[1], [0], [0], [1], [0, 0, 1, 1], [], []>} : vector<8x32xf32>, vector<32x128xf32>, vector<8x128xf32> -> vector<8x128xf32>
    %cst_81 = arith.constant dense<0.000000e+00> : vector<8x128xf32>
    %362 = tpu.matmul %332, %3, %cst_81 {dimension_numbers = #tpu.dot_dimension_numbers<[1], [0], [0], [1], [0, 0, 1, 1], [], []>} : vector<8x32xf32>, vector<32x128xf32>, vector<8x128xf32> -> vector<8x128xf32>
    %363 = arith.addf %361, %362 : vector<8x128xf32>
    %364 = vector.broadcast %5 : vector<1x128xf32> to vector<8x128xf32>
    %365 = arith.addf %363, %364 : vector<8x128xf32>
    %366 = vector.extract_strided_slice %365 {offsets = [0, 0], sizes = [8, 32], strides = [1, 1]} : vector<8x128xf32> to vector<8x32xf32>
    %367 = arith.negf %366 : vector<8x32xf32>
    %368 = math.exp %367 : vector<8x32xf32>
    %cst_82 = arith.constant 1.000000e+00 : f32
    %369 = vector.broadcast %cst_82 : f32 to vector<8x32xf32>
    %370 = arith.addf %369, %368 : vector<8x32xf32>
    %371 = arith.divf %369, %370 : vector<8x32xf32>
    %372 = vector.extract_strided_slice %365 {offsets = [0, 32], sizes = [8, 32], strides = [1, 1]} : vector<8x128xf32> to vector<8x32xf32>
    %373 = arith.negf %372 : vector<8x32xf32>
    %374 = math.exp %373 : vector<8x32xf32>
    %cst_83 = arith.constant 1.000000e+00 : f32
    %375 = vector.broadcast %cst_83 : f32 to vector<8x32xf32>
    %376 = arith.addf %375, %374 : vector<8x32xf32>
    %377 = arith.divf %375, %376 : vector<8x32xf32>
    %378 = vector.extract_strided_slice %365 {offsets = [0, 64], sizes = [8, 32], strides = [1, 1]} : vector<8x128xf32> to vector<8x32xf32>
    %379 = math.tanh %378 : vector<8x32xf32>
    %380 = vector.extract_strided_slice %365 {offsets = [0, 96], sizes = [8, 32], strides = [1, 1]} : vector<8x128xf32> to vector<8x32xf32>
    %381 = arith.negf %380 : vector<8x32xf32>
    %382 = math.exp %381 : vector<8x32xf32>
    %cst_84 = arith.constant 1.000000e+00 : f32
    %383 = vector.broadcast %cst_84 : f32 to vector<8x32xf32>
    %384 = arith.addf %383, %382 : vector<8x32xf32>
    %385 = arith.divf %383, %384 : vector<8x32xf32>
    %386 = arith.mulf %377, %330 : vector<8x32xf32>
    %387 = arith.mulf %371, %379 : vector<8x32xf32>
    %388 = arith.addf %386, %387 : vector<8x32xf32>
    %389 = math.tanh %388 : vector<8x32xf32>
    %390 = arith.mulf %385, %389 : vector<8x32xf32>
    %c56 = arith.constant 56 : index
    %c0_85 = arith.constant 0 : index
    %391 = vector.load %arg10[%c56, %c0_85] : memref<64x128xf32, #tpu.memory_space<vmem>>, vector<8x128xf32>
    %cst_86 = arith.constant dense<0.000000e+00> : vector<8x128xf32>
    %392 = tpu.matmul %360, %2, %cst_86 {dimension_numbers = #tpu.dot_dimension_numbers<[1], [0], [0], [1], [0, 0, 1, 1], [], []>} : vector<8x32xf32>, vector<32x128xf32>, vector<8x128xf32> -> vector<8x128xf32>
    %393 = arith.addf %391, %392 : vector<8x128xf32>
    %394 = vector.extract_strided_slice %393 {offsets = [0, 0], sizes = [8, 32], strides = [1, 1]} : vector<8x128xf32> to vector<8x32xf32>
    %395 = arith.negf %394 : vector<8x32xf32>
    %396 = math.exp %395 : vector<8x32xf32>
    %cst_87 = arith.constant 1.000000e+00 : f32
    %397 = vector.broadcast %cst_87 : f32 to vector<8x32xf32>
    %398 = arith.addf %397, %396 : vector<8x32xf32>
    %399 = arith.divf %397, %398 : vector<8x32xf32>
    %400 = vector.extract_strided_slice %393 {offsets = [0, 32], sizes = [8, 32], strides = [1, 1]} : vector<8x128xf32> to vector<8x32xf32>
    %401 = arith.negf %400 : vector<8x32xf32>
    %402 = math.exp %401 : vector<8x32xf32>
    %cst_88 = arith.constant 1.000000e+00 : f32
    %403 = vector.broadcast %cst_88 : f32 to vector<8x32xf32>
    %404 = arith.addf %403, %402 : vector<8x32xf32>
    %405 = arith.divf %403, %404 : vector<8x32xf32>
    %406 = vector.extract_strided_slice %393 {offsets = [0, 64], sizes = [8, 32], strides = [1, 1]} : vector<8x128xf32> to vector<8x32xf32>
    %407 = math.tanh %406 : vector<8x32xf32>
    %408 = vector.extract_strided_slice %393 {offsets = [0, 96], sizes = [8, 32], strides = [1, 1]} : vector<8x128xf32> to vector<8x32xf32>
    %409 = arith.negf %408 : vector<8x32xf32>
    %410 = math.exp %409 : vector<8x32xf32>
    %cst_89 = arith.constant 1.000000e+00 : f32
    %411 = vector.broadcast %cst_89 : f32 to vector<8x32xf32>
    %412 = arith.addf %411, %410 : vector<8x32xf32>
    %413 = arith.divf %411, %412 : vector<8x32xf32>
    %414 = arith.mulf %405, %358 : vector<8x32xf32>
    %415 = arith.mulf %399, %407 : vector<8x32xf32>
    %416 = arith.addf %414, %415 : vector<8x32xf32>
    %417 = math.tanh %416 : vector<8x32xf32>
    %418 = arith.mulf %413, %417 : vector<8x32xf32>
    %cst_90 = arith.constant dense<0.000000e+00> : vector<8x128xf32>
    %419 = tpu.matmul %360, %1, %cst_90 {dimension_numbers = #tpu.dot_dimension_numbers<[1], [0], [0], [1], [0, 0, 1, 1], [], []>} : vector<8x32xf32>, vector<32x128xf32>, vector<8x128xf32> -> vector<8x128xf32>
    %cst_91 = arith.constant dense<0.000000e+00> : vector<8x128xf32>
    %420 = tpu.matmul %390, %3, %cst_91 {dimension_numbers = #tpu.dot_dimension_numbers<[1], [0], [0], [1], [0, 0, 1, 1], [], []>} : vector<8x32xf32>, vector<32x128xf32>, vector<8x128xf32> -> vector<8x128xf32>
    %421 = arith.addf %419, %420 : vector<8x128xf32>
    %422 = vector.broadcast %5 : vector<1x128xf32> to vector<8x128xf32>
    %423 = arith.addf %421, %422 : vector<8x128xf32>
    %424 = vector.extract_strided_slice %423 {offsets = [0, 0], sizes = [8, 32], strides = [1, 1]} : vector<8x128xf32> to vector<8x32xf32>
    %425 = arith.negf %424 : vector<8x32xf32>
    %426 = math.exp %425 : vector<8x32xf32>
    %cst_92 = arith.constant 1.000000e+00 : f32
    %427 = vector.broadcast %cst_92 : f32 to vector<8x32xf32>
    %428 = arith.addf %427, %426 : vector<8x32xf32>
    %429 = arith.divf %427, %428 : vector<8x32xf32>
    %430 = vector.extract_strided_slice %423 {offsets = [0, 32], sizes = [8, 32], strides = [1, 1]} : vector<8x128xf32> to vector<8x32xf32>
    %431 = arith.negf %430 : vector<8x32xf32>
    %432 = math.exp %431 : vector<8x32xf32>
    %cst_93 = arith.constant 1.000000e+00 : f32
    %433 = vector.broadcast %cst_93 : f32 to vector<8x32xf32>
    %434 = arith.addf %433, %432 : vector<8x32xf32>
    %435 = arith.divf %433, %434 : vector<8x32xf32>
    %436 = vector.extract_strided_slice %423 {offsets = [0, 64], sizes = [8, 32], strides = [1, 1]} : vector<8x128xf32> to vector<8x32xf32>
    %437 = math.tanh %436 : vector<8x32xf32>
    %438 = vector.extract_strided_slice %423 {offsets = [0, 96], sizes = [8, 32], strides = [1, 1]} : vector<8x128xf32> to vector<8x32xf32>
    %439 = arith.negf %438 : vector<8x32xf32>
    %440 = math.exp %439 : vector<8x32xf32>
    %cst_94 = arith.constant 1.000000e+00 : f32
    %441 = vector.broadcast %cst_94 : f32 to vector<8x32xf32>
    %442 = arith.addf %441, %440 : vector<8x32xf32>
    %443 = arith.divf %441, %442 : vector<8x32xf32>
    %444 = arith.mulf %435, %388 : vector<8x32xf32>
    %445 = arith.mulf %429, %437 : vector<8x32xf32>
    %446 = arith.addf %444, %445 : vector<8x32xf32>
    %447 = math.tanh %446 : vector<8x32xf32>
    %448 = arith.mulf %443, %447 : vector<8x32xf32>
    %cst_95 = arith.constant dense<0.000000e+00> : vector<8x128xf32>
    %449 = tpu.matmul %418, %1, %cst_95 {dimension_numbers = #tpu.dot_dimension_numbers<[1], [0], [0], [1], [0, 0, 1, 1], [], []>} : vector<8x32xf32>, vector<32x128xf32>, vector<8x128xf32> -> vector<8x128xf32>
    %cst_96 = arith.constant dense<0.000000e+00> : vector<8x128xf32>
    %450 = tpu.matmul %448, %3, %cst_96 {dimension_numbers = #tpu.dot_dimension_numbers<[1], [0], [0], [1], [0, 0, 1, 1], [], []>} : vector<8x32xf32>, vector<32x128xf32>, vector<8x128xf32> -> vector<8x128xf32>
    %451 = arith.addf %449, %450 : vector<8x128xf32>
    %452 = vector.broadcast %5 : vector<1x128xf32> to vector<8x128xf32>
    %453 = arith.addf %451, %452 : vector<8x128xf32>
    %454 = vector.extract_strided_slice %453 {offsets = [0, 0], sizes = [8, 32], strides = [1, 1]} : vector<8x128xf32> to vector<8x32xf32>
    %455 = arith.negf %454 : vector<8x32xf32>
    %456 = math.exp %455 : vector<8x32xf32>
    %cst_97 = arith.constant 1.000000e+00 : f32
    %457 = vector.broadcast %cst_97 : f32 to vector<8x32xf32>
    %458 = arith.addf %457, %456 : vector<8x32xf32>
    %459 = arith.divf %457, %458 : vector<8x32xf32>
    %460 = vector.extract_strided_slice %453 {offsets = [0, 32], sizes = [8, 32], strides = [1, 1]} : vector<8x128xf32> to vector<8x32xf32>
    %461 = arith.negf %460 : vector<8x32xf32>
    %462 = math.exp %461 : vector<8x32xf32>
    %cst_98 = arith.constant 1.000000e+00 : f32
    %463 = vector.broadcast %cst_98 : f32 to vector<8x32xf32>
    %464 = arith.addf %463, %462 : vector<8x32xf32>
    %465 = arith.divf %463, %464 : vector<8x32xf32>
    %466 = vector.extract_strided_slice %453 {offsets = [0, 64], sizes = [8, 32], strides = [1, 1]} : vector<8x128xf32> to vector<8x32xf32>
    %467 = math.tanh %466 : vector<8x32xf32>
    %468 = vector.extract_strided_slice %453 {offsets = [0, 96], sizes = [8, 32], strides = [1, 1]} : vector<8x128xf32> to vector<8x32xf32>
    %469 = arith.negf %468 : vector<8x32xf32>
    %470 = math.exp %469 : vector<8x32xf32>
    %cst_99 = arith.constant 1.000000e+00 : f32
    %471 = vector.broadcast %cst_99 : f32 to vector<8x32xf32>
    %472 = arith.addf %471, %470 : vector<8x32xf32>
    %473 = arith.divf %471, %472 : vector<8x32xf32>
    %474 = arith.mulf %465, %446 : vector<8x32xf32>
    %475 = arith.mulf %459, %467 : vector<8x32xf32>
    %476 = arith.addf %474, %475 : vector<8x32xf32>
    %477 = math.tanh %476 : vector<8x32xf32>
    %478 = arith.mulf %473, %477 : vector<8x32xf32>
    %c0_100 = arith.constant 0 : index
    %c0_101 = arith.constant 0 : index
    %479 = vector.load %arg7[%c0_100, %c0_101] : memref<32x8xf32, #tpu.memory_space<vmem>>, vector<32x8xf32>
    %cst_102 = arith.constant dense<0.000000e+00> : vector<8x8xf32>
    %480 = tpu.matmul %478, %479, %cst_102 {dimension_numbers = #tpu.dot_dimension_numbers<[1], [0], [0], [1], [0, 0, 1, 1], [], []>} : vector<8x32xf32>, vector<32x8xf32>, vector<8x8xf32> -> vector<8x8xf32>
    %c0_103 = arith.constant 0 : index
    %c0_104 = arith.constant 0 : index
    %481 = vector.load %arg8[%c0_103, %c0_104] : memref<1x8xf32, #tpu.memory_space<vmem>>, vector<1x8xf32>
    %482 = vector.broadcast %481 : vector<1x8xf32> to vector<8x8xf32>
    %483 = arith.addf %480, %482 : vector<8x8xf32>
    %c0_105 = arith.constant 0 : index
    %c0_106 = arith.constant 0 : index
    %484 = vector.load %arg9[%c0_105, %c0_106] : memref<8x8xf32, #tpu.memory_space<vmem>>, vector<8x8xf32>
    tpu.vector_store %arg9[%c0_105, %c0_106], %483 {strides = array<i32>} : memref<8x8xf32, #tpu.memory_space<vmem>>, vector<8x8xf32>,
    return
  }
}

</mosaic_0001>

<llo_original>
// kernel: tpu_custom_call.1
$region0: #{tpu_custom_call.1}
  #allocation0 [shape = 'u32[]', space=smem, size = 0x4, offset = 0x4, fixed_abs, tag = 'smem constant byte address 0x4 - core index']
  #allocation1 [shape = 'u32[144,128]{1,0:T(1,128)}', space=vmem, size = 0x12000, scoped, tag = 'internal scratch']
  #allocation2 [shape = 'f32[64,128]{1,0:T(8,128)}', space=vmem, size = 0x8000, scoped, tag = 'scratch operand']
  %s0 = inlined_call_operand.vmem [shape: f32[64,8], index: 0, kind: input, shape index: {}]
  %s1 = inlined_call_operand.vmem [shape: f32[8,128], index: 1, kind: input, shape index: {}]
  %s2 = inlined_call_operand.vmem [shape: f32[32,128], index: 2, kind: input, shape index: {}]
  %s3 = inlined_call_operand.vmem [shape: f32[1,128], index: 3, kind: input, shape index: {}]
  %s4 = inlined_call_operand.vmem [shape: f32[32,128], index: 4, kind: input, shape index: {}]
  %s5 = inlined_call_operand.vmem [shape: f32[32,128], index: 5, kind: input, shape index: {}]
  %s6 = inlined_call_operand.vmem [shape: f32[1,128], index: 6, kind: input, shape index: {}]
  %s7 = inlined_call_operand.vmem [shape: f32[32,8], index: 7, kind: input, shape index: {}]
  %s8 = inlined_call_operand.vmem [shape: f32[1,8], index: 8, kind: input, shape index: {}]
  %s9 = inlined_call_operand.hbm [shape: f32[8,8], index: 9, kind: output, shape index: {}]
  %s10 = sld [smem:[#allocation0]]
  $region46: #{tpu_custom_call.1} parent=0
    _
  %s12 = ssub.s32 1, %s10
  %s13 = scalar_select 0, %s12, %s10
  $region1: #{tpu_custom_call.1} parent=0
    #allocation3 [shape = 'u8[4096]{0}', space=vmem, size = 0x1000, scoped, tag = 'output window, operand 0, single buffered']
    #allocation4 [shape = 's32[1]{0}', space=sflag, size = 0x4, scoped, tag = 'scoped memory for tpu_custom_call.1']
    %14 = vsyncpa [#allocation4], 0
    // Predicated region
    $region2: #{tpu_custom_call.1} parent=1 // pred_check
      _
    $region3: #{tpu_custom_call.1} parent=1 // pred_check_branch
      %16 = sbr.rel (0) target = $region5
    $region4: #{tpu_custom_call.1} parent=1 // pred_region
      _
    $region5: #{tpu_custom_call.1} parent=1 // pred_fallthru
      _
    // Predicated region
    $region6: #{tpu_custom_call.1} parent=1 // pred_check
      _
    $region7: #{tpu_custom_call.1} parent=1 // pred_check_branch
      %18 = sbr.rel (0) target = $region9
    $region8: #{tpu_custom_call.1} parent=1 // pred_region
      _
    $region9: #{tpu_custom_call.1} parent=1 // pred_fallthru
      _
    // Predicated region
    $region10: #{tpu_custom_call.1} parent=1 // pred_check
      _
    $region11: #{tpu_custom_call.1} parent=1 // pred_check_branch
      %20 = sbr.rel (0) target = $region13
    $region12: #{tpu_custom_call.1} parent=1 // pred_region
      _
    $region13: #{tpu_custom_call.1} parent=1 // pred_fallthru
      _
    // Predicated region
    $region14: #{tpu_custom_call.1} parent=1 // pred_check
      _
    $region15: #{tpu_custom_call.1} parent=1 // pred_check_branch
      %22 = sbr.rel (0) target = $region17
    $region16: #{tpu_custom_call.1} parent=1 // pred_region
      _
    $region17: #{tpu_custom_call.1} parent=1 // pred_fallthru
      _
    // Predicated region
    $region18: #{tpu_custom_call.1} parent=1 // pred_check
      _
    $region19: #{tpu_custom_call.1} parent=1 // pred_check_branch
      %24 = sbr.rel (0) target = $region21
    $region20: #{tpu_custom_call.1} parent=1 // pred_region
      _
    $region21: #{tpu_custom_call.1} parent=1 // pred_fallthru
      _
    // Predicated region
    $region22: #{tpu_custom_call.1} parent=1 // pred_check
      _
    $region23: #{tpu_custom_call.1} parent=1 // pred_check_branch
      %26 = sbr.rel (0) target = $region25
    $region24: #{tpu_custom_call.1} parent=1 // pred_region
      _
    $region25: #{tpu_custom_call.1} parent=1 // pred_fallthru
      _
    // Predicated region
    $region26: #{tpu_custom_call.1} parent=1 // pred_check
      _
    $region27: #{tpu_custom_call.1} parent=1 // pred_check_branch
      %28 = sbr.rel (0) target = $region29
    $region28: #{tpu_custom_call.1} parent=1 // pred_region
      _
    $region29: #{tpu_custom_call.1} parent=1 // pred_fallthru
      _
    // Predicated region
    $region30: #{tpu_custom_call.1} parent=1 // pred_check
      _
    $region31: #{tpu_custom_call.1} parent=1 // pred_check_branch
      %30 = sbr.rel (0) target = $region33
    $region32: #{tpu_custom_call.1} parent=1 // pred_region
      _
    $region33: #{tpu_custom_call.1} parent=1 // pred_fallthru
      _
    // Predicated region
    $region34: #{tpu_custom_call.1} parent=1 // pred_check
      _
    $region35: #{tpu_custom_call.1} parent=1 // pred_check_branch
      %32 = sbr.rel (0) target = $region37
    $region36: #{tpu_custom_call.1} parent=1 // pred_region
      _
    $region37: #{tpu_custom_call.1} parent=1 // pred_fallthru
      _
    %v33 = vld [vmem:[%s1] sm:$0xff]
    %v34 = vld [vmem:[%s4] sm:$0xff]
    %v35 = vld [vmem:[%s4 + $0x8] sm:$0xff]
    %v36 = vld [vmem:[%s4 + $0x10] sm:$0xff]
    %v37 = vld [vmem:[%s4 + $0x18] sm:$0xff]
    %v38 = vld [vmem:[%s2] sm:$0xff]
    %v39 = vld [vmem:[%s2 + $0x8] sm:$0xff]
    %v40 = vld [vmem:[%s2 + $0x10] sm:$0xff]
    %v41 = vld [vmem:[%s2 + $0x18] sm:$0xff]
    %v42 = vld [vmem:[%s5] sm:$0xff]
    %v43 = vld [vmem:[%s5 + $0x8] sm:$0xff]
    %v44 = vld [vmem:[%s5 + $0x10] sm:$0xff]
    %v45 = vld [vmem:[%s5 + $0x18] sm:$0xff]
    %v46 = vld [vmem:[%s3] sm:$0x1]
    %v47 = vld [vmem:[%s6] sm:$0x1]
    %v48 = vld [vmem:[%s0] sm:$0xff]
    %v49 = vld [vmem:[%s0 + $0x8] sm:$0xff]
    %v50 = vld [vmem:[%s0 + $0x10] sm:$0xff]
    %v51 = vld [vmem:[%s0 + $0x18] sm:$0xff]
    %v52 = vld [vmem:[%s0 + $0x20] sm:$0xff]
    %v53 = vld [vmem:[%s0 + $0x28] sm:$0xff]
    %v54 = vld [vmem:[%s0 + $0x30] sm:$0xff]
    %v55 = vld [vmem:[%s0 + $0x38] sm:$0xff]
    %v57 = vlaneseq
    %v58 = vshrl.u32 %v57, 7
    %v59 = vsub.s32 0, %v58
    %v60 = vrot.slane %v46, %v59
    %vm62 = vcmask 64512
    %v64 = vsel %vm62, %v48, 0
    %v67 = vsel %vm62, %v49, 0
    %v70 = vsel %vm62, %v50, 0
    %v73 = vsel %vm62, %v51, 0
    %v76 = vsel %vm62, %v52, 0
    %v79 = vsel %vm62, %v53, 0
    %v82 = vsel %vm62, %v54, 0
    %v85 = vsel %vm62, %v55, 0
    %87 = vmatprep.subr.mxu0 0.0
    %88 = vmatpush1.msra.mxu0 %v33
    %89 = vmatprep.subr.mxu0 0.0
    %90 = vmatpush1.msra.mxu0 0.0
    %91 = vmatprep.subr.mxu0 0.0
    %92 = vmatpush1.msra.mxu0 0.0
    %93 = vmatprep.subr.mxu0 0.0
    %94 = vmatpush1.msra.mxu0 0.0
    %95 = vmatprep.subr.mxu0 0.0
    %96 = vmatpush1.msra.mxu0 0.0
    %97 = vmatprep.subr.mxu0 0.0
    %98 = vmatpush1.msra.mxu0 0.0
    %99 = vmatprep.subr.mxu0 0.0
    %100 = vmatpush1.msra.mxu0 0.0
    %101 = vmatprep.subr.mxu0 0.0
    %102 = vmatpush1.msra.mxu0 0.0
    %103 = vmatprep.subr.mxu0 0.0
    %104 = vmatpush1.msra.mxu0 0.0
    %105 = vmatprep.subr.mxu0 0.0
    %106 = vmatpush1.msra.mxu0 0.0
    %107 = vmatprep.subr.mxu0 0.0
    %108 = vmatpush1.msra.mxu0 0.0
    %109 = vmatprep.subr.mxu0 0.0
    %110 = vmatpush1.msra.mxu0 0.0
    %111 = vmatprep.subr.mxu0 0.0
    %112 = vmatpush1.msra.mxu0 0.0
    %113 = vmatprep.subr.mxu0 0.0
    %114 = vmatpush1.msra.mxu0 0.0
    %115 = vmatprep.subr.mxu0 0.0
    %116 = vmatpush1.msra.mxu0 0.0
    %117 = vmatprep.subr.mxu0 0.0
    %118 = vmatpush1.msra.mxu0 0.0
    %119 = vmatprep.subr.mxu0 0.0
    %120 = vmatpush1.msra.mxu0 0.0
    %121 = vmatprep.subr.mxu0 0.0
    %122 = vmatpush1.msra.mxu0 0.0
    %123 = vmatprep.subr.mxu0 0.0
    %124 = vmatpush1.msra.mxu0 0.0
    %125 = vmatprep.subr.mxu0 0.0
    %126 = vmatpush1.msra.mxu0 0.0
    %127 = vmatprep.subr.mxu0 0.0
    %128 = vmatpush1.msra.mxu0 0.0
    %129 = vmatprep.subr.mxu0 0.0
    %130 = vmatpush1.msra.mxu0 0.0
    %131 = vmatprep.subr.mxu0 0.0
    %132 = vmatpush1.msra.mxu0 0.0
    %133 = vmatprep.subr.mxu0 0.0
    %134 = vmatpush1.msra.mxu0 0.0
    %135 = vmatprep.subr.mxu0 0.0
    %136 = vmatpush1.msra.mxu0 0.0
    %137 = vmatprep.subr.mxu0 0.0
    %138 = vmatpush1.msra.mxu0 0.0
    %139 = vmatprep.subr.mxu0 0.0
    %140 = vmatpush1.msra.mxu0 0.0
    %141 = vmatprep.subr.mxu0 0.0
    %142 = vmatpush1.msra.mxu0 0.0
    %143 = vmatprep.subr.mxu0 0.0
    %144 = vmatpush1.msra.mxu0 0.0
    %145 = vmatprep.subr.mxu0 0.0
    %146 = vmatpush1.msra.mxu0 0.0
    %147 = vmatprep.subr.mxu0 0.0
    %148 = vmatpush1.msra.mxu0 0.0
    %149 = vmatprep.subr.mxu0 0.0
    %150 = vmatpush1.msra.mxu0 0.0
    %151 = vmatprep.mubr.f32.mxu0 0.0
    %152 = vmatmul.mubr.f32.gmra.mrb[0].mxu0 %v64
    %v153 = vpop.f32.mrb[0].mxu0
    %v154 = vadd.f32 %v60, %v153
    %v155 = vpop.f32.mrb[0].mxu0
    %156 = vmatprep.mubr.f32.mxu0 0.0
    %157 = vmatmul.mubr.f32.gmra.mrb[0].mxu0 %v67
    %v158 = vpop.f32.mrb[0].mxu0
    %v159 = vadd.f32 %v60, %v158
    %v160 = vpop.f32.mrb[0].mxu0
    %161 = vmatprep.mubr.f32.mxu0 0.0
    %162 = vmatmul.mubr.f32.gmra.mrb[0].mxu0 %v70
    %v163 = vpop.f32.mrb[0].mxu0
    %v164 = vadd.f32 %v60, %v163
    %v165 = vpop.f32.mrb[0].mxu0
    %166 = vmatprep.mubr.f32.mxu0 0.0
    %167 = vmatmul.mubr.f32.gmra.mrb[0].mxu0 %v73
    %v168 = vpop.f32.mrb[0].mxu0
    %v169 = vadd.f32 %v60, %v168
    %v170 = vpop.f32.mrb[0].mxu0
    %171 = vmatprep.mubr.f32.mxu0 0.0
    %172 = vmatmul.mubr.f32.gmra.mrb[0].mxu0 %v76
    %v173 = vpop.f32.mrb[0].mxu0
    %v174 = vadd.f32 %v60, %v173
    %v175 = vpop.f32.mrb[0].mxu0
    %176 = vmatprep.mubr.f32.mxu0 0.0
    %177 = vmatmul.mubr.f32.gmra.mrb[0].mxu0 %v79
    %v178 = vpop.f32.mrb[0].mxu0
    %v179 = vadd.f32 %v60, %v178
    %v180 = vpop.f32.mrb[0].mxu0
    %181 = vmatprep.mubr.f32.mxu0 0.0
    %182 = vmatmul.mubr.f32.gmra.mrb[0].mxu0 %v82
    %v183 = vpop.f32.mrb[0].mxu0
    %v184 = vadd.f32 %v60, %v183
    %v185 = vpop.f32.mrb[0].mxu0
    %186 = vmatprep.mubr.f32.mxu0 0.0
    %187 = vmatmul.mubr.f32.gmra.mrb[0].mxu0 %v85
    %v188 = vpop.f32.mrb[0].mxu0
    %v189 = vadd.f32 %v60, %v188
    %v190 = vpop.f32.mrb[0].mxu0
    %191 = vdwg.mxu0
    %192 = vst [vmem:[#allocation2] sm:$0xff] %v154
    %193 = vst [vmem:[#allocation2 + $0x8] sm:$0xff] %v159
    %194 = vst [vmem:[#allocation2 + $0x10] sm:$0xff] %v164
    %195 = vst [vmem:[#allocation2 + $0x18] sm:$0xff] %v169
    %196 = vst [vmem:[#allocation2 + $0x20] sm:$0xff] %v174
    %197 = vst [vmem:[#allocation2 + $0x28] sm:$0xff] %v179
    %198 = vst [vmem:[#allocation2 + $0x30] sm:$0xff] %v184
    %199 = vst [vmem:[#allocation2 + $0x38] sm:$0xff] %v189
    %v200 = vld [vmem:[#allocation2] sm:$0xff]
    %vm201 = vcmask 261120
    %v203 = vsel %vm201, 0.0, 0
    %205 = vmatprep.subr.mxu0 0.0
    %206 = vmatpush1.msra.mxu0 %v38
    %207 = vmatprep.subr.mxu0 0.0
    %208 = vmatpush1.msra.mxu0 %v39
    %209 = vmatprep.subr.mxu0 0.0
    %210 = vmatpush1.msra.mxu0 %v40
    %211 = vmatprep.subr.mxu0 0.0
    %212 = vmatpush1.msra.mxu0 %v41
    %213 = vmatprep.subr.mxu0 0.0
    %214 = vmatpush1.msra.mxu0 0.0
    %215 = vmatprep.subr.mxu0 0.0
    %216 = vmatpush1.msra.mxu0 0.0
    %217 = vmatprep.subr.mxu0 0.0
    %218 = vmatpush1.msra.mxu0 0.0
    %219 = vmatprep.subr.mxu0 0.0
    %220 = vmatpush1.msra.mxu0 0.0
    %221 = vmatprep.subr.mxu0 0.0
    %222 = vmatpush1.msra.mxu0 0.0
    %223 = vmatprep.subr.mxu0 0.0
    %224 = vmatpush1.msra.mxu0 0.0
    %225 = vmatprep.subr.mxu0 0.0
    %226 = vmatpush1.msra.mxu0 0.0
    %227 = vmatprep.subr.mxu0 0.0
    %228 = vmatpush1.msra.mxu0 0.0
    %229 = vmatprep.subr.mxu0 0.0
    %230 = vmatpush1.msra.mxu0 0.0
    %231 = vmatprep.subr.mxu0 0.0
    %232 = vmatpush1.msra.mxu0 0.0
    %233 = vmatprep.subr.mxu0 0.0
    %234 = vmatpush1.msra.mxu0 0.0
    %235 = vmatprep.subr.mxu0 0.0
    %236 = vmatpush1.msra.mxu0 0.0
    %237 = vmatprep.subr.mxu0 0.0
    %238 = vmatpush1.msra.mxu0 0.0
    %239 = vmatprep.subr.mxu0 0.0
    %240 = vmatpush1.msra.mxu0 0.0
    %241 = vmatprep.subr.mxu0 0.0
    %242 = vmatpush1.msra.mxu0 0.0
    %243 = vmatprep.subr.mxu0 0.0
    %244 = vmatpush1.msra.mxu0 0.0
    %245 = vmatprep.subr.mxu0 0.0
    %246 = vmatpush1.msra.mxu0 0.0
    %247 = vmatprep.subr.mxu0 0.0
    %248 = vmatpush1.msra.mxu0 0.0
    %249 = vmatprep.subr.mxu0 0.0
    %250 = vmatpush1.msra.mxu0 0.0
    %251 = vmatprep.subr.mxu0 0.0
    %252 = vmatpush1.msra.mxu0 0.0
    %253 = vmatprep.subr.mxu0 0.0
    %254 = vmatpush1.msra.mxu0 0.0
    %255 = vmatprep.subr.mxu0 0.0
    %256 = vmatpush1.msra.mxu0 0.0
    %257 = vmatprep.subr.mxu0 0.0
    %258 = vmatpush1.msra.mxu0 0.0
    %259 = vmatprep.subr.mxu0 0.0
    %260 = vmatpush1.msra.mxu0 0.0
    %261 = vmatprep.subr.mxu0 0.0
    %262 = vmatpush1.msra.mxu0 0.0
    %263 = vmatprep.subr.mxu0 0.0
    %264 = vmatpush1.msra.mxu0 0.0
    %265 = vmatprep.subr.mxu0 0.0
    %266 = vmatpush1.msra.mxu0 0.0
    %267 = vmatprep.subr.mxu0 0.0
    %268 = vmatpush1.msra.mxu0 0.0
    %269 = vmatprep.mubr.f32.mxu0 0.0
    %270 = vmatmul.mubr.f32.gmra.mrb[0].mxu0 %v203
    %v271 = vpop.f32.mrb[0].mxu0
    %v272 = vadd.f32 0.0, %v271
    %v273 = vpop.f32.mrb[0].mxu0
    %274 = vdwg.mxu0
    %v275 = vadd.f32 %v200, %v272
    %v276 = vxor.u32 %v275, 2147483648
    %v277 = vmul.f32 %v276, 1.442695
    %v278 = vpow.pop %v277
    %v279 = vadd.f32 %v278, 1.0
    %v280 = vrcp.pop %v279
    %v281 = vmul.f32 1.0, %v280
    %v282 = vtanh.pop %v275
    %v283 = vmul.f32 %v281, 0.0
    %285 = vrot.lane.b32.xlu0 %v282, 64
    %v286 = vpop.permute.xlu0 %285
    %v288 = vmul.f32 %v281, %v286
    %290 = vrot.lane.b32.xlu0 %v288, 32
    %v291 = vpop.permute.xlu0 %290
    %v293 = vadd.f32 %v283, %v291
    %v294 = vtanh.pop %v293
    %296 = vrot.lane.b32.xlu0 %v294, 64
    %v297 = vpop.permute.xlu0 %296
    %v299 = vmul.f32 %v281, %v297
    %v300 = vld [vmem:[#allocation2 + $0x8] sm:$0xff]
    %302 = vrot.lane.b32.xlu0 %v299, 32
    %v303 = vpop.permute.xlu0 %302
    %v304 = vsel %vm201, %v303, 0
    %306 = vmatprep.subr.mxu0 0.0
    %307 = vmatpush1.msra.mxu0 %v38
    %308 = vmatprep.subr.mxu0 0.0
    %309 = vmatpush1.msra.mxu0 %v39
    %310 = vmatprep.subr.mxu0 0.0
    %311 = vmatpush1.msra.mxu0 %v40
    %312 = vmatprep.subr.mxu0 0.0
    %313 = vmatpush1.msra.mxu0 %v41
    %314 = vmatprep.subr.mxu0 0.0
    %315 = vmatpush1.msra.mxu0 0.0
    %316 = vmatprep.subr.mxu0 0.0
    %317 = vmatpush1.msra.mxu0 0.0
    %318 = vmatprep.subr.mxu0 0.0
    %319 = vmatpush1.msra.mxu0 0.0
    %320 = vmatprep.subr.mxu0 0.0
    %321 = vmatpush1.msra.mxu0 0.0
    %322 = vmatprep.subr.mxu0 0.0
    %323 = vmatpush1.msra.mxu0 0.0
    %324 = vmatprep.subr.mxu0 0.0
    %325 = vmatpush1.msra.mxu0 0.0
    %326 = vmatprep.subr.mxu0 0.0
    %327 = vmatpush1.msra.mxu0 0.0
    %328 = vmatprep.subr.mxu0 0.0
    %329 = vmatpush1.msra.mxu0 0.0
    %330 = vmatprep.subr.mxu0 0.0
    %331 = vmatpush1.msra.mxu0 0.0
    %332 = vmatprep.subr.mxu0 0.0
    %333 = vmatpush1.msra.mxu0 0.0
    %334 = vmatprep.subr.mxu0 0.0
    %335 = vmatpush1.msra.mxu0 0.0
    %336 = vmatprep.subr.mxu0 0.0
    %337 = vmatpush1.msra.mxu0 0.0
    %338 = vmatprep.subr.mxu0 0.0
    %339 = vmatpush1.msra.mxu0 0.0
    %340 = vmatprep.subr.mxu0 0.0
    %341 = vmatpush1.msra.mxu0 0.0
    %342 = vmatprep.subr.mxu0 0.0
    %343 = vmatpush1.msra.mxu0 0.0
    %344 = vmatprep.subr.mxu0 0.0
    %345 = vmatpush1.msra.mxu0 0.0
    %346 = vmatprep.subr.mxu0 0.0
    %347 = vmatpush1.msra.mxu0 0.0
    %348 = vmatprep.subr.mxu0 0.0
    %349 = vmatpush1.msra.mxu0 0.0
    %350 = vmatprep.subr.mxu0 0.0
    %351 = vmatpush1.msra.mxu0 0.0
    %352 = vmatprep.subr.mxu0 0.0
    %353 = vmatpush1.msra.mxu0 0.0
    %354 = vmatprep.subr.mxu0 0.0
    %355 = vmatpush1.msra.mxu0 0.0
    %356 = vmatprep.subr.mxu0 0.0
    %357 = vmatpush1.msra.mxu0 0.0
    %358 = vmatprep.subr.mxu0 0.0
    %359 = vmatpush1.msra.mxu0 0.0
    %360 = vmatprep.subr.mxu0 0.0
    %361 = vmatpush1.msra.mxu0 0.0
    %362 = vmatprep.subr.mxu0 0.0
    %363 = vmatpush1.msra.mxu0 0.0
    %364 = vmatprep.subr.mxu0 0.0
    %365 = vmatpush1.msra.mxu0 0.0
    %366 = vmatprep.subr.mxu0 0.0
    %367 = vmatpush1.msra.mxu0 0.0
    %368 = vmatprep.subr.mxu0 0.0
    %369 = vmatpush1.msra.mxu0 0.0
    %370 = vmatprep.mubr.f32.mxu0 0.0
    %371 = vmatmul.mubr.f32.gmra.mrb[0].mxu0 %v304
    %v372 = vpop.f32.mrb[0].mxu0
    %v373 = vadd.f32 0.0, %v372
    %v374 = vpop.f32.mrb[0].mxu0
    %375 = vdwg.mxu0
    %v376 = vadd.f32 %v300, %v373
    %v377 = vxor.u32 %v376, 2147483648
    %v378 = vmul.f32 %v377, 1.442695
    %v379 = vpow.pop %v378
    %v380 = vadd.f32 %v379, 1.0
    %v381 = vrcp.pop %v380
    %v382 = vmul.f32 1.0, %v381
    %v383 = vtanh.pop %v376
    %v384 = vmul.f32 %v382, %v293
    %386 = vrot.lane.b32.xlu0 %v383, 64
    %v387 = vpop.permute.xlu0 %386
    %v389 = vmul.f32 %v382, %v387
    %391 = vrot.lane.b32.xlu0 %v389, 32
    %v392 = vpop.permute.xlu0 %391
    %v394 = vadd.f32 %v384, %v392
    %v395 = vtanh.pop %v394
    %397 = vrot.lane.b32.xlu0 %v395, 64
    %v398 = vpop.permute.xlu0 %397
    %v400 = vmul.f32 %v382, %v398
    %401 = vmatprep.subr.mxu0 0.0
    %402 = vmatpush1.msra.mxu0 %v42
    %403 = vmatprep.subr.mxu0 0.0
    %404 = vmatpush1.msra.mxu0 %v43
    %405 = vmatprep.subr.mxu0 0.0
    %406 = vmatpush1.msra.mxu0 %v44
    %407 = vmatprep.subr.mxu0 0.0
    %408 = vmatpush1.msra.mxu0 %v45
    %409 = vmatprep.subr.mxu0 0.0
    %410 = vmatpush1.msra.mxu0 0.0
    %411 = vmatprep.subr.mxu0 0.0
    %412 = vmatpush1.msra.mxu0 0.0
    %413 = vmatprep.subr.mxu0 0.0
    %414 = vmatpush1.msra.mxu0 0.0
    %415 = vmatprep.subr.mxu0 0.0
    %416 = vmatpush1.msra.mxu0 0.0
    %417 = vmatprep.subr.mxu0 0.0
    %418 = vmatpush1.msra.mxu0 0.0
    %419 = vmatprep.subr.mxu0 0.0
    %420 = vmatpush1.msra.mxu0 0.0
    %421 = vmatprep.subr.mxu0 0.0
    %422 = vmatpush1.msra.mxu0 0.0
    %423 = vmatprep.subr.mxu0 0.0
    %424 = vmatpush1.msra.mxu0 0.0
    %425 = vmatprep.subr.mxu0 0.0
    %426 = vmatpush1.msra.mxu0 0.0
    %427 = vmatprep.subr.mxu0 0.0
    %428 = vmatpush1.msra.mxu0 0.0
    %429 = vmatprep.subr.mxu0 0.0
    %430 = vmatpush1.msra.mxu0 0.0
    %431 = vmatprep.subr.mxu0 0.0
    %432 = vmatpush1.msra.mxu0 0.0
    %433 = vmatprep.subr.mxu0 0.0
    %434 = vmatpush1.msra.mxu0 0.0
    %435 = vmatprep.subr.mxu0 0.0
    %436 = vmatpush1.msra.mxu0 0.0
    %437 = vmatprep.subr.mxu0 0.0
    %438 = vmatpush1.msra.mxu0 0.0
    %439 = vmatprep.subr.mxu0 0.0
    %440 = vmatpush1.msra.mxu0 0.0
    %441 = vmatprep.subr.mxu0 0.0
    %442 = vmatpush1.msra.mxu0 0.0
    %443 = vmatprep.subr.mxu0 0.0
    %444 = vmatpush1.msra.mxu0 0.0
    %445 = vmatprep.subr.mxu0 0.0
    %446 = vmatpush1.msra.mxu0 0.0
    %447 = vmatprep.subr.mxu0 0.0
    %448 = vmatpush1.msra.mxu0 0.0
    %449 = vmatprep.subr.mxu0 0.0
    %450 = vmatpush1.msra.mxu0 0.0
    %451 = vmatprep.subr.mxu0 0.0
    %452 = vmatpush1.msra.mxu0 0.0
    %453 = vmatprep.subr.mxu0 0.0
    %454 = vmatpush1.msra.mxu0 0.0
    %455 = vmatprep.subr.mxu0 0.0
    %456 = vmatpush1.msra.mxu0 0.0
    %457 = vmatprep.subr.mxu0 0.0
    %458 = vmatpush1.msra.mxu0 0.0
    %459 = vmatprep.subr.mxu0 0.0
    %460 = vmatpush1.msra.mxu0 0.0
    %461 = vmatprep.subr.mxu0 0.0
    %462 = vmatpush1.msra.mxu0 0.0
    %463 = vmatprep.subr.mxu0 0.0
    %464 = vmatpush1.msra.mxu0 0.0
    %465 = vmatprep.mubr.f32.mxu0 0.0
    %466 = vmatmul.mubr.f32.gmra.mrb[0].mxu0 %v203
    %v467 = vpop.f32.mrb[0].mxu0
    %v468 = vadd.f32 0.0, %v467
    %v469 = vpop.f32.mrb[0].mxu0
    %470 = vdwg.mxu0
    %471 = vmatprep.subr.mxu0 0.0
    %472 = vmatpush1.msra.mxu0 %v34
    %473 = vmatprep.subr.mxu0 0.0
    %474 = vmatpush1.msra.mxu0 %v35
    %475 = vmatprep.subr.mxu0 0.0
    %476 = vmatpush1.msra.mxu0 %v36
    %477 = vmatprep.subr.mxu0 0.0
    %478 = vmatpush1.msra.mxu0 %v37
    %479 = vmatprep.subr.mxu0 0.0
    %480 = vmatpush1.msra.mxu0 0.0
    %481 = vmatprep.subr.mxu0 0.0
    %482 = vmatpush1.msra.mxu0 0.0
    %483 = vmatprep.subr.mxu0 0.0
    %484 = vmatpush1.msra.mxu0 0.0
    %485 = vmatprep.subr.mxu0 0.0
    %486 = vmatpush1.msra.mxu0 0.0
    %487 = vmatprep.subr.mxu0 0.0
    %488 = vmatpush1.msra.mxu0 0.0
    %489 = vmatprep.subr.mxu0 0.0
    %490 = vmatpush1.msra.mxu0 0.0
    %491 = vmatprep.subr.mxu0 0.0
    %492 = vmatpush1.msra.mxu0 0.0
    %493 = vmatprep.subr.mxu0 0.0
    %494 = vmatpush1.msra.mxu0 0.0
    %495 = vmatprep.subr.mxu0 0.0
    %496 = vmatpush1.msra.mxu0 0.0
    %497 = vmatprep.subr.mxu0 0.0
    %498 = vmatpush1.msra.mxu0 0.0
    %499 = vmatprep.subr.mxu0 0.0
    %500 = vmatpush1.msra.mxu0 0.0
    %501 = vmatprep.subr.mxu0 0.0
    %502 = vmatpush1.msra.mxu0 0.0
    %503 = vmatprep.subr.mxu0 0.0
    %504 = vmatpush1.msra.mxu0 0.0
    %505 = vmatprep.subr.mxu0 0.0
    %506 = vmatpush1.msra.mxu0 0.0
    %507 = vmatprep.subr.mxu0 0.0
    %508 = vmatpush1.msra.mxu0 0.0
    %509 = vmatprep.subr.mxu0 0.0
    %510 = vmatpush1.msra.mxu0 0.0
    %511 = vmatprep.subr.mxu0 0.0
    %512 = vmatpush1.msra.mxu0 0.0
    %513 = vmatprep.subr.mxu0 0.0
    %514 = vmatpush1.msra.mxu0 0.0
    %515 = vmatprep.subr.mxu0 0.0
    %516 = vmatpush1.msra.mxu0 0.0
    %517 = vmatprep.subr.mxu0 0.0
    %518 = vmatpush1.msra.mxu0 0.0
    %519 = vmatprep.subr.mxu0 0.0
    %520 = vmatpush1.msra.mxu0 0.0
    %521 = vmatprep.subr.mxu0 0.0
    %522 = vmatpush1.msra.mxu0 0.0
    %523 = vmatprep.subr.mxu0 0.0
    %524 = vmatpush1.msra.mxu0 0.0
    %525 = vmatprep.subr.mxu0 0.0
    %526 = vmatpush1.msra.mxu0 0.0
    %527 = vmatprep.subr.mxu0 0.0
    %528 = vmatpush1.msra.mxu0 0.0
    %529 = vmatprep.subr.mxu0 0.0
    %530 = vmatpush1.msra.mxu0 0.0
    %531 = vmatprep.subr.mxu0 0.0
    %532 = vmatpush1.msra.mxu0 0.0
    %533 = vmatprep.subr.mxu0 0.0
    %534 = vmatpush1.msra.mxu0 0.0
    %535 = vmatprep.mubr.f32.mxu0 0.0
    %536 = vmatmul.mubr.f32.gmra.mrb[0].mxu0 %v304
    %v537 = vpop.f32.mrb[0].mxu0
    %v538 = vadd.f32 %v468, %v537
    %v539 = vpop.f32.mrb[0].mxu0
    %540 = vdwg.mxu0
    %v542 = vlaneseq
    %v543 = vshrl.u32 %v542, 7
    %v544 = vsub.s32 0, %v543
    %v545 = vrot.slane %v47, %v544
    %v547 = vadd.f32 %v538, %v545
    %v548 = vxor.u32 %v547, 2147483648
    %v549 = vmul.f32 %v548, 1.442695
    %v550 = vpow.pop %v549
    %v551 = vadd.f32 %v550, 1.0
    %v552 = vrcp.pop %v551
    %v553 = vmul.f32 1.0, %v552
    %v554 = vtanh.pop %v547
    %v555 = vmul.f32 %v553, 0.0
    %557 = vrot.lane.b32.xlu0 %v554, 64
    %v558 = vpop.permute.xlu0 %557
    %v560 = vmul.f32 %v553, %v558
    %562 = vrot.lane.b32.xlu0 %v560, 32
    %v563 = vpop.permute.xlu0 %562
    %v565 = vadd.f32 %v555, %v563
    %v566 = vtanh.pop %v565
    %568 = vrot.lane.b32.xlu0 %v566, 64
    %v569 = vpop.permute.xlu0 %568
    %v571 = vmul.f32 %v553, %v569
    %v572 = vld [vmem:[#allocation2 + $0x10] sm:$0xff]
    %574 = vrot.lane.b32.xlu0 %v400, 32
    %v575 = vpop.permute.xlu0 %574
    %v576 = vsel %vm201, %v575, 0
    %578 = vmatprep.subr.mxu0 0.0
    %579 = vmatpush1.msra.mxu0 %v38
    %580 = vmatprep.subr.mxu0 0.0
    %581 = vmatpush1.msra.mxu0 %v39
    %582 = vmatprep.subr.mxu0 0.0
    %583 = vmatpush1.msra.mxu0 %v40
    %584 = vmatprep.subr.mxu0 0.0
    %585 = vmatpush1.msra.mxu0 %v41
    %586 = vmatprep.subr.mxu0 0.0
    %587 = vmatpush1.msra.mxu0 0.0
    %588 = vmatprep.subr.mxu0 0.0
    %589 = vmatpush1.msra.mxu0 0.0
    %590 = vmatprep.subr.mxu0 0.0
    %591 = vmatpush1.msra.mxu0 0.0
    %592 = vmatprep.subr.mxu0 0.0
    %593 = vmatpush1.msra.mxu0 0.0
    %594 = vmatprep.subr.mxu0 0.0
    %595 = vmatpush1.msra.mxu0 0.0
    %596 = vmatprep.subr.mxu0 0.0
    %597 = vmatpush1.msra.mxu0 0.0
    %598 = vmatprep.subr.mxu0 0.0
    %599 = vmatpush1.msra.mxu0 0.0
    %600 = vmatprep.subr.mxu0 0.0
    %601 = vmatpush1.msra.mxu0 0.0
    %602 = vmatprep.subr.mxu0 0.0
    %603 = vmatpush1.msra.mxu0 0.0
    %604 = vmatprep.subr.mxu0 0.0
    %605 = vmatpush1.msra.mxu0 0.0
    %606 = vmatprep.subr.mxu0 0.0
    %607 = vmatpush1.msra.mxu0 0.0
    %608 = vmatprep.subr.mxu0 0.0
    %609 = vmatpush1.msra.mxu0 0.0
    %610 = vmatprep.subr.mxu0 0.0
    %611 = vmatpush1.msra.mxu0 0.0
    %612 = vmatprep.subr.mxu0 0.0
    %613 = vmatpush1.msra.mxu0 0.0
    %614 = vmatprep.subr.mxu0 0.0
    %615 = vmatpush1.msra.mxu0 0.0
    %616 = vmatprep.subr.mxu0 0.0
    %617 = vmatpush1.msra.mxu0 0.0
    %618 = vmatprep.subr.mxu0 0.0
    %619 = vmatpush1.msra.mxu0 0.0
    %620 = vmatprep.subr.mxu0 0.0
    %621 = vmatpush1.msra.mxu0 0.0
    %622 = vmatprep.subr.mxu0 0.0
    %623 = vmatpush1.msra.mxu0 0.0
    %624 = vmatprep.subr.mxu0 0.0
    %625 = vmatpush1.msra.mxu0 0.0
    %626 = vmatprep.subr.mxu0 0.0
    %627 = vmatpush1.msra.mxu0 0.0
    %628 = vmatprep.subr.mxu0 0.0
    %629 = vmatpush1.msra.mxu0 0.0
    %630 = vmatprep.subr.mxu0 0.0
    %631 = vmatpush1.msra.mxu0 0.0
    %632 = vmatprep.subr.mxu0 0.0
    %633 = vmatpush1.msra.mxu0 0.0
    %634 = vmatprep.subr.mxu0 0.0
    %635 = vmatpush1.msra.mxu0 0.0
    %636 = vmatprep.subr.mxu0 0.0
    %637 = vmatpush1.msra.mxu0 0.0
    %638 = vmatprep.subr.mxu0 0.0
    %639 = vmatpush1.msra.mxu0 0.0
    %640 = vmatprep.subr.mxu0 0.0
    %641 = vmatpush1.msra.mxu0 0.0
    %642 = vmatprep.mubr.f32.mxu0 0.0
    %643 = vmatmul.mubr.f32.gmra.mrb[0].mxu0 %v576
    %v644 = vpop.f32.mrb[0].mxu0
    %v645 = vadd.f32 0.0, %v644
    %v646 = vpop.f32.mrb[0].mxu0
    %647 = vdwg.mxu0
    %v648 = vadd.f32 %v572, %v645
    %v649 = vxor.u32 %v648, 2147483648
    %v650 = vmul.f32 %v649, 1.442695
    %v651 = vpow.pop %v650
    %v652 = vadd.f32 %v651, 1.0
    %v653 = vrcp.pop %v652
    %v654 = vmul.f32 1.0, %v653
    %v655 = vtanh.pop %v648
    %v656 = vmul.f32 %v654, %v394
    %658 = vrot.lane.b32.xlu0 %v655, 64
    %v659 = vpop.permute.xlu0 %658
    %v661 = vmul.f32 %v654, %v659
    %663 = vrot.lane.b32.xlu0 %v661, 32
    %v664 = vpop.permute.xlu0 %663
    %v666 = vadd.f32 %v656, %v664
    %v667 = vtanh.pop %v666
    %669 = vrot.lane.b32.xlu0 %v667, 64
    %v670 = vpop.permute.xlu0 %669
    %v672 = vmul.f32 %v654, %v670
    %674 = vrot.lane.b32.xlu0 %v571, 32
    %v675 = vpop.permute.xlu0 %674
    %v676 = vsel %vm201, %v675, 0
    %678 = vmatprep.subr.mxu0 0.0
    %679 = vmatpush1.msra.mxu0 %v42
    %680 = vmatprep.subr.mxu0 0.0
    %681 = vmatpush1.msra.mxu0 %v43
    %682 = vmatprep.subr.mxu0 0.0
    %683 = vmatpush1.msra.mxu0 %v44
    %684 = vmatprep.subr.mxu0 0.0
    %685 = vmatpush1.msra.mxu0 %v45
    %686 = vmatprep.subr.mxu0 0.0
    %687 = vmatpush1.msra.mxu0 0.0
    %688 = vmatprep.subr.mxu0 0.0
    %689 = vmatpush1.msra.mxu0 0.0
    %690 = vmatprep.subr.mxu0 0.0
    %691 = vmatpush1.msra.mxu0 0.0
    %692 = vmatprep.subr.mxu0 0.0
    %693 = vmatpush1.msra.mxu0 0.0
    %694 = vmatprep.subr.mxu0 0.0
    %695 = vmatpush1.msra.mxu0 0.0
    %696 = vmatprep.subr.mxu0 0.0
    %697 = vmatpush1.msra.mxu0 0.0
    %698 = vmatprep.subr.mxu0 0.0
    %699 = vmatpush1.msra.mxu0 0.0
    %700 = vmatprep.subr.mxu0 0.0
    %701 = vmatpush1.msra.mxu0 0.0
    %702 = vmatprep.subr.mxu0 0.0
    %703 = vmatpush1.msra.mxu0 0.0
    %704 = vmatprep.subr.mxu0 0.0
    %705 = vmatpush1.msra.mxu0 0.0
    %706 = vmatprep.subr.mxu0 0.0
    %707 = vmatpush1.msra.mxu0 0.0
    %708 = vmatprep.subr.mxu0 0.0
    %709 = vmatpush1.msra.mxu0 0.0
    %710 = vmatprep.subr.mxu0 0.0
    %711 = vmatpush1.msra.mxu0 0.0
    %712 = vmatprep.subr.mxu0 0.0
    %713 = vmatpush1.msra.mxu0 0.0
    %714 = vmatprep.subr.mxu0 0.0
    %715 = vmatpush1.msra.mxu0 0.0
    %716 = vmatprep.subr.mxu0 0.0
    %717 = vmatpush1.msra.mxu0 0.0
    %718 = vmatprep.subr.mxu0 0.0
    %719 = vmatpush1.msra.mxu0 0.0
    %720 = vmatprep.subr.mxu0 0.0
    %721 = vmatpush1.msra.mxu0 0.0
    %722 = vmatprep.subr.mxu0 0.0
    %723 = vmatpush1.msra.mxu0 0.0
    %724 = vmatprep.subr.mxu0 0.0
    %725 = vmatpush1.msra.mxu0 0.0
    %726 = vmatprep.subr.mxu0 0.0
    %727 = vmatpush1.msra.mxu0 0.0
    %728 = vmatprep.subr.mxu0 0.0
    %729 = vmatpush1.msra.mxu0 0.0
    %730 = vmatprep.subr.mxu0 0.0
    %731 = vmatpush1.msra.mxu0 0.0
    %732 = vmatprep.subr.mxu0 0.0
    %733 = vmatpush1.msra.mxu0 0.0
    %734 = vmatprep.subr.mxu0 0.0
    %735 = vmatpush1.msra.mxu0 0.0
    %736 = vmatprep.subr.mxu0 0.0
    %737 = vmatpush1.msra.mxu0 0.0
    %738 = vmatprep.subr.mxu0 0.0
    %739 = vmatpush1.msra.mxu0 0.0
    %740 = vmatprep.subr.mxu0 0.0
    %741 = vmatpush1.msra.mxu0 0.0
    %742 = vmatprep.mubr.f32.mxu0 0.0
    %743 = vmatmul.mubr.f32.gmra.mrb[0].mxu0 %v676
    %v744 = vpop.f32.mrb[0].mxu0
    %v745 = vadd.f32 0.0, %v744
    %v746 = vpop.f32.mrb[0].mxu0
    %747 = vdwg.mxu0
    %748 = vmatprep.subr.mxu0 0.0
    %749 = vmatpush1.msra.mxu0 %v34
    %750 = vmatprep.subr.mxu0 0.0
    %751 = vmatpush1.msra.mxu0 %v35
    %752 = vmatprep.subr.mxu0 0.0
    %753 = vmatpush1.msra.mxu0 %v36
    %754 = vmatprep.subr.mxu0 0.0
    %755 = vmatpush1.msra.mxu0 %v37
    %756 = vmatprep.subr.mxu0 0.0
    %757 = vmatpush1.msra.mxu0 0.0
    %758 = vmatprep.subr.mxu0 0.0
    %759 = vmatpush1.msra.mxu0 0.0
    %760 = vmatprep.subr.mxu0 0.0
    %761 = vmatpush1.msra.mxu0 0.0
    %762 = vmatprep.subr.mxu0 0.0
    %763 = vmatpush1.msra.mxu0 0.0
    %764 = vmatprep.subr.mxu0 0.0
    %765 = vmatpush1.msra.mxu0 0.0
    %766 = vmatprep.subr.mxu0 0.0
    %767 = vmatpush1.msra.mxu0 0.0
    %768 = vmatprep.subr.mxu0 0.0
    %769 = vmatpush1.msra.mxu0 0.0
    %770 = vmatprep.subr.mxu0 0.0
    %771 = vmatpush1.msra.mxu0 0.0
    %772 = vmatprep.subr.mxu0 0.0
    %773 = vmatpush1.msra.mxu0 0.0
    %774 = vmatprep.subr.mxu0 0.0
    %775 = vmatpush1.msra.mxu0 0.0
    %776 = vmatprep.subr.mxu0 0.0
    %777 = vmatpush1.msra.mxu0 0.0
    %778 = vmatprep.subr.mxu0 0.0
    %779 = vmatpush1.msra.mxu0 0.0
    %780 = vmatprep.subr.mxu0 0.0
    %781 = vmatpush1.msra.mxu0 0.0
    %782 = vmatprep.subr.mxu0 0.0
    %783 = vmatpush1.msra.mxu0 0.0
    %784 = vmatprep.subr.mxu0 0.0
    %785 = vmatpush1.msra.mxu0 0.0
    %786 = vmatprep.subr.mxu0 0.0
    %787 = vmatpush1.msra.mxu0 0.0
    %788 = vmatprep.subr.mxu0 0.0
    %789 = vmatpush1.msra.mxu0 0.0
    %790 = vmatprep.subr.mxu0 0.0
    %791 = vmatpush1.msra.mxu0 0.0
    %792 = vmatprep.subr.mxu0 0.0
    %793 = vmatpush1.msra.mxu0 0.0
    %794 = vmatprep.subr.mxu0 0.0
    %795 = vmatpush1.msra.mxu0 0.0
    %796 = vmatprep.subr.mxu0 0.0
    %797 = vmatpush1.msra.mxu0 0.0
    %798 = vmatprep.subr.mxu0 0.0
    %799 = vmatpush1.msra.mxu0 0.0
    %800 = vmatprep.subr.mxu0 0.0
    %801 = vmatpush1.msra.mxu0 0.0
    %802 = vmatprep.subr.mxu0 0.0
    %803 = vmatpush1.msra.mxu0 0.0
    %804 = vmatprep.subr.mxu0 0.0
    %805 = vmatpush1.msra.mxu0 0.0
    %806 = vmatprep.subr.mxu0 0.0
    %807 = vmatpush1.msra.mxu0 0.0
    %808 = vmatprep.subr.mxu0 0.0
    %809 = vmatpush1.msra.mxu0 0.0
    %810 = vmatprep.subr.mxu0 0.0
    %811 = vmatpush1.msra.mxu0 0.0
    %812 = vmatprep.mubr.f32.mxu0 0.0
    %813 = vmatmul.mubr.f32.gmra.mrb[0].mxu0 %v576
    %v814 = vpop.f32.mrb[0].mxu0
    %v815 = vadd.f32 %v745, %v814
    %v816 = vpop.f32.mrb[0].mxu0
    %817 = vdwg.mxu0
    %v818 = vadd.f32 %v815, %v545
    %v819 = vxor.u32 %v818, 2147483648
    %v820 = vmul.f32 %v819, 1.442695
    %v821 = vpow.pop %v820
    %v822 = vadd.f32 %v821, 1.0
    %v823 = vrcp.pop %v822
    %v824 = vmul.f32 1.0, %v823
    %v825 = vtanh.pop %v818
    %v826 = vmul.f32 %v824, %v565
    %828 = vrot.lane.b32.xlu0 %v825, 64
    %v829 = vpop.permute.xlu0 %828
    %v831 = vmul.f32 %v824, %v829
    %833 = vrot.lane.b32.xlu0 %v831, 32
    %v834 = vpop.permute.xlu0 %833
    %v836 = vadd.f32 %v826, %v834
    %v837 = vtanh.pop %v836
    %839 = vrot.lane.b32.xlu0 %v837, 64
    %v840 = vpop.permute.xlu0 %839
    %v842 = vmul.f32 %v824, %v840
    %v843 = vld [vmem:[#allocation2 + $0x18] sm:$0xff]
    %845 = vrot.lane.b32.xlu0 %v672, 32
    %v846 = vpop.permute.xlu0 %845
    %v847 = vsel %vm201, %v846, 0
    %849 = vmatprep.subr.mxu0 0.0
    %850 = vmatpush1.msra.mxu0 %v38
    %851 = vmatprep.subr.mxu0 0.0
    %852 = vmatpush1.msra.mxu0 %v39
    %853 = vmatprep.subr.mxu0 0.0
    %854 = vmatpush1.msra.mxu0 %v40
    %855 = vmatprep.subr.mxu0 0.0
    %856 = vmatpush1.msra.mxu0 %v41
    %857 = vmatprep.subr.mxu0 0.0
    %858 = vmatpush1.msra.mxu0 0.0
    %859 = vmatprep.subr.mxu0 0.0
    %860 = vmatpush1.msra.mxu0 0.0
    %861 = vmatprep.subr.mxu0 0.0
    %862 = vmatpush1.msra.mxu0 0.0
    %863 = vmatprep.subr.mxu0 0.0
    %864 = vmatpush1.msra.mxu0 0.0
    %865 = vmatprep.subr.mxu0 0.0
    %866 = vmatpush1.msra.mxu0 0.0
    %867 = vmatprep.subr.mxu0 0.0
    %868 = vmatpush1.msra.mxu0 0.0
    %869 = vmatprep.subr.mxu0 0.0
    %870 = vmatpush1.msra.mxu0 0.0
    %871 = vmatprep.subr.mxu0 0.0
    %872 = vmatpush1.msra.mxu0 0.0
    %873 = vmatprep.subr.mxu0 0.0
    %874 = vmatpush1.msra.mxu0 0.0
    %875 = vmatprep.subr.mxu0 0.0
    %876 = vmatpush1.msra.mxu0 0.0
    %877 = vmatprep.subr.mxu0 0.0
    %878 = vmatpush1.msra.mxu0 0.0
    %879 = vmatprep.subr.mxu0 0.0
    %880 = vmatpush1.msra.mxu0 0.0
    %881 = vmatprep.subr.mxu0 0.0
    %882 = vmatpush1.msra.mxu0 0.0
    %883 = vmatprep.subr.mxu0 0.0
    %884 = vmatpush1.msra.mxu0 0.0
    %885 = vmatprep.subr.mxu0 0.0
    %886 = vmatpush1.msra.mxu0 0.0
    %887 = vmatprep.subr.mxu0 0.0
    %888 = vmatpush1.msra.mxu0 0.0
    %889 = vmatprep.subr.mxu0 0.0
    %890 = vmatpush1.msra.mxu0 0.0
    %891 = vmatprep.subr.mxu0 0.0
    %892 = vmatpush1.msra.mxu0 0.0
    %893 = vmatprep.subr.mxu0 0.0
    %894 = vmatpush1.msra.mxu0 0.0
    %895 = vmatprep.subr.mxu0 0.0
    %896 = vmatpush1.msra.mxu0 0.0
    %897 = vmatprep.subr.mxu0 0.0
    %898 = vmatpush1.msra.mxu0 0.0
    %899 = vmatprep.subr.mxu0 0.0
    %900 = vmatpush1.msra.mxu0 0.0
    %901 = vmatprep.subr.mxu0 0.0
    %902 = vmatpush1.msra.mxu0 0.0
    %903 = vmatprep.subr.mxu0 0.0
    %904 = vmatpush1.msra.mxu0 0.0
    %905 = vmatprep.subr.mxu0 0.0
    %906 = vmatpush1.msra.mxu0 0.0
    %907 = vmatprep.subr.mxu0 0.0
    %908 = vmatpush1.msra.mxu0 0.0
    %909 = vmatprep.subr.mxu0 0.0
    %910 = vmatpush1.msra.mxu0 0.0
    %911 = vmatprep.subr.mxu0 0.0
    %912 = vmatpush1.msra.mxu0 0.0
    %913 = vmatprep.mubr.f32.mxu0 0.0
    %914 = vmatmul.mubr.f32.gmra.mrb[0].mxu0 %v847
    %v915 = vpop.f32.mrb[0].mxu0
    %v916 = vadd.f32 0.0, %v915
    %v917 = vpop.f32.mrb[0].mxu0
    %918 = vdwg.mxu0
    %v919 = vadd.f32 %v843, %v916
    %v920 = vxor.u32 %v919, 2147483648
    %v921 = vmul.f32 %v920, 1.442695
    %v922 = vpow.pop %v921
    %v923 = vadd.f32 %v922, 1.0
    %v924 = vrcp.pop %v923
    %v925 = vmul.f32 1.0, %v924
    %v926 = vtanh.pop %v919
    %v927 = vmul.f32 %v925, %v666
    %929 = vrot.lane.b32.xlu0 %v926, 64
    %v930 = vpop.permute.xlu0 %929
    %v932 = vmul.f32 %v925, %v930
    %934 = vrot.lane.b32.xlu0 %v932, 32
    %v935 = vpop.permute.xlu0 %934
    %v937 = vadd.f32 %v927, %v935
    %v938 = vtanh.pop %v937
    %940 = vrot.lane.b32.xlu0 %v938, 64
    %v941 = vpop.permute.xlu0 %940
    %v943 = vmul.f32 %v925, %v941
    %945 = vrot.lane.b32.xlu0 %v842, 32
    %v946 = vpop.permute.xlu0 %945
    %v947 = vsel %vm201, %v946, 0
    %949 = vmatprep.subr.mxu0 0.0
    %950 = vmatpush1.msra.mxu0 %v42
    %951 = vmatprep.subr.mxu0 0.0
    %952 = vmatpush1.msra.mxu0 %v43
    %953 = vmatprep.subr.mxu0 0.0
    %954 = vmatpush1.msra.mxu0 %v44
    %955 = vmatprep.subr.mxu0 0.0
    %956 = vmatpush1.msra.mxu0 %v45
    %957 = vmatprep.subr.mxu0 0.0
    %958 = vmatpush1.msra.mxu0 0.0
    %959 = vmatprep.subr.mxu0 0.0
    %960 = vmatpush1.msra.mxu0 0.0
    %961 = vmatprep.subr.mxu0 0.0
    %962 = vmatpush1.msra.mxu0 0.0
    %963 = vmatprep.subr.mxu0 0.0
    %964 = vmatpush1.msra.mxu0 0.0
    %965 = vmatprep.subr.mxu0 0.0
    %966 = vmatpush1.msra.mxu0 0.0
    %967 = vmatprep.subr.mxu0 0.0
    %968 = vmatpush1.msra.mxu0 0.0
    %969 = vmatprep.subr.mxu0 0.0
    %970 = vmatpush1.msra.mxu0 0.0
    %971 = vmatprep.subr.mxu0 0.0
    %972 = vmatpush1.msra.mxu0 0.0
    %973 = vmatprep.subr.mxu0 0.0
    %974 = vmatpush1.msra.mxu0 0.0
    %975 = vmatprep.subr.mxu0 0.0
    %976 = vmatpush1.msra.mxu0 0.0
    %977 = vmatprep.subr.mxu0 0.0
    %978 = vmatpush1.msra.mxu0 0.0
    %979 = vmatprep.subr.mxu0 0.0
    %980 = vmatpush1.msra.mxu0 0.0
    %981 = vmatprep.subr.mxu0 0.0
    %982 = vmatpush1.msra.mxu0 0.0
    %983 = vmatprep.subr.mxu0 0.0
    %984 = vmatpush1.msra.mxu0 0.0
    %985 = vmatprep.subr.mxu0 0.0
    %986 = vmatpush1.msra.mxu0 0.0
    %987 = vmatprep.subr.mxu0 0.0
    %988 = vmatpush1.msra.mxu0 0.0
    %989 = vmatprep.subr.mxu0 0.0
    %990 = vmatpush1.msra.mxu0 0.0
    %991 = vmatprep.subr.mxu0 0.0
    %992 = vmatpush1.msra.mxu0 0.0
    %993 = vmatprep.subr.mxu0 0.0
    %994 = vmatpush1.msra.mxu0 0.0
    %995 = vmatprep.subr.mxu0 0.0
    %996 = vmatpush1.msra.mxu0 0.0
    %997 = vmatprep.subr.mxu0 0.0
    %998 = vmatpush1.msra.mxu0 0.0
    %999 = vmatprep.subr.mxu0 0.0
    %1000 = vmatpush1.msra.mxu0 0.0
    %1001 = vmatprep.subr.mxu0 0.0
    %1002 = vmatpush1.msra.mxu0 0.0
    %1003 = vmatprep.subr.mxu0 0.0
    %1004 = vmatpush1.msra.mxu0 0.0
    %1005 = vmatprep.subr.mxu0 0.0
    %1006 = vmatpush1.msra.mxu0 0.0
    %1007 = vmatprep.subr.mxu0 0.0
    %1008 = vmatpush1.msra.mxu0 0.0
    %1009 = vmatprep.subr.mxu0 0.0
    %1010 = vmatpush1.msra.mxu0 0.0
    %1011 = vmatprep.subr.mxu0 0.0
    %1012 = vmatpush1.msra.mxu0 0.0
    %1013 = vmatprep.mubr.f32.mxu0 0.0
    %1014 = vmatmul.mubr.f32.gmra.mrb[0].mxu0 %v947
    %v1015 = vpop.f32.mrb[0].mxu0
    %v1016 = vadd.f32 0.0, %v1015
    %v1017 = vpop.f32.mrb[0].mxu0
    %1018 = vdwg.mxu0
    %1019 = vmatprep.subr.mxu0 0.0
    %1020 = vmatpush1.msra.mxu0 %v34
    %1021 = vmatprep.subr.mxu0 0.0
    %1022 = vmatpush1.msra.mxu0 %v35
    %1023 = vmatprep.subr.mxu0 0.0
    %1024 = vmatpush1.msra.mxu0 %v36
    %1025 = vmatprep.subr.mxu0 0.0
    %1026 = vmatpush1.msra.mxu0 %v37
    %1027 = vmatprep.subr.mxu0 0.0
    %1028 = vmatpush1.msra.mxu0 0.0
    %1029 = vmatprep.subr.mxu0 0.0
    %1030 = vmatpush1.msra.mxu0 0.0
    %1031 = vmatprep.subr.mxu0 0.0
    %1032 = vmatpush1.msra.mxu0 0.0
    %1033 = vmatprep.subr.mxu0 0.0
    %1034 = vmatpush1.msra.mxu0 0.0
    %1035 = vmatprep.subr.mxu0 0.0
    %1036 = vmatpush1.msra.mxu0 0.0
    %1037 = vmatprep.subr.mxu0 0.0
    %1038 = vmatpush1.msra.mxu0 0.0
    %1039 = vmatprep.subr.mxu0 0.0
    %1040 = vmatpush1.msra.mxu0 0.0
    %1041 = vmatprep.subr.mxu0 0.0
    %1042 = vmatpush1.msra.mxu0 0.0
    %1043 = vmatprep.subr.mxu0 0.0
    %1044 = vmatpush1.msra.mxu0 0.0
    %1045 = vmatprep.subr.mxu0 0.0
    %1046 = vmatpush1.msra.mxu0 0.0
    %1047 = vmatprep.subr.mxu0 0.0
    %1048 = vmatpush1.msra.mxu0 0.0
    %1049 = vmatprep.subr.mxu0 0.0
    %1050 = vmatpush1.msra.mxu0 0.0
    %1051 = vmatprep.subr.mxu0 0.0
    %1052 = vmatpush1.msra.mxu0 0.0
    %1053 = vmatprep.subr.mxu0 0.0
    %1054 = vmatpush1.msra.mxu0 0.0
    %1055 = vmatprep.subr.mxu0 0.0
    %1056 = vmatpush1.msra.mxu0 0.0
    %1057 = vmatprep.subr.mxu0 0.0
    %1058 = vmatpush1.msra.mxu0 0.0
    %1059 = vmatprep.subr.mxu0 0.0
    %1060 = vmatpush1.msra.mxu0 0.0
    %1061 = vmatprep.subr.mxu0 0.0
    %1062 = vmatpush1.msra.mxu0 0.0
    %1063 = vmatprep.subr.mxu0 0.0
    %1064 = vmatpush1.msra.mxu0 0.0
    %1065 = vmatprep.subr.mxu0 0.0
    %1066 = vmatpush1.msra.mxu0 0.0
    %1067 = vmatprep.subr.mxu0 0.0
    %1068 = vmatpush1.msra.mxu0 0.0
    %1069 = vmatprep.subr.mxu0 0.0
    %1070 = vmatpush1.msra.mxu0 0.0
    %1071 = vmatprep.subr.mxu0 0.0
    %1072 = vmatpush1.msra.mxu0 0.0
    %1073 = vmatprep.subr.mxu0 0.0
    %1074 = vmatpush1.msra.mxu0 0.0
    %1075 = vmatprep.subr.mxu0 0.0
    %1076 = vmatpush1.msra.mxu0 0.0
    %1077 = vmatprep.subr.mxu0 0.0
    %1078 = vmatpush1.msra.mxu0 0.0
    %1079 = vmatprep.subr.mxu0 0.0
    %1080 = vmatpush1.msra.mxu0 0.0
    %1081 = vmatprep.subr.mxu0 0.0
    %1082 = vmatpush1.msra.mxu0 0.0
    %1083 = vmatprep.mubr.f32.mxu0 0.0
    %1084 = vmatmul.mubr.f32.gmra.mrb[0].mxu0 %v847
    %v1085 = vpop.f32.mrb[0].mxu0
    %v1086 = vadd.f32 %v1016, %v1085
    %v1087 = vpop.f32.mrb[0].mxu0
    %1088 = vdwg.mxu0
    %v1089 = vadd.f32 %v1086, %v545
    %v1090 = vxor.u32 %v1089, 2147483648
    %v1091 = vmul.f32 %v1090, 1.442695
    %v1092 = vpow.pop %v1091
    %v1093 = vadd.f32 %v1092, 1.0
    %v1094 = vrcp.pop %v1093
    %v1095 = vmul.f32 1.0, %v1094
    %v1096 = vtanh.pop %v1089
    %v1097 = vmul.f32 %v1095, %v836
    %1099 = vrot.lane.b32.xlu0 %v1096, 64
    %v1100 = vpop.permute.xlu0 %1099
    %v1102 = vmul.f32 %v1095, %v1100
    %1104 = vrot.lane.b32.xlu0 %v1102, 32
    %v1105 = vpop.permute.xlu0 %1104
    %v1107 = vadd.f32 %v1097, %v1105
    %v1108 = vtanh.pop %v1107
    %1110 = vrot.lane.b32.xlu0 %v1108, 64
    %v1111 = vpop.permute.xlu0 %1110
    %v1113 = vmul.f32 %v1095, %v1111
    %v1114 = vld [vmem:[#allocation2 + $0x20] sm:$0xff]
    %1116 = vrot.lane.b32.xlu0 %v943, 32
    %v1117 = vpop.permute.xlu0 %1116
    %v1118 = vsel %vm201, %v1117, 0
    %1120 = vmatprep.subr.mxu0 0.0
    %1121 = vmatpush1.msra.mxu0 %v38
    %1122 = vmatprep.subr.mxu0 0.0
    %1123 = vmatpush1.msra.mxu0 %v39
    %1124 = vmatprep.subr.mxu0 0.0
    %1125 = vmatpush1.msra.mxu0 %v40
    %1126 = vmatprep.subr.mxu0 0.0
    %1127 = vmatpush1.msra.mxu0 %v41
    %1128 = vmatprep.subr.mxu0 0.0
    %1129 = vmatpush1.msra.mxu0 0.0
    %1130 = vmatprep.subr.mxu0 0.0
    %1131 = vmatpush1.msra.mxu0 0.0
    %1132 = vmatprep.subr.mxu0 0.0
    %1133 = vmatpush1.msra.mxu0 0.0
    %1134 = vmatprep.subr.mxu0 0.0
    %1135 = vmatpush1.msra.mxu0 0.0
    %1136 = vmatprep.subr.mxu0 0.0
    %1137 = vmatpush1.msra.mxu0 0.0
    %1138 = vmatprep.subr.mxu0 0.0
    %1139 = vmatpush1.msra.mxu0 0.0
    %1140 = vmatprep.subr.mxu0 0.0
    %1141 = vmatpush1.msra.mxu0 0.0
    %1142 = vmatprep.subr.mxu0 0.0
    %1143 = vmatpush1.msra.mxu0 0.0
    %1144 = vmatprep.subr.mxu0 0.0
    %1145 = vmatpush1.msra.mxu0 0.0
    %1146 = vmatprep.subr.mxu0 0.0
    %1147 = vmatpush1.msra.mxu0 0.0
    %1148 = vmatprep.subr.mxu0 0.0
    %1149 = vmatpush1.msra.mxu0 0.0
    %1150 = vmatprep.subr.mxu0 0.0
    %1151 = vmatpush1.msra.mxu0 0.0
    %1152 = vmatprep.subr.mxu0 0.0
    %1153 = vmatpush1.msra.mxu0 0.0
    %1154 = vmatprep.subr.mxu0 0.0
    %1155 = vmatpush1.msra.mxu0 0.0
    %1156 = vmatprep.subr.mxu0 0.0
    %1157 = vmatpush1.msra.mxu0 0.0
    %1158 = vmatprep.subr.mxu0 0.0
    %1159 = vmatpush1.msra.mxu0 0.0
    %1160 = vmatprep.subr.mxu0 0.0
    %1161 = vmatpush1.msra.mxu0 0.0
    %1162 = vmatprep.subr.mxu0 0.0
    %1163 = vmatpush1.msra.mxu0 0.0
    %1164 = vmatprep.subr.mxu0 0.0
    %1165 = vmatpush1.msra.mxu0 0.0
    %1166 = vmatprep.subr.mxu0 0.0
    %1167 = vmatpush1.msra.mxu0 0.0
    %1168 = vmatprep.subr.mxu0 0.0
    %1169 = vmatpush1.msra.mxu0 0.0
    %1170 = vmatprep.subr.mxu0 0.0
    %1171 = vmatpush1.msra.mxu0 0.0
    %1172 = vmatprep.subr.mxu0 0.0
    %1173 = vmatpush1.msra.mxu0 0.0
    %1174 = vmatprep.subr.mxu0 0.0
    %1175 = vmatpush1.msra.mxu0 0.0
    %1176 = vmatprep.subr.mxu0 0.0
    %1177 = vmatpush1.msra.mxu0 0.0
    %1178 = vmatprep.subr.mxu0 0.0
    %1179 = vmatpush1.msra.mxu0 0.0
    %1180 = vmatprep.subr.mxu0 0.0
    %1181 = vmatpush1.msra.mxu0 0.0
    %1182 = vmatprep.subr.mxu0 0.0
    %1183 = vmatpush1.msra.mxu0 0.0
    %1184 = vmatprep.mubr.f32.mxu0 0.0
    %1185 = vmatmul.mubr.f32.gmra.mrb[0].mxu0 %v1118
    %v1186 = vpop.f32.mrb[0].mxu0
    %v1187 = vadd.f32 0.0, %v1186
    %v1188 = vpop.f32.mrb[0].mxu0
    %1189 = vdwg.mxu0
    %v1190 = vadd.f32 %v1114, %v1187
    %v1191 = vxor.u32 %v1190, 2147483648
    %v1192 = vmul.f32 %v1191, 1.442695
    %v1193 = vpow.pop %v1192
    %v1194 = vadd.f32 %v1193, 1.0
    %v1195 = vrcp.pop %v1194
    %v1196 = vmul.f32 1.0, %v1195
    %v1197 = vtanh.pop %v1190
    %v1198 = vmul.f32 %v1196, %v937
    %1200 = vrot.lane.b32.xlu0 %v1197, 64
    %v1201 = vpop.permute.xlu0 %1200
    %v1203 = vmul.f32 %v1196, %v1201
    %1205 = vrot.lane.b32.xlu0 %v1203, 32
    %v1206 = vpop.permute.xlu0 %1205
    %v1208 = vadd.f32 %v1198, %v1206
    %v1209 = vtanh.pop %v1208
    %1211 = vrot.lane.b32.xlu0 %v1209, 64
    %v1212 = vpop.permute.xlu0 %1211
    %v1214 = vmul.f32 %v1196, %v1212
    %1216 = vrot.lane.b32.xlu0 %v1113, 32
    %v1217 = vpop.permute.xlu0 %1216
    %v1218 = vsel %vm201, %v1217, 0
    %1220 = vmatprep.subr.mxu0 0.0
    %1221 = vmatpush1.msra.mxu0 %v42
    %1222 = vmatprep.subr.mxu0 0.0
    %1223 = vmatpush1.msra.mxu0 %v43
    %1224 = vmatprep.subr.mxu0 0.0
    %1225 = vmatpush1.msra.mxu0 %v44
    %1226 = vmatprep.subr.mxu0 0.0
    %1227 = vmatpush1.msra.mxu0 %v45
    %1228 = vmatprep.subr.mxu0 0.0
    %1229 = vmatpush1.msra.mxu0 0.0
    %1230 = vmatprep.subr.mxu0 0.0
    %1231 = vmatpush1.msra.mxu0 0.0
    %1232 = vmatprep.subr.mxu0 0.0
    %1233 = vmatpush1.msra.mxu0 0.0
    %1234 = vmatprep.subr.mxu0 0.0
    %1235 = vmatpush1.msra.mxu0 0.0
    %1236 = vmatprep.subr.mxu0 0.0
    %1237 = vmatpush1.msra.mxu0 0.0
    %1238 = vmatprep.subr.mxu0 0.0
    %1239 = vmatpush1.msra.mxu0 0.0
    %1240 = vmatprep.subr.mxu0 0.0
    %1241 = vmatpush1.msra.mxu0 0.0
    %1242 = vmatprep.subr.mxu0 0.0
    %1243 = vmatpush1.msra.mxu0 0.0
    %1244 = vmatprep.subr.mxu0 0.0
    %1245 = vmatpush1.msra.mxu0 0.0
    %1246 = vmatprep.subr.mxu0 0.0
    %1247 = vmatpush1.msra.mxu0 0.0
    %1248 = vmatprep.subr.mxu0 0.0
    %1249 = vmatpush1.msra.mxu0 0.0
    %1250 = vmatprep.subr.mxu0 0.0
    %1251 = vmatpush1.msra.mxu0 0.0
    %1252 = vmatprep.subr.mxu0 0.0
    %1253 = vmatpush1.msra.mxu0 0.0
    %1254 = vmatprep.subr.mxu0 0.0
    %1255 = vmatpush1.msra.mxu0 0.0
    %1256 = vmatprep.subr.mxu0 0.0
    %1257 = vmatpush1.msra.mxu0 0.0
    %1258 = vmatprep.subr.mxu0 0.0
    %1259 = vmatpush1.msra.mxu0 0.0
    %1260 = vmatprep.subr.mxu0 0.0
    %1261 = vmatpush1.msra.mxu0 0.0
    %1262 = vmatprep.subr.mxu0 0.0
    %1263 = vmatpush1.msra.mxu0 0.0
    %1264 = vmatprep.subr.mxu0 0.0
    %1265 = vmatpush1.msra.mxu0 0.0
    %1266 = vmatprep.subr.mxu0 0.0
    %1267 = vmatpush1.msra.mxu0 0.0
    %1268 = vmatprep.subr.mxu0 0.0
    %1269 = vmatpush1.msra.mxu0 0.0
    %1270 = vmatprep.subr.mxu0 0.0
    %1271 = vmatpush1.msra.mxu0 0.0
    %1272 = vmatprep.subr.mxu0 0.0
    %1273 = vmatpush1.msra.mxu0 0.0
    %1274 = vmatprep.subr.mxu0 0.0
    %1275 = vmatpush1.msra.mxu0 0.0
    %1276 = vmatprep.subr.mxu0 0.0
    %1277 = vmatpush1.msra.mxu0 0.0
    %1278 = vmatprep.subr.mxu0 0.0
    %1279 = vmatpush1.msra.mxu0 0.0
    %1280 = vmatprep.subr.mxu0 0.0
    %1281 = vmatpush1.msra.mxu0 0.0
    %1282 = vmatprep.subr.mxu0 0.0
    %1283 = vmatpush1.msra.mxu0 0.0
    %1284 = vmatprep.mubr.f32.mxu0 0.0
    %1285 = vmatmul.mubr.f32.gmra.mrb[0].mxu0 %v1218
    %v1286 = vpop.f32.mrb[0].mxu0
    %v1287 = vadd.f32 0.0, %v1286
    %v1288 = vpop.f32.mrb[0].mxu0
    %1289 = vdwg.mxu0
    %1290 = vmatprep.subr.mxu0 0.0
    %1291 = vmatpush1.msra.mxu0 %v34
    %1292 = vmatprep.subr.mxu0 0.0
    %1293 = vmatpush1.msra.mxu0 %v35
    %1294 = vmatprep.subr.mxu0 0.0
    %1295 = vmatpush1.msra.mxu0 %v36
    %1296 = vmatprep.subr.mxu0 0.0
    %1297 = vmatpush1.msra.mxu0 %v37
    %1298 = vmatprep.subr.mxu0 0.0
    %1299 = vmatpush1.msra.mxu0 0.0
    %1300 = vmatprep.subr.mxu0 0.0
    %1301 = vmatpush1.msra.mxu0 0.0
    %1302 = vmatprep.subr.mxu0 0.0
    %1303 = vmatpush1.msra.mxu0 0.0
    %1304 = vmatprep.subr.mxu0 0.0
    %1305 = vmatpush1.msra.mxu0 0.0
    %1306 = vmatprep.subr.mxu0 0.0
    %1307 = vmatpush1.msra.mxu0 0.0
    %1308 = vmatprep.subr.mxu0 0.0
    %1309 = vmatpush1.msra.mxu0 0.0
    %1310 = vmatprep.subr.mxu0 0.0
    %1311 = vmatpush1.msra.mxu0 0.0
    %1312 = vmatprep.subr.mxu0 0.0
    %1313 = vmatpush1.msra.mxu0 0.0
    %1314 = vmatprep.subr.mxu0 0.0
    %1315 = vmatpush1.msra.mxu0 0.0
    %1316 = vmatprep.subr.mxu0 0.0
    %1317 = vmatpush1.msra.mxu0 0.0
    %1318 = vmatprep.subr.mxu0 0.0
    %1319 = vmatpush1.msra.mxu0 0.0
    %1320 = vmatprep.subr.mxu0 0.0
    %1321 = vmatpush1.msra.mxu0 0.0
    %1322 = vmatprep.subr.mxu0 0.0
    %1323 = vmatpush1.msra.mxu0 0.0
    %1324 = vmatprep.subr.mxu0 0.0
    %1325 = vmatpush1.msra.mxu0 0.0
    %1326 = vmatprep.subr.mxu0 0.0
    %1327 = vmatpush1.msra.mxu0 0.0
    %1328 = vmatprep.subr.mxu0 0.0
    %1329 = vmatpush1.msra.mxu0 0.0
    %1330 = vmatprep.subr.mxu0 0.0
    %1331 = vmatpush1.msra.mxu0 0.0
    %1332 = vmatprep.subr.mxu0 0.0
    %1333 = vmatpush1.msra.mxu0 0.0
    %1334 = vmatprep.subr.mxu0 0.0
    %1335 = vmatpush1.msra.mxu0 0.0
    %1336 = vmatprep.subr.mxu0 0.0
    %1337 = vmatpush1.msra.mxu0 0.0
    %1338 = vmatprep.subr.mxu0 0.0
    %1339 = vmatpush1.msra.mxu0 0.0
    %1340 = vmatprep.subr.mxu0 0.0
    %1341 = vmatpush1.msra.mxu0 0.0
    %1342 = vmatprep.subr.mxu0 0.0
    %1343 = vmatpush1.msra.mxu0 0.0
    %1344 = vmatprep.subr.mxu0 0.0
    %1345 = vmatpush1.msra.mxu0 0.0
    %1346 = vmatprep.subr.mxu0 0.0
    %1347 = vmatpush1.msra.mxu0 0.0
    %1348 = vmatprep.subr.mxu0 0.0
    %1349 = vmatpush1.msra.mxu0 0.0
    %1350 = vmatprep.subr.mxu0 0.0
    %1351 = vmatpush1.msra.mxu0 0.0
    %1352 = vmatprep.subr.mxu0 0.0
    %1353 = vmatpush1.msra.mxu0 0.0
    %1354 = vmatprep.mubr.f32.mxu0 0.0
    %1355 = vmatmul.mubr.f32.gmra.mrb[0].mxu0 %v1118
    %v1356 = vpop.f32.mrb[0].mxu0
    %v1357 = vadd.f32 %v1287, %v1356
    %v1358 = vpop.f32.mrb[0].mxu0
    %1359 = vdwg.mxu0
    %v1360 = vadd.f32 %v1357, %v545
    %v1361 = vxor.u32 %v1360, 2147483648
    %v1362 = vmul.f32 %v1361, 1.442695
    %v1363 = vpow.pop %v1362
    %v1364 = vadd.f32 %v1363, 1.0
    %v1365 = vrcp.pop %v1364
    %v1366 = vmul.f32 1.0, %v1365
    %v1367 = vtanh.pop %v1360
    %v1368 = vmul.f32 %v1366, %v1107
    %1370 = vrot.lane.b32.xlu0 %v1367, 64
    %v1371 = vpop.permute.xlu0 %1370
    %v1373 = vmul.f32 %v1366, %v1371
    %1375 = vrot.lane.b32.xlu0 %v1373, 32
    %v1376 = vpop.permute.xlu0 %1375
    %v1378 = vadd.f32 %v1368, %v1376
    %v1379 = vtanh.pop %v1378
    %1381 = vrot.lane.b32.xlu0 %v1379, 64
    %v1382 = vpop.permute.xlu0 %1381
    %v1384 = vmul.f32 %v1366, %v1382
    %v1385 = vld [vmem:[#allocation2 + $0x28] sm:$0xff]
    %1387 = vrot.lane.b32.xlu0 %v1214, 32
    %v1388 = vpop.permute.xlu0 %1387
    %v1389 = vsel %vm201, %v1388, 0
    %1391 = vmatprep.subr.mxu0 0.0
    %1392 = vmatpush1.msra.mxu0 %v38
    %1393 = vmatprep.subr.mxu0 0.0
    %1394 = vmatpush1.msra.mxu0 %v39
    %1395 = vmatprep.subr.mxu0 0.0
    %1396 = vmatpush1.msra.mxu0 %v40
    %1397 = vmatprep.subr.mxu0 0.0
    %1398 = vmatpush1.msra.mxu0 %v41
    %1399 = vmatprep.subr.mxu0 0.0
    %1400 = vmatpush1.msra.mxu0 0.0
    %1401 = vmatprep.subr.mxu0 0.0
    %1402 = vmatpush1.msra.mxu0 0.0
    %1403 = vmatprep.subr.mxu0 0.0
    %1404 = vmatpush1.msra.mxu0 0.0
    %1405 = vmatprep.subr.mxu0 0.0
    %1406 = vmatpush1.msra.mxu0 0.0
    %1407 = vmatprep.subr.mxu0 0.0
    %1408 = vmatpush1.msra.mxu0 0.0
    %1409 = vmatprep.subr.mxu0 0.0
    %1410 = vmatpush1.msra.mxu0 0.0
    %1411 = vmatprep.subr.mxu0 0.0
    %1412 = vmatpush1.msra.mxu0 0.0
    %1413 = vmatprep.subr.mxu0 0.0
    %1414 = vmatpush1.msra.mxu0 0.0
    %1415 = vmatprep.subr.mxu0 0.0
    %1416 = vmatpush1.msra.mxu0 0.0
    %1417 = vmatprep.subr.mxu0 0.0
    %1418 = vmatpush1.msra.mxu0 0.0
    %1419 = vmatprep.subr.mxu0 0.0
    %1420 = vmatpush1.msra.mxu0 0.0
    %1421 = vmatprep.subr.mxu0 0.0
    %1422 = vmatpush1.msra.mxu0 0.0
    %1423 = vmatprep.subr.mxu0 0.0
    %1424 = vmatpush1.msra.mxu0 0.0
    %1425 = vmatprep.subr.mxu0 0.0
    %1426 = vmatpush1.msra.mxu0 0.0
    %1427 = vmatprep.subr.mxu0 0.0
    %1428 = vmatpush1.msra.mxu0 0.0
    %1429 = vmatprep.subr.mxu0 0.0
    %1430 = vmatpush1.msra.mxu0 0.0
    %1431 = vmatprep.subr.mxu0 0.0
    %1432 = vmatpush1.msra.mxu0 0.0
    %1433 = vmatprep.subr.mxu0 0.0
    %1434 = vmatpush1.msra.mxu0 0.0
    %1435 = vmatprep.subr.mxu0 0.0
    %1436 = vmatpush1.msra.mxu0 0.0
    %1437 = vmatprep.subr.mxu0 0.0
    %1438 = vmatpush1.msra.mxu0 0.0
    %1439 = vmatprep.subr.mxu0 0.0
    %1440 = vmatpush1.msra.mxu0 0.0
    %1441 = vmatprep.subr.mxu0 0.0
    %1442 = vmatpush1.msra.mxu0 0.0
    %1443 = vmatprep.subr.mxu0 0.0
    %1444 = vmatpush1.msra.mxu0 0.0
    %1445 = vmatprep.subr.mxu0 0.0
    %1446 = vmatpush1.msra.mxu0 0.0
    %1447 = vmatprep.subr.mxu0 0.0
    %1448 = vmatpush1.msra.mxu0 0.0
    %1449 = vmatprep.subr.mxu0 0.0
    %1450 = vmatpush1.msra.mxu0 0.0
    %1451 = vmatprep.subr.mxu0 0.0
    %1452 = vmatpush1.msra.mxu0 0.0
    %1453 = vmatprep.subr.mxu0 0.0
    %1454 = vmatpush1.msra.mxu0 0.0
    %1455 = vmatprep.mubr.f32.mxu0 0.0
    %1456 = vmatmul.mubr.f32.gmra.mrb[0].mxu0 %v1389
    %v1457 = vpop.f32.mrb[0].mxu0
    %v1458 = vadd.f32 0.0, %v1457
    %v1459 = vpop.f32.mrb[0].mxu0
    %1460 = vdwg.mxu0
    %v1461 = vadd.f32 %v1385, %v1458
    %v1462 = vxor.u32 %v1461, 2147483648
    %v1463 = vmul.f32 %v1462, 1.442695
    %v1464 = vpow.pop %v1463
    %v1465 = vadd.f32 %v1464, 1.0
    %v1466 = vrcp.pop %v1465
    %v1467 = vmul.f32 1.0, %v1466
    %v1468 = vtanh.pop %v1461
    %v1469 = vmul.f32 %v1467, %v1208
    %1471 = vrot.lane.b32.xlu0 %v1468, 64
    %v1472 = vpop.permute.xlu0 %1471
    %v1474 = vmul.f32 %v1467, %v1472
    %1476 = vrot.lane.b32.xlu0 %v1474, 32
    %v1477 = vpop.permute.xlu0 %1476
    %v1479 = vadd.f32 %v1469, %v1477
    %v1480 = vtanh.pop %v1479
    %1482 = vrot.lane.b32.xlu0 %v1480, 64
    %v1483 = vpop.permute.xlu0 %1482
    %v1485 = vmul.f32 %v1467, %v1483
    %1487 = vrot.lane.b32.xlu0 %v1384, 32
    %v1488 = vpop.permute.xlu0 %1487
    %v1489 = vsel %vm201, %v1488, 0
    %1491 = vmatprep.subr.mxu0 0.0
    %1492 = vmatpush1.msra.mxu0 %v42
    %1493 = vmatprep.subr.mxu0 0.0
    %1494 = vmatpush1.msra.mxu0 %v43
    %1495 = vmatprep.subr.mxu0 0.0
    %1496 = vmatpush1.msra.mxu0 %v44
    %1497 = vmatprep.subr.mxu0 0.0
    %1498 = vmatpush1.msra.mxu0 %v45
    %1499 = vmatprep.subr.mxu0 0.0
    %1500 = vmatpush1.msra.mxu0 0.0
    %1501 = vmatprep.subr.mxu0 0.0
    %1502 = vmatpush1.msra.mxu0 0.0
    %1503 = vmatprep.subr.mxu0 0.0
    %1504 = vmatpush1.msra.mxu0 0.0
    %1505 = vmatprep.subr.mxu0 0.0
    %1506 = vmatpush1.msra.mxu0 0.0
    %1507 = vmatprep.subr.mxu0 0.0
    %1508 = vmatpush1.msra.mxu0 0.0
    %1509 = vmatprep.subr.mxu0 0.0
    %1510 = vmatpush1.msra.mxu0 0.0
    %1511 = vmatprep.subr.mxu0 0.0
    %1512 = vmatpush1.msra.mxu0 0.0
    %1513 = vmatprep.subr.mxu0 0.0
    %1514 = vmatpush1.msra.mxu0 0.0
    %1515 = vmatprep.subr.mxu0 0.0
    %1516 = vmatpush1.msra.mxu0 0.0
    %1517 = vmatprep.subr.mxu0 0.0
    %1518 = vmatpush1.msra.mxu0 0.0
    %1519 = vmatprep.subr.mxu0 0.0
    %1520 = vmatpush1.msra.mxu0 0.0
    %1521 = vmatprep.subr.mxu0 0.0
    %1522 = vmatpush1.msra.mxu0 0.0
    %1523 = vmatprep.subr.mxu0 0.0
    %1524 = vmatpush1.msra.mxu0 0.0
    %1525 = vmatprep.subr.mxu0 0.0
    %1526 = vmatpush1.msra.mxu0 0.0
    %1527 = vmatprep.subr.mxu0 0.0
    %1528 = vmatpush1.msra.mxu0 0.0
    %1529 = vmatprep.subr.mxu0 0.0
    %1530 = vmatpush1.msra.mxu0 0.0
    %1531 = vmatprep.subr.mxu0 0.0
    %1532 = vmatpush1.msra.mxu0 0.0
    %1533 = vmatprep.subr.mxu0 0.0
    %1534 = vmatpush1.msra.mxu0 0.0
    %1535 = vmatprep.subr.mxu0 0.0
    %1536 = vmatpush1.msra.mxu0 0.0
    %1537 = vmatprep.subr.mxu0 0.0
    %1538 = vmatpush1.msra.mxu0 0.0
    %1539 = vmatprep.subr.mxu0 0.0
    %1540 = vmatpush1.msra.mxu0 0.0
    %1541 = vmatprep.subr.mxu0 0.0
    %1542 = vmatpush1.msra.mxu0 0.0
    %1543 = vmatprep.subr.mxu0 0.0
    %1544 = vmatpush1.msra.mxu0 0.0
    %1545 = vmatprep.subr.mxu0 0.0
    %1546 = vmatpush1.msra.mxu0 0.0
    %1547 = vmatprep.subr.mxu0 0.0
    %1548 = vmatpush1.msra.mxu0 0.0
    %1549 = vmatprep.subr.mxu0 0.0
    %1550 = vmatpush1.msra.mxu0 0.0
    %1551 = vmatprep.subr.mxu0 0.0
    %1552 = vmatpush1.msra.mxu0 0.0
    %1553 = vmatprep.subr.mxu0 0.0
    %1554 = vmatpush1.msra.mxu0 0.0
    %1555 = vmatprep.mubr.f32.mxu0 0.0
    %1556 = vmatmul.mubr.f32.gmra.mrb[0].mxu0 %v1489
    %v1557 = vpop.f32.mrb[0].mxu0
    %v1558 = vadd.f32 0.0, %v1557
    %v1559 = vpop.f32.mrb[0].mxu0
    %1560 = vdwg.mxu0
    %1561 = vmatprep.subr.mxu0 0.0
    %1562 = vmatpush1.msra.mxu0 %v34
    %1563 = vmatprep.subr.mxu0 0.0
    %1564 = vmatpush1.msra.mxu0 %v35
    %1565 = vmatprep.subr.mxu0 0.0
    %1566 = vmatpush1.msra.mxu0 %v36
    %1567 = vmatprep.subr.mxu0 0.0
    %1568 = vmatpush1.msra.mxu0 %v37
    %1569 = vmatprep.subr.mxu0 0.0
    %1570 = vmatpush1.msra.mxu0 0.0
    %1571 = vmatprep.subr.mxu0 0.0
    %1572 = vmatpush1.msra.mxu0 0.0
    %1573 = vmatprep.subr.mxu0 0.0
    %1574 = vmatpush1.msra.mxu0 0.0
    %1575 = vmatprep.subr.mxu0 0.0
    %1576 = vmatpush1.msra.mxu0 0.0
    %1577 = vmatprep.subr.mxu0 0.0
    %1578 = vmatpush1.msra.mxu0 0.0
    %1579 = vmatprep.subr.mxu0 0.0
    %1580 = vmatpush1.msra.mxu0 0.0
    %1581 = vmatprep.subr.mxu0 0.0
    %1582 = vmatpush1.msra.mxu0 0.0
    %1583 = vmatprep.subr.mxu0 0.0
    %1584 = vmatpush1.msra.mxu0 0.0
    %1585 = vmatprep.subr.mxu0 0.0
    %1586 = vmatpush1.msra.mxu0 0.0
    %1587 = vmatprep.subr.mxu0 0.0
    %1588 = vmatpush1.msra.mxu0 0.0
    %1589 = vmatprep.subr.mxu0 0.0
    %1590 = vmatpush1.msra.mxu0 0.0
    %1591 = vmatprep.subr.mxu0 0.0
    %1592 = vmatpush1.msra.mxu0 0.0
    %1593 = vmatprep.subr.mxu0 0.0
    %1594 = vmatpush1.msra.mxu0 0.0
    %1595 = vmatprep.subr.mxu0 0.0
    %1596 = vmatpush1.msra.mxu0 0.0
    %1597 = vmatprep.subr.mxu0 0.0
    %1598 = vmatpush1.msra.mxu0 0.0
    %1599 = vmatprep.subr.mxu0 0.0
    %1600 = vmatpush1.msra.mxu0 0.0
    %1601 = vmatprep.subr.mxu0 0.0
    %1602 = vmatpush1.msra.mxu0 0.0
    %1603 = vmatprep.subr.mxu0 0.0
    %1604 = vmatpush1.msra.mxu0 0.0
    %1605 = vmatprep.subr.mxu0 0.0
    %1606 = vmatpush1.msra.mxu0 0.0
    %1607 = vmatprep.subr.mxu0 0.0
    %1608 = vmatpush1.msra.mxu0 0.0
    %1609 = vmatprep.subr.mxu0 0.0
    %1610 = vmatpush1.msra.mxu0 0.0
    %1611 = vmatprep.subr.mxu0 0.0
    %1612 = vmatpush1.msra.mxu0 0.0
    %1613 = vmatprep.subr.mxu0 0.0
    %1614 = vmatpush1.msra.mxu0 0.0
    %1615 = vmatprep.subr.mxu0 0.0
    %1616 = vmatpush1.msra.mxu0 0.0
    %1617 = vmatprep.subr.mxu0 0.0
    %1618 = vmatpush1.msra.mxu0 0.0
    %1619 = vmatprep.subr.mxu0 0.0
    %1620 = vmatpush1.msra.mxu0 0.0
    %1621 = vmatprep.subr.mxu0 0.0
    %1622 = vmatpush1.msra.mxu0 0.0
    %1623 = vmatprep.subr.mxu0 0.0
    %1624 = vmatpush1.msra.mxu0 0.0
    %1625 = vmatprep.mubr.f32.mxu0 0.0
    %1626 = vmatmul.mubr.f32.gmra.mrb[0].mxu0 %v1389
    %v1627 = vpop.f32.mrb[0].mxu0
    %v1628 = vadd.f32 %v1558, %v1627
    %v1629 = vpop.f32.mrb[0].mxu0
    %1630 = vdwg.mxu0
    %v1631 = vadd.f32 %v1628, %v545
    %v1632 = vxor.u32 %v1631, 2147483648
    %v1633 = vmul.f32 %v1632, 1.442695
    %v1634 = vpow.pop %v1633
    %v1635 = vadd.f32 %v1634, 1.0
    %v1636 = vrcp.pop %v1635
    %v1637 = vmul.f32 1.0, %v1636
    %v1638 = vtanh.pop %v1631
    %v1639 = vmul.f32 %v1637, %v1378
    %1641 = vrot.lane.b32.xlu0 %v1638, 64
    %v1642 = vpop.permute.xlu0 %1641
    %v1644 = vmul.f32 %v1637, %v1642
    %1646 = vrot.lane.b32.xlu0 %v1644, 32
    %v1647 = vpop.permute.xlu0 %1646
    %v1649 = vadd.f32 %v1639, %v1647
    %v1650 = vtanh.pop %v1649
    %1652 = vrot.lane.b32.xlu0 %v1650, 64
    %v1653 = vpop.permute.xlu0 %1652
    %v1655 = vmul.f32 %v1637, %v1653
    %v1656 = vld [vmem:[#allocation2 + $0x30] sm:$0xff]
    %1658 = vrot.lane.b32.xlu0 %v1485, 32
    %v1659 = vpop.permute.xlu0 %1658
    %v1660 = vsel %vm201, %v1659, 0
    %1662 = vmatprep.subr.mxu0 0.0
    %1663 = vmatpush1.msra.mxu0 %v38
    %1664 = vmatprep.subr.mxu0 0.0
    %1665 = vmatpush1.msra.mxu0 %v39
    %1666 = vmatprep.subr.mxu0 0.0
    %1667 = vmatpush1.msra.mxu0 %v40
    %1668 = vmatprep.subr.mxu0 0.0
    %1669 = vmatpush1.msra.mxu0 %v41
    %1670 = vmatprep.subr.mxu0 0.0
    %1671 = vmatpush1.msra.mxu0 0.0
    %1672 = vmatprep.subr.mxu0 0.0
    %1673 = vmatpush1.msra.mxu0 0.0
    %1674 = vmatprep.subr.mxu0 0.0
    %1675 = vmatpush1.msra.mxu0 0.0
    %1676 = vmatprep.subr.mxu0 0.0
    %1677 = vmatpush1.msra.mxu0 0.0
    %1678 = vmatprep.subr.mxu0 0.0
    %1679 = vmatpush1.msra.mxu0 0.0
    %1680 = vmatprep.subr.mxu0 0.0
    %1681 = vmatpush1.msra.mxu0 0.0
    %1682 = vmatprep.subr.mxu0 0.0
    %1683 = vmatpush1.msra.mxu0 0.0
    %1684 = vmatprep.subr.mxu0 0.0
    %1685 = vmatpush1.msra.mxu0 0.0
    %1686 = vmatprep.subr.mxu0 0.0
    %1687 = vmatpush1.msra.mxu0 0.0
    %1688 = vmatprep.subr.mxu0 0.0
    %1689 = vmatpush1.msra.mxu0 0.0
    %1690 = vmatprep.subr.mxu0 0.0
    %1691 = vmatpush1.msra.mxu0 0.0
    %1692 = vmatprep.subr.mxu0 0.0
    %1693 = vmatpush1.msra.mxu0 0.0
    %1694 = vmatprep.subr.mxu0 0.0
    %1695 = vmatpush1.msra.mxu0 0.0
    %1696 = vmatprep.subr.mxu0 0.0
    %1697 = vmatpush1.msra.mxu0 0.0
    %1698 = vmatprep.subr.mxu0 0.0
    %1699 = vmatpush1.msra.mxu0 0.0
    %1700 = vmatprep.subr.mxu0 0.0
    %1701 = vmatpush1.msra.mxu0 0.0
    %1702 = vmatprep.subr.mxu0 0.0
    %1703 = vmatpush1.msra.mxu0 0.0
    %1704 = vmatprep.subr.mxu0 0.0
    %1705 = vmatpush1.msra.mxu0 0.0
    %1706 = vmatprep.subr.mxu0 0.0
    %1707 = vmatpush1.msra.mxu0 0.0
    %1708 = vmatprep.subr.mxu0 0.0
    %1709 = vmatpush1.msra.mxu0 0.0
    %1710 = vmatprep.subr.mxu0 0.0
    %1711 = vmatpush1.msra.mxu0 0.0
    %1712 = vmatprep.subr.mxu0 0.0
    %1713 = vmatpush1.msra.mxu0 0.0
    %1714 = vmatprep.subr.mxu0 0.0
    %1715 = vmatpush1.msra.mxu0 0.0
    %1716 = vmatprep.subr.mxu0 0.0
    %1717 = vmatpush1.msra.mxu0 0.0
    %1718 = vmatprep.subr.mxu0 0.0
    %1719 = vmatpush1.msra.mxu0 0.0
    %1720 = vmatprep.subr.mxu0 0.0
    %1721 = vmatpush1.msra.mxu0 0.0
    %1722 = vmatprep.subr.mxu0 0.0
    %1723 = vmatpush1.msra.mxu0 0.0
    %1724 = vmatprep.subr.mxu0 0.0
    %1725 = vmatpush1.msra.mxu0 0.0
    %1726 = vmatprep.mubr.f32.mxu0 0.0
    %1727 = vmatmul.mubr.f32.gmra.mrb[0].mxu0 %v1660
    %v1728 = vpop.f32.mrb[0].mxu0
    %v1729 = vadd.f32 0.0, %v1728
    %v1730 = vpop.f32.mrb[0].mxu0
    %1731 = vdwg.mxu0
    %v1732 = vadd.f32 %v1656, %v1729
    %v1733 = vxor.u32 %v1732, 2147483648
    %v1734 = vmul.f32 %v1733, 1.442695
    %v1735 = vpow.pop %v1734
    %v1736 = vadd.f32 %v1735, 1.0
    %v1737 = vrcp.pop %v1736
    %v1738 = vmul.f32 1.0, %v1737
    %v1739 = vtanh.pop %v1732
    %v1740 = vmul.f32 %v1738, %v1479
    %1742 = vrot.lane.b32.xlu0 %v1739, 64
    %v1743 = vpop.permute.xlu0 %1742
    %v1745 = vmul.f32 %v1738, %v1743
    %1747 = vrot.lane.b32.xlu0 %v1745, 32
    %v1748 = vpop.permute.xlu0 %1747
    %v1750 = vadd.f32 %v1740, %v1748
    %v1751 = vtanh.pop %v1750
    %1753 = vrot.lane.b32.xlu0 %v1751, 64
    %v1754 = vpop.permute.xlu0 %1753
    %v1756 = vmul.f32 %v1738, %v1754
    %1758 = vrot.lane.b32.xlu0 %v1655, 32
    %v1759 = vpop.permute.xlu0 %1758
    %v1760 = vsel %vm201, %v1759, 0
    %1762 = vmatprep.subr.mxu0 0.0
    %1763 = vmatpush1.msra.mxu0 %v42
    %1764 = vmatprep.subr.mxu0 0.0
    %1765 = vmatpush1.msra.mxu0 %v43
    %1766 = vmatprep.subr.mxu0 0.0
    %1767 = vmatpush1.msra.mxu0 %v44
    %1768 = vmatprep.subr.mxu0 0.0
    %1769 = vmatpush1.msra.mxu0 %v45
    %1770 = vmatprep.subr.mxu0 0.0
    %1771 = vmatpush1.msra.mxu0 0.0
    %1772 = vmatprep.subr.mxu0 0.0
    %1773 = vmatpush1.msra.mxu0 0.0
    %1774 = vmatprep.subr.mxu0 0.0
    %1775 = vmatpush1.msra.mxu0 0.0
    %1776 = vmatprep.subr.mxu0 0.0
    %1777 = vmatpush1.msra.mxu0 0.0
    %1778 = vmatprep.subr.mxu0 0.0
    %1779 = vmatpush1.msra.mxu0 0.0
    %1780 = vmatprep.subr.mxu0 0.0
    %1781 = vmatpush1.msra.mxu0 0.0
    %1782 = vmatprep.subr.mxu0 0.0
    %1783 = vmatpush1.msra.mxu0 0.0
    %1784 = vmatprep.subr.mxu0 0.0
    %1785 = vmatpush1.msra.mxu0 0.0
    %1786 = vmatprep.subr.mxu0 0.0
    %1787 = vmatpush1.msra.mxu0 0.0
    %1788 = vmatprep.subr.mxu0 0.0
    %1789 = vmatpush1.msra.mxu0 0.0
    %1790 = vmatprep.subr.mxu0 0.0
    %1791 = vmatpush1.msra.mxu0 0.0
    %1792 = vmatprep.subr.mxu0 0.0
    %1793 = vmatpush1.msra.mxu0 0.0
    %1794 = vmatprep.subr.mxu0 0.0
    %1795 = vmatpush1.msra.mxu0 0.0
    %1796 = vmatprep.subr.mxu0 0.0
    %1797 = vmatpush1.msra.mxu0 0.0
    %1798 = vmatprep.subr.mxu0 0.0
    %1799 = vmatpush1.msra.mxu0 0.0
    %1800 = vmatprep.subr.mxu0 0.0
    %1801 = vmatpush1.msra.mxu0 0.0
    %1802 = vmatprep.subr.mxu0 0.0
    %1803 = vmatpush1.msra.mxu0 0.0
    %1804 = vmatprep.subr.mxu0 0.0
    %1805 = vmatpush1.msra.mxu0 0.0
    %1806 = vmatprep.subr.mxu0 0.0
    %1807 = vmatpush1.msra.mxu0 0.0
    %1808 = vmatprep.subr.mxu0 0.0
    %1809 = vmatpush1.msra.mxu0 0.0
    %1810 = vmatprep.subr.mxu0 0.0
    %1811 = vmatpush1.msra.mxu0 0.0
    %1812 = vmatprep.subr.mxu0 0.0
    %1813 = vmatpush1.msra.mxu0 0.0
    %1814 = vmatprep.subr.mxu0 0.0
    %1815 = vmatpush1.msra.mxu0 0.0
    %1816 = vmatprep.subr.mxu0 0.0
    %1817 = vmatpush1.msra.mxu0 0.0
    %1818 = vmatprep.subr.mxu0 0.0
    %1819 = vmatpush1.msra.mxu0 0.0
    %1820 = vmatprep.subr.mxu0 0.0
    %1821 = vmatpush1.msra.mxu0 0.0
    %1822 = vmatprep.subr.mxu0 0.0
    %1823 = vmatpush1.msra.mxu0 0.0
    %1824 = vmatprep.subr.mxu0 0.0
    %1825 = vmatpush1.msra.mxu0 0.0
    %1826 = vmatprep.mubr.f32.mxu0 0.0
    %1827 = vmatmul.mubr.f32.gmra.mrb[0].mxu0 %v1760
    %v1828 = vpop.f32.mrb[0].mxu0
    %v1829 = vadd.f32 0.0, %v1828
    %v1830 = vpop.f32.mrb[0].mxu0
    %1831 = vdwg.mxu0
    %1832 = vmatprep.subr.mxu0 0.0
    %1833 = vmatpush1.msra.mxu0 %v34
    %1834 = vmatprep.subr.mxu0 0.0
    %1835 = vmatpush1.msra.mxu0 %v35
    %1836 = vmatprep.subr.mxu0 0.0
    %1837 = vmatpush1.msra.mxu0 %v36
    %1838 = vmatprep.subr.mxu0 0.0
    %1839 = vmatpush1.msra.mxu0 %v37
    %1840 = vmatprep.subr.mxu0 0.0
    %1841 = vmatpush1.msra.mxu0 0.0
    %1842 = vmatprep.subr.mxu0 0.0
    %1843 = vmatpush1.msra.mxu0 0.0
    %1844 = vmatprep.subr.mxu0 0.0
    %1845 = vmatpush1.msra.mxu0 0.0
    %1846 = vmatprep.subr.mxu0 0.0
    %1847 = vmatpush1.msra.mxu0 0.0
    %1848 = vmatprep.subr.mxu0 0.0
    %1849 = vmatpush1.msra.mxu0 0.0
    %1850 = vmatprep.subr.mxu0 0.0
    %1851 = vmatpush1.msra.mxu0 0.0
    %1852 = vmatprep.subr.mxu0 0.0
    %1853 = vmatpush1.msra.mxu0 0.0
    %1854 = vmatprep.subr.mxu0 0.0
    %1855 = vmatpush1.msra.mxu0 0.0
    %1856 = vmatprep.subr.mxu0 0.0
    %1857 = vmatpush1.msra.mxu0 0.0
    %1858 = vmatprep.subr.mxu0 0.0
    %1859 = vmatpush1.msra.mxu0 0.0
    %1860 = vmatprep.subr.mxu0 0.0
    %1861 = vmatpush1.msra.mxu0 0.0
    %1862 = vmatprep.subr.mxu0 0.0
    %1863 = vmatpush1.msra.mxu0 0.0
    %1864 = vmatprep.subr.mxu0 0.0
    %1865 = vmatpush1.msra.mxu0 0.0
    %1866 = vmatprep.subr.mxu0 0.0
    %1867 = vmatpush1.msra.mxu0 0.0
    %1868 = vmatprep.subr.mxu0 0.0
    %1869 = vmatpush1.msra.mxu0 0.0
    %1870 = vmatprep.subr.mxu0 0.0
    %1871 = vmatpush1.msra.mxu0 0.0
    %1872 = vmatprep.subr.mxu0 0.0
    %1873 = vmatpush1.msra.mxu0 0.0
    %1874 = vmatprep.subr.mxu0 0.0
    %1875 = vmatpush1.msra.mxu0 0.0
    %1876 = vmatprep.subr.mxu0 0.0
    %1877 = vmatpush1.msra.mxu0 0.0
    %1878 = vmatprep.subr.mxu0 0.0
    %1879 = vmatpush1.msra.mxu0 0.0
    %1880 = vmatprep.subr.mxu0 0.0
    %1881 = vmatpush1.msra.mxu0 0.0
    %1882 = vmatprep.subr.mxu0 0.0
    %1883 = vmatpush1.msra.mxu0 0.0
    %1884 = vmatprep.subr.mxu0 0.0
    %1885 = vmatpush1.msra.mxu0 0.0
    %1886 = vmatprep.subr.mxu0 0.0
    %1887 = vmatpush1.msra.mxu0 0.0
    %1888 = vmatprep.subr.mxu0 0.0
    %1889 = vmatpush1.msra.mxu0 0.0
    %1890 = vmatprep.subr.mxu0 0.0
    %1891 = vmatpush1.msra.mxu0 0.0
    %1892 = vmatprep.subr.mxu0 0.0
    %1893 = vmatpush1.msra.mxu0 0.0
    %1894 = vmatprep.subr.mxu0 0.0
    %1895 = vmatpush1.msra.mxu0 0.0
    %1896 = vmatprep.mubr.f32.mxu0 0.0
    %1897 = vmatmul.mubr.f32.gmra.mrb[0].mxu0 %v1660
    %v1898 = vpop.f32.mrb[0].mxu0
    %v1899 = vadd.f32 %v1829, %v1898
    %v1900 = vpop.f32.mrb[0].mxu0
    %1901 = vdwg.mxu0
    %v1902 = vadd.f32 %v1899, %v545
    %v1903 = vxor.u32 %v1902, 2147483648
    %v1904 = vmul.f32 %v1903, 1.442695
    %v1905 = vpow.pop %v1904
    %v1906 = vadd.f32 %v1905, 1.0
    %v1907 = vrcp.pop %v1906
    %v1908 = vmul.f32 1.0, %v1907
    %v1909 = vtanh.pop %v1902
    %v1910 = vmul.f32 %v1908, %v1649
    %1912 = vrot.lane.b32.xlu0 %v1909, 64
    %v1913 = vpop.permute.xlu0 %1912
    %v1915 = vmul.f32 %v1908, %v1913
    %1917 = vrot.lane.b32.xlu0 %v1915, 32
    %v1918 = vpop.permute.xlu0 %1917
    %v1920 = vadd.f32 %v1910, %v1918
    %v1921 = vtanh.pop %v1920
    %1923 = vrot.lane.b32.xlu0 %v1921, 64
    %v1924 = vpop.permute.xlu0 %1923
    %v1926 = vmul.f32 %v1908, %v1924
    %v1927 = vld [vmem:[#allocation2 + $0x38] sm:$0xff]
    %1929 = vrot.lane.b32.xlu0 %v1756, 32
    %v1930 = vpop.permute.xlu0 %1929
    %v1931 = vsel %vm201, %v1930, 0
    %1933 = vmatprep.subr.mxu0 0.0
    %1934 = vmatpush1.msra.mxu0 %v38
    %1935 = vmatprep.subr.mxu0 0.0
    %1936 = vmatpush1.msra.mxu0 %v39
    %1937 = vmatprep.subr.mxu0 0.0
    %1938 = vmatpush1.msra.mxu0 %v40
    %1939 = vmatprep.subr.mxu0 0.0
    %1940 = vmatpush1.msra.mxu0 %v41
    %1941 = vmatprep.subr.mxu0 0.0
    %1942 = vmatpush1.msra.mxu0 0.0
    %1943 = vmatprep.subr.mxu0 0.0
    %1944 = vmatpush1.msra.mxu0 0.0
    %1945 = vmatprep.subr.mxu0 0.0
    %1946 = vmatpush1.msra.mxu0 0.0
    %1947 = vmatprep.subr.mxu0 0.0
    %1948 = vmatpush1.msra.mxu0 0.0
    %1949 = vmatprep.subr.mxu0 0.0
    %1950 = vmatpush1.msra.mxu0 0.0
    %1951 = vmatprep.subr.mxu0 0.0
    %1952 = vmatpush1.msra.mxu0 0.0
    %1953 = vmatprep.subr.mxu0 0.0
    %1954 = vmatpush1.msra.mxu0 0.0
    %1955 = vmatprep.subr.mxu0 0.0
    %1956 = vmatpush1.msra.mxu0 0.0
    %1957 = vmatprep.subr.mxu0 0.0
    %1958 = vmatpush1.msra.mxu0 0.0
    %1959 = vmatprep.subr.mxu0 0.0
    %1960 = vmatpush1.msra.mxu0 0.0
    %1961 = vmatprep.subr.mxu0 0.0
    %1962 = vmatpush1.msra.mxu0 0.0
    %1963 = vmatprep.subr.mxu0 0.0
    %1964 = vmatpush1.msra.mxu0 0.0
    %1965 = vmatprep.subr.mxu0 0.0
    %1966 = vmatpush1.msra.mxu0 0.0
    %1967 = vmatprep.subr.mxu0 0.0
    %1968 = vmatpush1.msra.mxu0 0.0
    %1969 = vmatprep.subr.mxu0 0.0
    %1970 = vmatpush1.msra.mxu0 0.0
    %1971 = vmatprep.subr.mxu0 0.0
    %1972 = vmatpush1.msra.mxu0 0.0
    %1973 = vmatprep.subr.mxu0 0.0
    %1974 = vmatpush1.msra.mxu0 0.0
    %1975 = vmatprep.subr.mxu0 0.0
    %1976 = vmatpush1.msra.mxu0 0.0
    %1977 = vmatprep.subr.mxu0 0.0
    %1978 = vmatpush1.msra.mxu0 0.0
    %1979 = vmatprep.subr.mxu0 0.0
    %1980 = vmatpush1.msra.mxu0 0.0
    %1981 = vmatprep.subr.mxu0 0.0
    %1982 = vmatpush1.msra.mxu0 0.0
    %1983 = vmatprep.subr.mxu0 0.0
    %1984 = vmatpush1.msra.mxu0 0.0
    %1985 = vmatprep.subr.mxu0 0.0
    %1986 = vmatpush1.msra.mxu0 0.0
    %1987 = vmatprep.subr.mxu0 0.0
    %1988 = vmatpush1.msra.mxu0 0.0
    %1989 = vmatprep.subr.mxu0 0.0
    %1990 = vmatpush1.msra.mxu0 0.0
    %1991 = vmatprep.subr.mxu0 0.0
    %1992 = vmatpush1.msra.mxu0 0.0
    %1993 = vmatprep.subr.mxu0 0.0
    %1994 = vmatpush1.msra.mxu0 0.0
    %1995 = vmatprep.subr.mxu0 0.0
    %1996 = vmatpush1.msra.mxu0 0.0
    %1997 = vmatprep.mubr.f32.mxu0 0.0
    %1998 = vmatmul.mubr.f32.gmra.mrb[0].mxu0 %v1931
    %v1999 = vpop.f32.mrb[0].mxu0
    %v2000 = vadd.f32 0.0, %v1999
    %v2001 = vpop.f32.mrb[0].mxu0
    %2002 = vdwg.mxu0
    %v2003 = vadd.f32 %v1927, %v2000
    %v2004 = vxor.u32 %v2003, 2147483648
    %v2005 = vmul.f32 %v2004, 1.442695
    %v2006 = vpow.pop %v2005
    %v2007 = vadd.f32 %v2006, 1.0
    %v2008 = vrcp.pop %v2007
    %v2009 = vmul.f32 1.0, %v2008
    %v2010 = vtanh.pop %v2003
    %v2011 = vmul.f32 %v2009, %v1750
    %2013 = vrot.lane.b32.xlu0 %v2010, 64
    %v2014 = vpop.permute.xlu0 %2013
    %v2016 = vmul.f32 %v2009, %v2014
    %2018 = vrot.lane.b32.xlu0 %v2016, 32
    %v2019 = vpop.permute.xlu0 %2018
    %v2021 = vadd.f32 %v2011, %v2019
    %v2022 = vtanh.pop %v2021
    %2024 = vrot.lane.b32.xlu0 %v2022, 64
    %v2025 = vpop.permute.xlu0 %2024
    %v2027 = vmul.f32 %v2009, %v2025
    %2029 = vrot.lane.b32.xlu0 %v1926, 32
    %v2030 = vpop.permute.xlu0 %2029
    %v2031 = vsel %vm201, %v2030, 0
    %2033 = vmatprep.subr.mxu0 0.0
    %2034 = vmatpush1.msra.mxu0 %v42
    %2035 = vmatprep.subr.mxu0 0.0
    %2036 = vmatpush1.msra.mxu0 %v43
    %2037 = vmatprep.subr.mxu0 0.0
    %2038 = vmatpush1.msra.mxu0 %v44
    %2039 = vmatprep.subr.mxu0 0.0
    %2040 = vmatpush1.msra.mxu0 %v45
    %2041 = vmatprep.subr.mxu0 0.0
    %2042 = vmatpush1.msra.mxu0 0.0
    %2043 = vmatprep.subr.mxu0 0.0
    %2044 = vmatpush1.msra.mxu0 0.0
    %2045 = vmatprep.subr.mxu0 0.0
    %2046 = vmatpush1.msra.mxu0 0.0
    %2047 = vmatprep.subr.mxu0 0.0
    %2048 = vmatpush1.msra.mxu0 0.0
    %2049 = vmatprep.subr.mxu0 0.0
    %2050 = vmatpush1.msra.mxu0 0.0
    %2051 = vmatprep.subr.mxu0 0.0
    %2052 = vmatpush1.msra.mxu0 0.0
    %2053 = vmatprep.subr.mxu0 0.0
    %2054 = vmatpush1.msra.mxu0 0.0
    %2055 = vmatprep.subr.mxu0 0.0
    %2056 = vmatpush1.msra.mxu0 0.0
    %2057 = vmatprep.subr.mxu0 0.0
    %2058 = vmatpush1.msra.mxu0 0.0
    %2059 = vmatprep.subr.mxu0 0.0
    %2060 = vmatpush1.msra.mxu0 0.0
    %2061 = vmatprep.subr.mxu0 0.0
    %2062 = vmatpush1.msra.mxu0 0.0
    %2063 = vmatprep.subr.mxu0 0.0
    %2064 = vmatpush1.msra.mxu0 0.0
    %2065 = vmatprep.subr.mxu0 0.0
    %2066 = vmatpush1.msra.mxu0 0.0
    %2067 = vmatprep.subr.mxu0 0.0
    %2068 = vmatpush1.msra.mxu0 0.0
    %2069 = vmatprep.subr.mxu0 0.0
    %2070 = vmatpush1.msra.mxu0 0.0
    %2071 = vmatprep.subr.mxu0 0.0
    %2072 = vmatpush1.msra.mxu0 0.0
    %2073 = vmatprep.subr.mxu0 0.0
    %2074 = vmatpush1.msra.mxu0 0.0
    %2075 = vmatprep.subr.mxu0 0.0
    %2076 = vmatpush1.msra.mxu0 0.0
    %2077 = vmatprep.subr.mxu0 0.0
    %2078 = vmatpush1.msra.mxu0 0.0
    %2079 = vmatprep.subr.mxu0 0.0
    %2080 = vmatpush1.msra.mxu0 0.0
    %2081 = vmatprep.subr.mxu0 0.0
    %2082 = vmatpush1.msra.mxu0 0.0
    %2083 = vmatprep.subr.mxu0 0.0
    %2084 = vmatpush1.msra.mxu0 0.0
    %2085 = vmatprep.subr.mxu0 0.0
    %2086 = vmatpush1.msra.mxu0 0.0
    %2087 = vmatprep.subr.mxu0 0.0
    %2088 = vmatpush1.msra.mxu0 0.0
    %2089 = vmatprep.subr.mxu0 0.0
    %2090 = vmatpush1.msra.mxu0 0.0
    %2091 = vmatprep.subr.mxu0 0.0
    %2092 = vmatpush1.msra.mxu0 0.0
    %2093 = vmatprep.subr.mxu0 0.0
    %2094 = vmatpush1.msra.mxu0 0.0
    %2095 = vmatprep.subr.mxu0 0.0
    %2096 = vmatpush1.msra.mxu0 0.0
    %2097 = vmatprep.mubr.f32.mxu0 0.0
    %2098 = vmatmul.mubr.f32.gmra.mrb[0].mxu0 %v2031
    %v2099 = vpop.f32.mrb[0].mxu0
    %v2100 = vadd.f32 0.0, %v2099
    %v2101 = vpop.f32.mrb[0].mxu0
    %2102 = vdwg.mxu0
    %2103 = vmatprep.subr.mxu0 0.0
    %2104 = vmatpush1.msra.mxu0 %v34
    %2105 = vmatprep.subr.mxu0 0.0
    %2106 = vmatpush1.msra.mxu0 %v35
    %2107 = vmatprep.subr.mxu0 0.0
    %2108 = vmatpush1.msra.mxu0 %v36
    %2109 = vmatprep.subr.mxu0 0.0
    %2110 = vmatpush1.msra.mxu0 %v37
    %2111 = vmatprep.subr.mxu0 0.0
    %2112 = vmatpush1.msra.mxu0 0.0
    %2113 = vmatprep.subr.mxu0 0.0
    %2114 = vmatpush1.msra.mxu0 0.0
    %2115 = vmatprep.subr.mxu0 0.0
    %2116 = vmatpush1.msra.mxu0 0.0
    %2117 = vmatprep.subr.mxu0 0.0
    %2118 = vmatpush1.msra.mxu0 0.0
    %2119 = vmatprep.subr.mxu0 0.0
    %2120 = vmatpush1.msra.mxu0 0.0
    %2121 = vmatprep.subr.mxu0 0.0
    %2122 = vmatpush1.msra.mxu0 0.0
    %2123 = vmatprep.subr.mxu0 0.0
    %2124 = vmatpush1.msra.mxu0 0.0
    %2125 = vmatprep.subr.mxu0 0.0
    %2126 = vmatpush1.msra.mxu0 0.0
    %2127 = vmatprep.subr.mxu0 0.0
    %2128 = vmatpush1.msra.mxu0 0.0
    %2129 = vmatprep.subr.mxu0 0.0
    %2130 = vmatpush1.msra.mxu0 0.0
    %2131 = vmatprep.subr.mxu0 0.0
    %2132 = vmatpush1.msra.mxu0 0.0
    %2133 = vmatprep.subr.mxu0 0.0
    %2134 = vmatpush1.msra.mxu0 0.0
    %2135 = vmatprep.subr.mxu0 0.0
    %2136 = vmatpush1.msra.mxu0 0.0
    %2137 = vmatprep.subr.mxu0 0.0
    %2138 = vmatpush1.msra.mxu0 0.0
    %2139 = vmatprep.subr.mxu0 0.0
    %2140 = vmatpush1.msra.mxu0 0.0
    %2141 = vmatprep.subr.mxu0 0.0
    %2142 = vmatpush1.msra.mxu0 0.0
    %2143 = vmatprep.subr.mxu0 0.0
    %2144 = vmatpush1.msra.mxu0 0.0
    %2145 = vmatprep.subr.mxu0 0.0
    %2146 = vmatpush1.msra.mxu0 0.0
    %2147 = vmatprep.subr.mxu0 0.0
    %2148 = vmatpush1.msra.mxu0 0.0
    %2149 = vmatprep.subr.mxu0 0.0
    %2150 = vmatpush1.msra.mxu0 0.0
    %2151 = vmatprep.subr.mxu0 0.0
    %2152 = vmatpush1.msra.mxu0 0.0
    %2153 = vmatprep.subr.mxu0 0.0
    %2154 = vmatpush1.msra.mxu0 0.0
    %2155 = vmatprep.subr.mxu0 0.0
    %2156 = vmatpush1.msra.mxu0 0.0
    %2157 = vmatprep.subr.mxu0 0.0
    %2158 = vmatpush1.msra.mxu0 0.0
    %2159 = vmatprep.subr.mxu0 0.0
    %2160 = vmatpush1.msra.mxu0 0.0
    %2161 = vmatprep.subr.mxu0 0.0
    %2162 = vmatpush1.msra.mxu0 0.0
    %2163 = vmatprep.subr.mxu0 0.0
    %2164 = vmatpush1.msra.mxu0 0.0
    %2165 = vmatprep.subr.mxu0 0.0
    %2166 = vmatpush1.msra.mxu0 0.0
    %2167 = vmatprep.mubr.f32.mxu0 0.0
    %2168 = vmatmul.mubr.f32.gmra.mrb[0].mxu0 %v1931
    %v2169 = vpop.f32.mrb[0].mxu0
    %v2170 = vadd.f32 %v2100, %v2169
    %v2171 = vpop.f32.mrb[0].mxu0
    %2172 = vdwg.mxu0
    %v2173 = vadd.f32 %v2170, %v545
    %v2174 = vxor.u32 %v2173, 2147483648
    %v2175 = vmul.f32 %v2174, 1.442695
    %v2176 = vpow.pop %v2175
    %v2177 = vadd.f32 %v2176, 1.0
    %v2178 = vrcp.pop %v2177
    %v2179 = vmul.f32 1.0, %v2178
    %v2180 = vtanh.pop %v2173
    %v2181 = vmul.f32 %v2179, %v1920
    %2183 = vrot.lane.b32.xlu0 %v2180, 64
    %v2184 = vpop.permute.xlu0 %2183
    %v2186 = vmul.f32 %v2179, %v2184
    %2188 = vrot.lane.b32.xlu0 %v2186, 32
    %v2189 = vpop.permute.xlu0 %2188
    %v2191 = vadd.f32 %v2181, %v2189
    %v2192 = vtanh.pop %v2191
    %2194 = vrot.lane.b32.xlu0 %v2192, 64
    %v2195 = vpop.permute.xlu0 %2194
    %v2197 = vmul.f32 %v2179, %v2195
    %2199 = vrot.lane.b32.xlu0 %v2197, 32
    %v2200 = vpop.permute.xlu0 %2199
    %v2201 = vsel %vm201, %v2200, 0
    %2203 = vmatprep.subr.mxu0 0.0
    %2204 = vmatpush1.msra.mxu0 %v42
    %2205 = vmatprep.subr.mxu0 0.0
    %2206 = vmatpush1.msra.mxu0 %v43
    %2207 = vmatprep.subr.mxu0 0.0
    %2208 = vmatpush1.msra.mxu0 %v44
    %2209 = vmatprep.subr.mxu0 0.0
    %2210 = vmatpush1.msra.mxu0 %v45
    %2211 = vmatprep.subr.mxu0 0.0
    %2212 = vmatpush1.msra.mxu0 0.0
    %2213 = vmatprep.subr.mxu0 0.0
    %2214 = vmatpush1.msra.mxu0 0.0
    %2215 = vmatprep.subr.mxu0 0.0
    %2216 = vmatpush1.msra.mxu0 0.0
    %2217 = vmatprep.subr.mxu0 0.0
    %2218 = vmatpush1.msra.mxu0 0.0
    %2219 = vmatprep.subr.mxu0 0.0
    %2220 = vmatpush1.msra.mxu0 0.0
    %2221 = vmatprep.subr.mxu0 0.0
    %2222 = vmatpush1.msra.mxu0 0.0
    %2223 = vmatprep.subr.mxu0 0.0
    %2224 = vmatpush1.msra.mxu0 0.0
    %2225 = vmatprep.subr.mxu0 0.0
    %2226 = vmatpush1.msra.mxu0 0.0
    %2227 = vmatprep.subr.mxu0 0.0
    %2228 = vmatpush1.msra.mxu0 0.0
    %2229 = vmatprep.subr.mxu0 0.0
    %2230 = vmatpush1.msra.mxu0 0.0
    %2231 = vmatprep.subr.mxu0 0.0
    %2232 = vmatpush1.msra.mxu0 0.0
    %2233 = vmatprep.subr.mxu0 0.0
    %2234 = vmatpush1.msra.mxu0 0.0
    %2235 = vmatprep.subr.mxu0 0.0
    %2236 = vmatpush1.msra.mxu0 0.0
    %2237 = vmatprep.subr.mxu0 0.0
    %2238 = vmatpush1.msra.mxu0 0.0
    %2239 = vmatprep.subr.mxu0 0.0
    %2240 = vmatpush1.msra.mxu0 0.0
    %2241 = vmatprep.subr.mxu0 0.0
    %2242 = vmatpush1.msra.mxu0 0.0
    %2243 = vmatprep.subr.mxu0 0.0
    %2244 = vmatpush1.msra.mxu0 0.0
    %2245 = vmatprep.subr.mxu0 0.0
    %2246 = vmatpush1.msra.mxu0 0.0
    %2247 = vmatprep.subr.mxu0 0.0
    %2248 = vmatpush1.msra.mxu0 0.0
    %2249 = vmatprep.subr.mxu0 0.0
    %2250 = vmatpush1.msra.mxu0 0.0
    %2251 = vmatprep.subr.mxu0 0.0
    %2252 = vmatpush1.msra.mxu0 0.0
    %2253 = vmatprep.subr.mxu0 0.0
    %2254 = vmatpush1.msra.mxu0 0.0
    %2255 = vmatprep.subr.mxu0 0.0
    %2256 = vmatpush1.msra.mxu0 0.0
    %2257 = vmatprep.subr.mxu0 0.0
    %2258 = vmatpush1.msra.mxu0 0.0
    %2259 = vmatprep.subr.mxu0 0.0
    %2260 = vmatpush1.msra.mxu0 0.0
    %2261 = vmatprep.subr.mxu0 0.0
    %2262 = vmatpush1.msra.mxu0 0.0
    %2263 = vmatprep.subr.mxu0 0.0
    %2264 = vmatpush1.msra.mxu0 0.0
    %2265 = vmatprep.subr.mxu0 0.0
    %2266 = vmatpush1.msra.mxu0 0.0
    %2267 = vmatprep.mubr.f32.mxu0 0.0
    %2268 = vmatmul.mubr.f32.gmra.mrb[0].mxu0 %v2201
    %v2269 = vpop.f32.mrb[0].mxu0
    %v2270 = vadd.f32 0.0, %v2269
    %v2271 = vpop.f32.mrb[0].mxu0
    %2272 = vdwg.mxu0
    %2274 = vrot.lane.b32.xlu0 %v2027, 32
    %v2275 = vpop.permute.xlu0 %2274
    %v2276 = vsel %vm201, %v2275, 0
    %2278 = vmatprep.subr.mxu0 0.0
    %2279 = vmatpush1.msra.mxu0 %v34
    %2280 = vmatprep.subr.mxu0 0.0
    %2281 = vmatpush1.msra.mxu0 %v35
    %2282 = vmatprep.subr.mxu0 0.0
    %2283 = vmatpush1.msra.mxu0 %v36
    %2284 = vmatprep.subr.mxu0 0.0
    %2285 = vmatpush1.msra.mxu0 %v37
    %2286 = vmatprep.subr.mxu0 0.0
    %2287 = vmatpush1.msra.mxu0 0.0
    %2288 = vmatprep.subr.mxu0 0.0
    %2289 = vmatpush1.msra.mxu0 0.0
    %2290 = vmatprep.subr.mxu0 0.0
    %2291 = vmatpush1.msra.mxu0 0.0
    %2292 = vmatprep.subr.mxu0 0.0
    %2293 = vmatpush1.msra.mxu0 0.0
    %2294 = vmatprep.subr.mxu0 0.0
    %2295 = vmatpush1.msra.mxu0 0.0
    %2296 = vmatprep.subr.mxu0 0.0
    %2297 = vmatpush1.msra.mxu0 0.0
    %2298 = vmatprep.subr.mxu0 0.0
    %2299 = vmatpush1.msra.mxu0 0.0
    %2300 = vmatprep.subr.mxu0 0.0
    %2301 = vmatpush1.msra.mxu0 0.0
    %2302 = vmatprep.subr.mxu0 0.0
    %2303 = vmatpush1.msra.mxu0 0.0
    %2304 = vmatprep.subr.mxu0 0.0
    %2305 = vmatpush1.msra.mxu0 0.0
    %2306 = vmatprep.subr.mxu0 0.0
    %2307 = vmatpush1.msra.mxu0 0.0
    %2308 = vmatprep.subr.mxu0 0.0
    %2309 = vmatpush1.msra.mxu0 0.0
    %2310 = vmatprep.subr.mxu0 0.0
    %2311 = vmatpush1.msra.mxu0 0.0
    %2312 = vmatprep.subr.mxu0 0.0
    %2313 = vmatpush1.msra.mxu0 0.0
    %2314 = vmatprep.subr.mxu0 0.0
    %2315 = vmatpush1.msra.mxu0 0.0
    %2316 = vmatprep.subr.mxu0 0.0
    %2317 = vmatpush1.msra.mxu0 0.0
    %2318 = vmatprep.subr.mxu0 0.0
    %2319 = vmatpush1.msra.mxu0 0.0
    %2320 = vmatprep.subr.mxu0 0.0
    %2321 = vmatpush1.msra.mxu0 0.0
    %2322 = vmatprep.subr.mxu0 0.0
    %2323 = vmatpush1.msra.mxu0 0.0
    %2324 = vmatprep.subr.mxu0 0.0
    %2325 = vmatpush1.msra.mxu0 0.0
    %2326 = vmatprep.subr.mxu0 0.0
    %2327 = vmatpush1.msra.mxu0 0.0
    %2328 = vmatprep.subr.mxu0 0.0
    %2329 = vmatpush1.msra.mxu0 0.0
    %2330 = vmatprep.subr.mxu0 0.0
    %2331 = vmatpush1.msra.mxu0 0.0
    %2332 = vmatprep.subr.mxu0 0.0
    %2333 = vmatpush1.msra.mxu0 0.0
    %2334 = vmatprep.subr.mxu0 0.0
    %2335 = vmatpush1.msra.mxu0 0.0
    %2336 = vmatprep.subr.mxu0 0.0
    %2337 = vmatpush1.msra.mxu0 0.0
    %2338 = vmatprep.subr.mxu0 0.0
    %2339 = vmatpush1.msra.mxu0 0.0
    %2340 = vmatprep.subr.mxu0 0.0
    %2341 = vmatpush1.msra.mxu0 0.0
    %2342 = vmatprep.mubr.f32.mxu0 0.0
    %2343 = vmatmul.mubr.f32.gmra.mrb[0].mxu0 %v2276
    %v2344 = vpop.f32.mrb[0].mxu0
    %v2345 = vadd.f32 %v2270, %v2344
    %v2346 = vpop.f32.mrb[0].mxu0
    %2347 = vdwg.mxu0
    %v2348 = vadd.f32 %v2345, %v545
    %v2349 = vxor.u32 %v2348, 2147483648
    %v2350 = vmul.f32 %v2349, 1.442695
    %v2351 = vpow.pop %v2350
    %v2352 = vadd.f32 %v2351, 1.0
    %v2353 = vrcp.pop %v2352
    %v2354 = vmul.f32 1.0, %v2353
    %v2355 = vtanh.pop %v2348
    %v2356 = vmul.f32 %v2354, %v2191
    %2358 = vrot.lane.b32.xlu0 %v2355, 64
    %v2359 = vpop.permute.xlu0 %2358
    %v2361 = vmul.f32 %v2354, %v2359
    %2363 = vrot.lane.b32.xlu0 %v2361, 32
    %v2364 = vpop.permute.xlu0 %2363
    %v2366 = vadd.f32 %v2356, %v2364
    %v2367 = vtanh.pop %v2366
    %2369 = vrot.lane.b32.xlu0 %v2367, 64
    %v2370 = vpop.permute.xlu0 %2369
    %v2372 = vmul.f32 %v2354, %v2370
    %v2373 = vld [vmem:[%s7] sm:$0xff]
    %v2374 = vld [vmem:[%s7 + $0x8] sm:$0xff]
    %v2375 = vld [vmem:[%s7 + $0x10] sm:$0xff]
    %v2376 = vld [vmem:[%s7 + $0x18] sm:$0xff]
    %v2377 = vld [vmem:[%s8] sm:$0x1]
    %v2379 = vlaneseq
    %v2380 = vshrl.u32 %v2379, 7
    %v2381 = vsub.s32 0, %v2380
    %v2382 = vrot.slane %v2377, %v2381
    %2385 = vrot.lane.b32.xlu0 %v2372, 32
    %v2386 = vpop.permute.xlu0 %2385
    %v2387 = vsel %vm201, %v2386, 0
    %2389 = vmatprep.subr.mxu0 0.0
    %2390 = vmatpush1.msra.mxu0 %v2373
    %2391 = vmatprep.subr.mxu0 0.0
    %2392 = vmatpush1.msra.mxu0 %v2374
    %2393 = vmatprep.subr.mxu0 0.0
    %2394 = vmatpush1.msra.mxu0 %v2375
    %2395 = vmatprep.subr.mxu0 0.0
    %2396 = vmatpush1.msra.mxu0 %v2376
    %2397 = vmatprep.subr.mxu0 0.0
    %2398 = vmatpush1.msra.mxu0 0.0
    %2399 = vmatprep.subr.mxu0 0.0
    %2400 = vmatpush1.msra.mxu0 0.0
    %2401 = vmatprep.subr.mxu0 0.0
    %2402 = vmatpush1.msra.mxu0 0.0
    %2403 = vmatprep.subr.mxu0 0.0
    %2404 = vmatpush1.msra.mxu0 0.0
    %2405 = vmatprep.subr.mxu0 0.0
    %2406 = vmatpush1.msra.mxu0 0.0
    %2407 = vmatprep.subr.mxu0 0.0
    %2408 = vmatpush1.msra.mxu0 0.0
    %2409 = vmatprep.subr.mxu0 0.0
    %2410 = vmatpush1.msra.mxu0 0.0
    %2411 = vmatprep.subr.mxu0 0.0
    %2412 = vmatpush1.msra.mxu0 0.0
    %2413 = vmatprep.subr.mxu0 0.0
    %2414 = vmatpush1.msra.mxu0 0.0
    %2415 = vmatprep.subr.mxu0 0.0
    %2416 = vmatpush1.msra.mxu0 0.0
    %2417 = vmatprep.subr.mxu0 0.0
    %2418 = vmatpush1.msra.mxu0 0.0
    %2419 = vmatprep.subr.mxu0 0.0
    %2420 = vmatpush1.msra.mxu0 0.0
    %2421 = vmatprep.subr.mxu0 0.0
    %2422 = vmatpush1.msra.mxu0 0.0
    %2423 = vmatprep.subr.mxu0 0.0
    %2424 = vmatpush1.msra.mxu0 0.0
    %2425 = vmatprep.subr.mxu0 0.0
    %2426 = vmatpush1.msra.mxu0 0.0
    %2427 = vmatprep.subr.mxu0 0.0
    %2428 = vmatpush1.msra.mxu0 0.0
    %2429 = vmatprep.subr.mxu0 0.0
    %2430 = vmatpush1.msra.mxu0 0.0
    %2431 = vmatprep.subr.mxu0 0.0
    %2432 = vmatpush1.msra.mxu0 0.0
    %2433 = vmatprep.subr.mxu0 0.0
    %2434 = vmatpush1.msra.mxu0 0.0
    %2435 = vmatprep.subr.mxu0 0.0
    %2436 = vmatpush1.msra.mxu0 0.0
    %2437 = vmatprep.subr.mxu0 0.0
    %2438 = vmatpush1.msra.mxu0 0.0
    %2439 = vmatprep.subr.mxu0 0.0
    %2440 = vmatpush1.msra.mxu0 0.0
    %2441 = vmatprep.subr.mxu0 0.0
    %2442 = vmatpush1.msra.mxu0 0.0
    %2443 = vmatprep.subr.mxu0 0.0
    %2444 = vmatpush1.msra.mxu0 0.0
    %2445 = vmatprep.subr.mxu0 0.0
    %2446 = vmatpush1.msra.mxu0 0.0
    %2447 = vmatprep.subr.mxu0 0.0
    %2448 = vmatpush1.msra.mxu0 0.0
    %2449 = vmatprep.subr.mxu0 0.0
    %2450 = vmatpush1.msra.mxu0 0.0
    %2451 = vmatprep.subr.mxu0 0.0
    %2452 = vmatpush1.msra.mxu0 0.0
    %2453 = vmatprep.mubr.f32.mxu0 0.0
    %2454 = vmatmul.mubr.f32.gmra.mrb[0].mxu0 %v2387
    %v2455 = vpop.f32.mrb[0].mxu0
    %v2456 = vadd.f32 %v2382, %v2455
    %v2457 = vpop.f32.mrb[0].mxu0
    %2458 = vdwg.mxu0
    %2459 = vst.msk [vmem:[#allocation3] sm:$0xff] %vm62, %v2456
    // Predicated region
    $region38: #{tpu_custom_call.1} parent=1 // pred_check
      _
    $region39: #{tpu_custom_call.1} parent=1 // pred_check_branch
      %2461 = sbr.rel (0) target = $region41
    $region40: #{tpu_custom_call.1} parent=1 // pred_region
      %s2463 = ssub.s32 128, 128
      %2464 = vsyncadd [#allocation4], %s2463
      %s2466 = sshll.u32 [#allocation3], 4
      %s2467 = int_to_ptr.vmem [resolvable:$true] %s2466
      %2469 = dma.vmem_to_hbm [thread:$0]  %s2467, 128, %s9, [#allocation4]
    $region41: #{tpu_custom_call.1} parent=1 // pred_fallthru
      _
    // Predicated region
    $region42: #{tpu_custom_call.1} parent=1 // pred_check
      _
    $region43: #{tpu_custom_call.1} parent=1 // pred_check_branch
      %2471 = sbr.rel (0) target = $region45
    $region44: #{tpu_custom_call.1} parent=1 // pred_region
      %2472 = dma.done [#allocation4], 128
    $region45: #{tpu_custom_call.1} parent=1 // pred_fallthru
      _
    %2473 = vsyncpa [#allocation4], 1

</llo_original>
